<compile_context>
chip_gen: v6e
topology: v6e:2x2x1
jax: 0.10.0
libtpu: 0.0.40
codegen_flags: <defaults>
</compile_context>

<pallas_src>
import jax
import jax.numpy as jnp
from jax.experimental import pallas as pl
from jax.experimental.pallas import tpu as pltpu


# ----------------------------- hardware-aware knobs ------------------------

def _vmem_limit_bytes():
    # ~85% of per-core VMEM (≈54 MiB on v7x, ≈109 MiB on v5e/v6e); 64 MiB fallback.
    try:
        cap = int(pltpu.get_tpu_info().vmem_capacity_bytes)
        return min(int(cap * 0.85), 112 * 1024 * 1024)
    except Exception:
        return 64 * 1024 * 1024


VMEM_LIMIT = _vmem_limit_bytes()


def _bf16_gelu_default():
    # bf16 VPU/EUP path exists on v6e/v7x; keep QuickGELU in f32 on v5e and older.
    try:
        kind = jax.devices()[0].device_kind.lower()
    except Exception:
        return False
    return not any(t in kind for t in ("v2", "v3", "v4", "v5"))


def _probe_buffered_one():
    # Buffered(1) halves VMEM residency of grid-invariant weights. Probe once so the
    # script still runs cleanly on JAX versions without the pipeline_mode knob.
    try:
        def k(x_ref, o_ref):
            o_ref[...] = x_ref[...] + 1.0
        x = jnp.zeros((8, 128), jnp.float32)
        out = pl.pallas_call(
            k,
            out_shape=jax.ShapeDtypeStruct((16, 128), jnp.float32),
            grid=(2,),
            in_specs=[pl.BlockSpec((8, 128), lambda i: (0, 0),
                                   pipeline_mode=pl.Buffered(1))],
            out_specs=pl.BlockSpec((8, 128), lambda i: (i, 0)),
        )(x)
        jax.block_until_ready(out)
        return True
    except Exception:
        return False


_BUFFERED_ONE = None


def _buffered_one_kwargs():
    global _BUFFERED_ONE
    if _BUFFERED_ONE is None:
        _BUFFERED_ONE = _probe_buffered_one()
    return {"pipeline_mode": pl.Buffered(1)} if _BUFFERED_ONE else {}


# ----------------------------- math helpers --------------------------------

def _layernorm(x, gamma, beta, eps=1e-5):
    # f32 statistics (v5e has no bf16 VPU path).
    mean = jnp.mean(x, axis=-1, keepdims=True)
    var = jnp.mean((x - mean) ** 2, axis=-1, keepdims=True)
    return (x - mean) * jax.lax.rsqrt(var + eps) * gamma + beta


def _quick_gelu(h, use_bf16):
    # CLIP QuickGELU: x * sigmoid(1.702 x). Returns bf16 (ready to feed the MXU).
    if use_bf16:
        hb = h.astype(jnp.bfloat16)
        return hb * jax.nn.sigmoid(hb * 1.702)
    return (h * jax.nn.sigmoid(1.702 * h)).astype(jnp.bfloat16)


# ----------------------------- Pallas kernels ------------------------------

def embed_kernel(p_ref, w_ref, cls_ref, pos_ref, g_ref, b_ref, o_ref):
    """conv1-as-matmul + class token + positional embedding + ln_pre (one batch elem).

    p_ref : (1, N, C*P*P) bf16   w_ref : (C*P*P, D) bf16
    cls   : (1, D) f32           pos   : (S, D) f32   g/b : (1, D) f32
    o_ref : (1, S, D) f32
    """
    emb = jnp.dot(p_ref[0], w_ref[...], preferred_element_type=jnp.float32)   # (N, D)
    tokens = jnp.concatenate([cls_ref[...], emb], axis=0) + pos_ref[...]      # (S, D)
    # Single LayerNorm pass + one aligned full-slab store.
    o_ref[0] = _layernorm(tokens, g_ref[...], b_ref[...])


def qkv_kernel(x_ref, g_ref, b_ref, w_ref, bias_ref, o_ref):
    """ln_1 + fused QKV projection for one batch element.

    x_ref : (1, S, D) f32   w_ref : (D, 3D) bf16   bias : (1, 3D) f32
    o_ref : (1, 3, S, D) bf16  (plane 0 = Q, 1 = K, 2 = V, biases already added)
    """
    D = x_ref.shape[-1]
    xn = _layernorm(x_ref[0], g_ref[...], b_ref[...])
    qkv = jnp.dot(xn.astype(jnp.bfloat16), w_ref[...],
                  preferred_element_type=jnp.float32) + bias_ref[...]         # (S, 3D)
    for j in range(3):
        o_ref[0, j] = qkv[:, j * D:(j + 1) * D].astype(jnp.bfloat16)


def make_attn_mlp_kernel(num_heads, head_dim, mlp_chunk, use_bf16_gelu):
    scale = 1.0 / (head_dim ** 0.5)
    bf = jnp.bfloat16
    f32 = jnp.float32

    def kernel(x_ref, q_ref, k_ref, v_ref,
               wo_ref, bo_ref, ln2g_ref, ln2b_ref,
               wfc_ref, bfc_ref, wproj_ref, bproj_ref,
               o_ref, attn_scr):
        x = x_ref[0]                       # (TQ, D) f32   residual-stream query tile
        q_all = q_ref[0, 0]                # (TQ, D) bf16
        k_all = k_ref[0, 0]                # (S,  D) bf16
        v_all = v_ref[0, 0]                # (S,  D) bf16

        # --- multi-head attention over this query tile ---
        # TODO(synk): head-pair / head-major relayout to avoid masked Dh-wide slices.
        for h in range(num_heads):
            lo = h * head_dim
            q = q_all[:, lo:lo + head_dim]
            k = k_all[:, lo:lo + head_dim]
            v = v_all[:, lo:lo + head_dim]
            s = jax.lax.dot_general(q, k, (((1,), (1,)), ((), ())),
                                    preferred_element_type=f32) * scale       # (TQ, S)
            s = s - jnp.max(s, axis=-1, keepdims=True)
            p = jnp.exp(s)
            p = p * pl.reciprocal(jnp.sum(p, axis=-1, keepdims=True), approx=True)
            attn_scr[:, lo:lo + head_dim] = jnp.dot(
                p.astype(bf), v, preferred_element_type=f32).astype(bf)

        # Full-width output projection from the bf16 scratch.
        attn = jnp.dot(attn_scr[...], wo_ref[...],
                       preferred_element_type=f32) + bo_ref[...]
        x2 = x + attn

        # --- MLP branch, streamed over the 4D hidden dimension ---
        xn2 = _layernorm(x2, ln2g_ref[...], ln2b_ref[...]).astype(bf)
        d4 = wfc_ref.shape[1]
        y = None
        for c0 in range(0, d4, mlp_chunk):
            h1 = jnp.dot(xn2, wfc_ref[:, c0:c0 + mlp_chunk],
                         preferred_element_type=f32) + bfc_ref[:, c0:c0 + mlp_chunk]
            g = _quick_gelu(h1, use_bf16_gelu)
            yc = jnp.dot(g, wproj_ref[c0:c0 + mlp_chunk, :],
                         preferred_element_type=f32)
            y = yc if y is None else y + yc

        o_ref[0] = x2 + y + bproj_ref[...]

    return kernel


# ----------------------------- pallas_call wrappers ------------------------

def embed_tokens(patches, w_patch, cls, pos, ln_g, ln_b):
    B, N, CPP = patches.shape
    S, D = pos.shape
    wk = _buffered_one_kwargs()
    return pl.pallas_call(
        embed_kernel,
        out_shape=jax.ShapeDtypeStruct((B, S, D), jnp.float32),
        grid=(B,),
        in_specs=[pl.BlockSpec((1, N, CPP), lambda b: (b, 0, 0)),
                  pl.BlockSpec((CPP, D), lambda b: (0, 0), **wk),
                  pl.BlockSpec((1, D), lambda b: (0, 0), **wk),
                  pl.BlockSpec((S, D), lambda b: (0, 0), **wk),
                  pl.BlockSpec((1, D), lambda b: (0, 0), **wk),
                  pl.BlockSpec((1, D), lambda b: (0, 0), **wk)],
        out_specs=pl.BlockSpec((1, S, D), lambda b: (b, 0, 0)),
        compiler_params=pltpu.CompilerParams(
            dimension_semantics=("parallel",),
            vmem_limit_bytes=VMEM_LIMIT),
    )(patches, w_patch, cls, pos, ln_g, ln_b)


def qkv_project(x, blk):
    B, S, D = x.shape
    wk = _buffered_one_kwargs()
    return pl.pallas_call(
        qkv_kernel,
        out_shape=jax.ShapeDtypeStruct((B, 3, S, D), jnp.bfloat16),
        grid=(B,),
        in_specs=[pl.BlockSpec((1, S, D), lambda b: (b, 0, 0)),
                  pl.BlockSpec((1, D), lambda b: (0, 0), **wk),
                  pl.BlockSpec((1, D), lambda b: (0, 0), **wk),
                  pl.BlockSpec((D, 3 * D), lambda b: (0, 0), **wk),
                  pl.BlockSpec((1, 3 * D), lambda b: (0, 0), **wk)],
        out_specs=pl.BlockSpec((1, 3, S, D), lambda b: (b, 0, 0, 0)),
        compiler_params=pltpu.CompilerParams(
            dimension_semantics=("parallel",),
            vmem_limit_bytes=VMEM_LIMIT),
    )(x, blk["ln1_g"], blk["ln1_b"], blk["wqkv"], blk["bqkv"])


def attn_mlp(x, qkv, blk, num_heads, use_bf16_gelu):
    B, S, D = x.shape
    D4 = blk["wfc"].shape[1]
    # Second "parallel" grid axis over query-row tiles (keeps both v7x TCs busy at
    # small batch and shrinks per-step activations).
    # TODO(synk): production S=257 leaves a ragged last tile; relies on Pallas
    #             masking of the out-of-bounds block rows.
    TQ = 128 if S > 128 else S
    NQ = pl.cdiv(S, TQ)
    mlp_chunk = 1024 if (D4 % 1024 == 0 and D4 > 1024) else D4
    kernel = make_attn_mlp_kernel(num_heads, D // num_heads, mlp_chunk, use_bf16_gelu)
    wk = _buffered_one_kwargs()

    def wspec(shape):
        return pl.BlockSpec(shape, lambda b, i: (0, 0), **wk)

    return pl.pallas_call(
        kernel,
        out_shape=jax.ShapeDtypeStruct((B, S, D), jnp.float32),
        grid=(B, NQ),
        in_specs=[
            pl.BlockSpec((1, TQ, D), lambda b, i: (b, i, 0)),          # residual tile
            pl.BlockSpec((1, 1, TQ, D), lambda b, i: (b, 0, i, 0)),    # Q rows (tile)
            pl.BlockSpec((1, 1, S, D), lambda b, i: (b, 1, 0, 0)),     # K (full S)
            pl.BlockSpec((1, 1, S, D), lambda b, i: (b, 2, 0, 0)),     # V (full S)
            wspec((D, D)), wspec((1, D)),                              # wo, bo
            wspec((1, D)), wspec((1, D)),                              # ln2 g, b
            wspec((D, D4)), wspec((1, D4)),                            # wfc, bfc
            wspec((D4, D)), wspec((1, D)),                             # wproj, bproj
        ],
        out_specs=pl.BlockSpec((1, TQ, D), lambda b, i: (b, i, 0)),
        scratch_shapes=[pltpu.VMEM((TQ, D), jnp.bfloat16)],            # bf16 attn scratch
        input_output_aliases={0: 0},                                   # residual in-place
        compiler_params=pltpu.CompilerParams(
            dimension_semantics=("parallel", "parallel"),
            vmem_limit_bytes=VMEM_LIMIT),
    )(x, qkv, qkv, qkv,
      blk["wo"], blk["bo"], blk["ln2_g"], blk["ln2_b"],
      blk["wfc"], blk["bfc"], blk["wproj"], blk["bproj"])


# ----------------------------- parameters ----------------------------------

def init_params(key, cfg):
    C, P, D, S = cfg["in_ch"], cfg["patch"], cfg["width"], cfg["seq"]
    n_blocks = cfg["layers"] - 1          # resblocks[:-1] : last block is dropped
    nrm = jax.random.normal

    k0, k1, k2 = jax.random.split(key, 3)
    params = {
        "conv_w": 0.02 * nrm(k0, (D, C, P, P), jnp.float32),
        "class_emb": 0.02 * nrm(k1, (D,), jnp.float32),
        "pos_emb": 0.01 * nrm(k2, (S, D), jnp.float32),
        "ln_pre_g": jnp.ones((D,), jnp.float32),
        "ln_pre_b": jnp.zeros((D,), jnp.float32),
        "blocks": [],
    }
    for i in range(n_blocks):
        kb = jax.random.split(jax.random.fold_in(key, 100 + i), 8)
        params["blocks"].append({
            "ln1_g": jnp.ones((D,), jnp.float32),
            "ln1_b": jnp.zeros((D,), jnp.float32),
            "in_w": 0.02 * nrm(kb[0], (3 * D, D), jnp.float32),   # torch in_proj_weight
            "in_b": 0.01 * nrm(kb[1], (3 * D,), jnp.float32),
            "out_w": 0.02 * nrm(kb[2], (D, D), jnp.float32),      # torch out_proj.weight
            "out_b": 0.01 * nrm(kb[3], (D,), jnp.float32),
            "ln2_g": jnp.ones((D,), jnp.float32),
            "ln2_b": jnp.zeros((D,), jnp.float32),
            "fc_w": 0.02 * nrm(kb[4], (4 * D, D), jnp.float32),   # c_fc.weight
            "fc_b": 0.01 * nrm(kb[5], (4 * D,), jnp.float32),
            "proj_w": 0.02 * nrm(kb[6], (D, 4 * D), jnp.float32), # c_proj.weight
            "proj_b": 0.01 * nrm(kb[7], (D,), jnp.float32),
        })
    return params


def prepare_params(params, cfg):
    """One-time conversion of torch-layout params into kernel layout (bf16 matmul
    weights, fused QKV). Hoisted out of the forward loop."""
    C, P, D = cfg["in_ch"], cfg["patch"], cfg["width"]
    bf = jnp.bfloat16
    prep = {
        "w_patch": params["conv_w"].reshape(D, C * P * P).T.astype(bf),   # (C*P*P, D)
        "cls": params["class_emb"][None, :],                              # (1, D) f32
        "pos": params["pos_emb"],                                         # (S, D) f32
        "ln_pre_g": params["ln_pre_g"][None, :],
        "ln_pre_b": params["ln_pre_b"][None, :],
        "blocks": [],
    }
    for blk in params["blocks"]:
        prep["blocks"].append(dict(
            ln1_g=blk["ln1_g"][None, :], ln1_b=blk["ln1_b"][None, :],
            wqkv=blk["in_w"].T.astype(bf), bqkv=blk["in_b"][None, :],     # (D,3D),(1,3D)
            wo=blk["out_w"].T.astype(bf), bo=blk["out_b"][None, :],       # (D,D), (1,D)
            ln2_g=blk["ln2_g"][None, :], ln2_b=blk["ln2_b"][None, :],
            wfc=blk["fc_w"].T.astype(bf), bfc=blk["fc_b"][None, :],       # (D,4D),(1,4D)
            wproj=blk["proj_w"].T.astype(bf), bproj=blk["proj_b"][None, :],
        ))
    return prep


# ----------------------------- forward (kernels + glue) --------------------

def clip_vit_embedder_forward(x, prep, cfg, class_emb_only=False, use_bf16_gelu=False):
    B, C, Himg, Wimg = x.shape
    P, H = cfg["patch"], cfg["heads"]
    Gh, Gw = Himg // P, Wimg // P
    N = Gh * Gw

    # conv1 (stride == kernel) as patch-flatten (XLA glue) + fused Pallas
    # matmul/cls/pos/ln_pre kernel. Patches cast to bf16 -> halves DMA + feeds MXU.
    patches = (x.reshape(B, C, Gh, P, Gw, P)
                 .transpose(0, 2, 4, 1, 3, 5)
                 .reshape(B, N, C * P * P)).astype(jnp.bfloat16)
    t = embed_tokens(patches, prep["w_patch"], prep["cls"], prep["pos"],
                     prep["ln_pre_g"], prep["ln_pre_b"])

    # transformer with the last resblock removed
    for blk in prep["blocks"]:
        qkv = qkv_project(t, blk)                       # (B, 3, S, D) bf16
        t = attn_mlp(t, qkv, blk, H, use_bf16_gelu)     # residual updated in place

    if class_emb_only:
        return t[:, 0, :]
    return t


# ----------------------------- references ----------------------------------

def _ln_ref(x, g, b, eps=1e-5):
    m = jnp.mean(x, -1, keepdims=True)
    v = jnp.mean((x - m) ** 2, -1, keepdims=True)
    return (x - m) * jax.lax.rsqrt(v + eps) * g + b


def ref_forward_mirror(x, prep, cfg, use_bf16_gelu=False):
    """Pure-JAX reference mirroring the kernel math (bf16 matmul inputs, f32 accum)."""
    B, C, Hi, _ = x.shape
    P, D, H = cfg["patch"], cfg["width"], cfg["heads"]
    Dh = D // H
    G = Hi // P
    bf, f32 = jnp.bfloat16, jnp.float32
    patches = (x.reshape(B, C, G, P, G, P).transpose(0, 2, 4, 1, 3, 5)
                 .reshape(B, G * G, C * P * P)).astype(bf)
    emb = jnp.einsum("bnp,pd->bnd", patches, prep["w_patch"],
                     preferred_element_type=f32)
    cls = jnp.broadcast_to(prep["cls"][None], (B, 1, D))
    t = jnp.concatenate([cls, emb], axis=1) + prep["pos"][None]
    t = _ln_ref(t, prep["ln_pre_g"][0], prep["ln_pre_b"][0])
    for blk in prep["blocks"]:
        xn = _ln_ref(t, blk["ln1_g"][0], blk["ln1_b"][0])
        qkv = (jnp.einsum("bsd,de->bse", xn.astype(bf), blk["wqkv"],
                          preferred_element_type=f32) + blk["bqkv"][0]).astype(bf)
        q, k, v = qkv[..., :D], qkv[..., D:2 * D], qkv[..., 2 * D:]
        sh = lambda a: a.reshape(B, -1, H, Dh).transpose(0, 2, 1, 3)
        q, k, v = sh(q), sh(k), sh(v)
        s = jnp.einsum("bhqe,bhke->bhqk", q, k,
                       preferred_element_type=f32) * (1.0 / (Dh ** 0.5))
        p = jax.nn.softmax(s, axis=-1)
        o = jnp.einsum("bhqk,bhke->bhqe", p.astype(bf), v,
                       preferred_element_type=f32)
        o = o.transpose(0, 2, 1, 3).reshape(B, -1, D).astype(bf)
        t = t + jnp.einsum("bsd,de->bse", o, blk["wo"],
                           preferred_element_type=f32) + blk["bo"][0]
        xn2 = _ln_ref(t, blk["ln2_g"][0], blk["ln2_b"][0])
        h1 = jnp.einsum("bsd,df->bsf", xn2.astype(bf), blk["wfc"],
                        preferred_element_type=f32) + blk["bfc"][0]
        g = _quick_gelu(h1, use_bf16_gelu)
        t = t + jnp.einsum("bsf,fd->bsd", g, blk["wproj"],
                           preferred_element_type=f32) + blk["bproj"][0]
    return t


def ref_forward_f32(x, params, cfg):
    """Full-f32 reference of the original module semantics (raw torch-layout params)."""
    B, C, Himg, _ = x.shape
    P, D, H = cfg["patch"], cfg["width"], cfg["heads"]
    G = Himg // P
    Dh = D // H
    xp = (x.reshape(B, C, G, P, G, P).transpose(0, 2, 4, 1, 3, 5)
            .reshape(B, G * G, C * P * P))
    t = xp @ params["conv_w"].reshape(D, -1).T
    cls = jnp.broadcast_to(params["class_emb"], (B, 1, D))
    t = jnp.concatenate([cls, t], axis=1) + params["pos_emb"]
    t = _ln_ref(t, params["ln_pre_g"], params["ln_pre_b"])
    for blk in params["blocks"]:
        xn = _ln_ref(t, blk["ln1_g"], blk["ln1_b"])
        qkv = xn @ blk["in_w"].T + blk["in_b"]
        q, k, v = jnp.split(qkv, 3, axis=-1)
        sh = lambda a: a.reshape(B, -1, H, Dh).transpose(0, 2, 1, 3)
        q, k, v = sh(q), sh(k), sh(v)
        s = jnp.einsum("bhqe,bhke->bhqk", q, k) / jnp.sqrt(Dh)
        p = jax.nn.softmax(s, axis=-1)
        o = jnp.einsum("bhqk,bhke->bhqe", p, v).transpose(0, 2, 1, 3).reshape(B, -1, D)
        t = t + (o @ blk["out_w"].T + blk["out_b"])
        xn2 = _ln_ref(t, blk["ln2_g"], blk["ln2_b"])
        h1 = xn2 @ blk["fc_w"].T + blk["fc_b"]
        g = h1 * jax.nn.sigmoid(1.702 * h1)
        t = t + (g @ blk["proj_w"].T + blk["proj_b"])
    return t


# ----------------------------- main -----------------------------------------

if __name__ == "__main__":
    # NOTE: toy shapes for the self-test. For production CLIP (D=768/1024, S=197/257)
    # D is a multiple of 128 (lane-dense stores) and S > 128 activates query tiling.
    cfg = dict(in_ch=3, image=16, patch=8, width=32, heads=4, layers=3)
    cfg["seq"] = (cfg["image"] // cfg["patch"]) ** 2 + 1   # 5 tokens

    key = jax.random.PRNGKey(0)
    params = init_params(key, cfg)
    prep = prepare_params(params, cfg)     # one-time weight re-layout (bf16, fused QKV)
    use_bf16_gelu = _bf16_gelu_default()
    _ = _buffered_one_kwargs()             # probe Buffered(1) support outside any jit

    x = jax.random.normal(jax.random.fold_in(key, 999),
                          (2, cfg["in_ch"], cfg["image"], cfg["image"]),
                          jnp.float32)

    fwd = jax.jit(lambda xx, pp: clip_vit_embedder_forward(
        xx, pp, cfg, class_emb_only=False, use_bf16_gelu=use_bf16_gelu))
    out = jax.block_until_ready(fwd(x, prep))
    assert out.shape == (2, cfg["seq"], cfg["width"]), out.shape

    # Tight check against a reference mirroring the kernel's bf16-matmul/f32-accum math.
    ref_m = ref_forward_mirror(x, prep, cfg, use_bf16_gelu)
    err_m = float(jnp.max(jnp.abs(out - ref_m)))
    assert err_m < 2e-2, f"mirror max abs err too large: {err_m}"

    # Loose semantic check against the original full-f32 module math.
    ref_f = ref_forward_f32(x, params, cfg)
    err_f = float(jnp.max(jnp.abs(out - ref_f)))
    assert err_f < 1e-1, f"f32 semantic max abs err too large: {err_f}"

    print("KERNEL_OK")
</pallas_src>

<mosaic_0001>
module attributes {stable_mosaic.version = 11 : i64} {
  func.func @k(%arg0: i32, %arg1: memref<8x128xf32, #tpu.memory_space<vmem>>, %arg2: memref<8x128xf32, #tpu.memory_space<vmem>>) attributes {dimension_semantics = [#tpu.dimension_semantics<arbitrary>], iteration_bounds = array<i64: 2>, scalar_prefetch = 0 : i64, scratch_operands = 0 : i64, tpu.core_type = #tpu.core_type<tc>, window_params = [{pipeline_mode = #tpu.pipeline_mode<synchronous>, transform_indices = @transform_0, window_bounds = array<i64: 8, 128>}, {transform_indices = @transform_1, window_bounds = array<i64: 8, 128>}]} {
    %c0 = arith.constant 0 : index
    %c0_0 = arith.constant 0 : index
    %0 = vector.load %arg1[%c0, %c0_0] : memref<8x128xf32, #tpu.memory_space<vmem>>, vector<8x128xf32>
    %cst = arith.constant 1.000000e+00 : f32
    %1 = vector.broadcast %cst : f32 to vector<8x128xf32>
    %2 = arith.addf %0, %1 : vector<8x128xf32>
    %c0_1 = arith.constant 0 : index
    %c0_2 = arith.constant 0 : index
    %3 = vector.load %arg2[%c0_1, %c0_2] : memref<8x128xf32, #tpu.memory_space<vmem>>, vector<8x128xf32>
    tpu.vector_store %arg2[%c0_1, %c0_2], %2 {strides = array<i32>} : memref<8x128xf32, #tpu.memory_space<vmem>>, vector<8x128xf32>,
    return
  }
  func.func @transform_0(%arg0: i32) -> (i32, i32) {
    %c0_i32 = arith.constant 0 : i32
    %c0_i32_0 = arith.constant 0 : i32
    %c0_i32_1 = arith.constant 0 : i32
    return %c0_i32, %c0_i32_0 : i32, i32
  }
  func.func @transform_1(%arg0: i32) -> (i32, i32) {
    %c0_i32 = arith.constant 0 : i32
    %c0_i32_0 = arith.constant 0 : i32
    return %arg0, %c0_i32 : i32, i32
  }
}

module attributes {stable_mosaic.version = 11 : i64} {
  func.func @embed_kernel(%arg0: i32, %arg1: memref<1x4x192xbf16, #tpu.memory_space<vmem>>, %arg2: memref<192x32xbf16, #tpu.memory_space<vmem>>, %arg3: memref<1x32xf32, #tpu.memory_space<vmem>>, %arg4: memref<5x32xf32, #tpu.memory_space<vmem>>, %arg5: memref<1x32xf32, #tpu.memory_space<vmem>>, %arg6: memref<1x32xf32, #tpu.memory_space<vmem>>, %arg7: memref<1x5x32xf32, #tpu.memory_space<vmem>>) attributes {dimension_semantics = [#tpu.dimension_semantics<parallel>], iteration_bounds = array<i64: 2>, scalar_prefetch = 0 : i64, scratch_operands = 0 : i64, tpu.core_type = #tpu.core_type<tc>, window_params = [{transform_indices = @transform_0, window_bounds = array<i64: 1, 4, 192>}, {pipeline_mode = #tpu.pipeline_mode<synchronous>, transform_indices = @transform_1, window_bounds = array<i64: 192, 32>}, {pipeline_mode = #tpu.pipeline_mode<synchronous>, transform_indices = @transform_2, window_bounds = array<i64: 1, 32>}, {pipeline_mode = #tpu.pipeline_mode<synchronous>, transform_indices = @transform_3, window_bounds = array<i64: 5, 32>}, {pipeline_mode = #tpu.pipeline_mode<synchronous>, transform_indices = @transform_4, window_bounds = array<i64: 1, 32>}, {pipeline_mode = #tpu.pipeline_mode<synchronous>, transform_indices = @transform_5, window_bounds = array<i64: 1, 32>}, {transform_indices = @transform_6, window_bounds = array<i64: 1, 5, 32>}]} {
    %c0 = arith.constant 0 : index
    %c0_0 = arith.constant 0 : index
    %c0_1 = arith.constant 0 : index
    %0 = vector.load %arg1[%c0, %c0_0, %c0_1] : memref<1x4x192xbf16, #tpu.memory_space<vmem>>, vector<1x4x192xbf16>
    %1 = vector.shape_cast %0 : vector<1x4x192xbf16> to vector<4x192xbf16>
    %c0_2 = arith.constant 0 : index
    %c0_3 = arith.constant 0 : index
    %2 = vector.load %arg2[%c0_2, %c0_3] : memref<192x32xbf16, #tpu.memory_space<vmem>>, vector<192x32xbf16>
    %cst = arith.constant dense<0.000000e+00> : vector<4x32xf32>
    %3 = tpu.matmul %1, %2, %cst {dimension_numbers = #tpu.dot_dimension_numbers<[1], [0], [0], [1], [0, 0, 1, 1], [], []>} : vector<4x192xbf16>, vector<192x32xbf16>, vector<4x32xf32> -> vector<4x32xf32>
    %c0_4 = arith.constant 0 : index
    %c0_5 = arith.constant 0 : index
    %4 = vector.load %arg3[%c0_4, %c0_5] : memref<1x32xf32, #tpu.memory_space<vmem>>, vector<1x32xf32>
    %5 = tpu.concatenate %4, %3 in 0 : vector<1x32xf32>, vector<4x32xf32> -> vector<5x32xf32>
    %c0_6 = arith.constant 0 : index
    %c0_7 = arith.constant 0 : index
    %6 = vector.load %arg4[%c0_6, %c0_7] : memref<5x32xf32, #tpu.memory_space<vmem>>, vector<5x32xf32>
    %7 = arith.addf %5, %6 : vector<5x32xf32>
    %c0_8 = arith.constant 0 : index
    %c0_9 = arith.constant 0 : index
    %8 = vector.load %arg5[%c0_8, %c0_9] : memref<1x32xf32, #tpu.memory_space<vmem>>, vector<1x32xf32>
    %c0_10 = arith.constant 0 : index
    %c0_11 = arith.constant 0 : index
    %9 = vector.load %arg6[%c0_10, %c0_11] : memref<1x32xf32, #tpu.memory_space<vmem>>, vector<1x32xf32>
    %cst_12 = arith.constant dense<0.000000e+00> : vector<5xf32>
    %10 = vector.multi_reduction <add>, %7, %cst_12 [1] : vector<5x32xf32> to vector<5xf32>
    %11 = vector.shape_cast %10 : vector<5xf32> to vector<5x1xf32>
    %cst_13 = arith.constant 3.200000e+01 : f32
    %12 = vector.broadcast %cst_13 : f32 to vector<5x1xf32>
    %13 = arith.divf %11, %12 : vector<5x1xf32>
    %14 = vector.broadcast %13 : vector<5x1xf32> to vector<5x32xf32>
    %15 = arith.subf %7, %14 : vector<5x32xf32>
    %16 = arith.mulf %15, %15 : vector<5x32xf32>
    %cst_14 = arith.constant dense<0.000000e+00> : vector<5xf32>
    %17 = vector.multi_reduction <add>, %16, %cst_14 [1] : vector<5x32xf32> to vector<5xf32>
    %18 = vector.shape_cast %17 : vector<5xf32> to vector<5x1xf32>
    %cst_15 = arith.constant 3.200000e+01 : f32
    %19 = vector.broadcast %cst_15 : f32 to vector<5x1xf32>
    %20 = arith.divf %18, %19 : vector<5x1xf32>
    %21 = vector.broadcast %13 : vector<5x1xf32> to vector<5x32xf32>
    %22 = arith.subf %7, %21 : vector<5x32xf32>
    %cst_16 = arith.constant 9.99999974E-6 : f32
    %23 = vector.broadcast %cst_16 : f32 to vector<5x1xf32>
    %24 = arith.addf %20, %23 : vector<5x1xf32>
    %25 = math.rsqrt %24 : vector<5x1xf32>
    %26 = vector.broadcast %25 : vector<5x1xf32> to vector<5x32xf32>
    %27 = arith.mulf %22, %26 : vector<5x32xf32>
    %28 = vector.broadcast %8 : vector<1x32xf32> to vector<5x32xf32>
    %29 = arith.mulf %27, %28 : vector<5x32xf32>
    %30 = vector.broadcast %9 : vector<1x32xf32> to vector<5x32xf32>
    %31 = arith.addf %29, %30 : vector<5x32xf32>
    %c0_17 = arith.constant 0 : index
    %c0_18 = arith.constant 0 : index
    %c0_19 = arith.constant 0 : index
    %32 = vector.load %arg7[%c0_17, %c0_18, %c0_19] : memref<1x5x32xf32, #tpu.memory_space<vmem>>, vector<1x5x32xf32>
    %33 = vector.shape_cast %32 : vector<1x5x32xf32> to vector<5x32xf32>
    %34 = vector.shape_cast %31 : vector<5x32xf32> to vector<1x5x32xf32>
    tpu.vector_store %arg7[%c0_17, %c0_18, %c0_19], %34 {strides = array<i32>} : memref<1x5x32xf32, #tpu.memory_space<vmem>>, vector<1x5x32xf32>,
    return
  }
  func.func @transform_0(%arg0: i32) -> (i32, i32, i32) {
    %c0_i32 = arith.constant 0 : i32
    %c0_i32_0 = arith.constant 0 : i32
    %c0_i32_1 = arith.constant 0 : i32
    return %arg0, %c0_i32, %c0_i32_0 : i32, i32, i32
  }
  func.func @transform_1(%arg0: i32) -> (i32, i32) {
    %c0_i32 = arith.constant 0 : i32
    %c0_i32_0 = arith.constant 0 : i32
    %c0_i32_1 = arith.constant 0 : i32
    return %c0_i32, %c0_i32_0 : i32, i32
  }
  func.func @transform_2(%arg0: i32) -> (i32, i32) {
    %c0_i32 = arith.constant 0 : i32
    %c0_i32_0 = arith.constant 0 : i32
    %c0_i32_1 = arith.constant 0 : i32
    return %c0_i32, %c0_i32_0 : i32, i32
  }
  func.func @transform_3(%arg0: i32) -> (i32, i32) {
    %c0_i32 = arith.constant 0 : i32
    %c0_i32_0 = arith.constant 0 : i32
    %c0_i32_1 = arith.constant 0 : i32
    return %c0_i32, %c0_i32_0 : i32, i32
  }
  func.func @transform_4(%arg0: i32) -> (i32, i32) {
    %c0_i32 = arith.constant 0 : i32
    %c0_i32_0 = arith.constant 0 : i32
    %c0_i32_1 = arith.constant 0 : i32
    return %c0_i32, %c0_i32_0 : i32, i32
  }
  func.func @transform_5(%arg0: i32) -> (i32, i32) {
    %c0_i32 = arith.constant 0 : i32
    %c0_i32_0 = arith.constant 0 : i32
    %c0_i32_1 = arith.constant 0 : i32
    return %c0_i32, %c0_i32_0 : i32, i32
  }
  func.func @transform_6(%arg0: i32) -> (i32, i32, i32) {
    %c0_i32 = arith.constant 0 : i32
    %c0_i32_0 = arith.constant 0 : i32
    %c0_i32_1 = arith.constant 0 : i32
    return %arg0, %c0_i32, %c0_i32_0 : i32, i32, i32
  }
}

module attributes {stable_mosaic.version = 11 : i64} {
  func.func @kernel(%arg0: i32, %arg1: i32, %arg2: memref<1x5x32xf32, #tpu.memory_space<vmem>>, %arg3: memref<1x1x5x32xbf16, #tpu.memory_space<vmem>>, %arg4: memref<1x1x5x32xbf16, #tpu.memory_space<vmem>>, %arg5: memref<1x1x5x32xbf16, #tpu.memory_space<vmem>>, %arg6: memref<32x32xbf16, #tpu.memory_space<vmem>>, %arg7: memref<1x32xf32, #tpu.memory_space<vmem>>, %arg8: memref<1x32xf32, #tpu.memory_space<vmem>>, %arg9: memref<1x32xf32, #tpu.memory_space<vmem>>, %arg10: memref<32x128xbf16, #tpu.memory_space<vmem>>, %arg11: memref<1x128xf32, #tpu.memory_space<vmem>>, %arg12: memref<128x32xbf16, #tpu.memory_space<vmem>>, %arg13: memref<1x32xf32, #tpu.memory_space<vmem>>, %arg14: memref<1x5x32xf32, #tpu.memory_space<vmem>>, %arg15: memref<5x32xbf16, #tpu.memory_space<vmem>>) attributes {dimension_semantics = [#tpu.dimension_semantics<parallel>, #tpu.dimension_semantics<parallel>], iteration_bounds = array<i64: 2, 1>, scalar_prefetch = 0 : i64, scratch_operands = 1 : i64, tpu.core_type = #tpu.core_type<tc>, window_params = [{transform_indices = @transform_0, window_bounds = array<i64: 1, 5, 32>}, {transform_indices = @transform_1, window_bounds = array<i64: 1, 1, 5, 32>}, {transform_indices = @transform_2, window_bounds = array<i64: 1, 1, 5, 32>}, {transform_indices = @transform_3, window_bounds = array<i64: 1, 1, 5, 32>}, {pipeline_mode = #tpu.pipeline_mode<synchronous>, transform_indices = @transform_4, window_bounds = array<i64: 32, 32>}, {pipeline_mode = #tpu.pipeline_mode<synchronous>, transform_indices = @transform_5, window_bounds = array<i64: 1, 32>}, {pipeline_mode = #tpu.pipeline_mode<synchronous>, transform_indices = @transform_6, window_bounds = array<i64: 1, 32>}, {pipeline_mode = #tpu.pipeline_mode<synchronous>, transform_indices = @transform_7, window_bounds = array<i64: 1, 32>}, {pipeline_mode = #tpu.pipeline_mode<synchronous>, transform_indices = @transform_8, window_bounds = array<i64: 32, 128>}, {pipeline_mode = #tpu.pipeline_mode<synchronous>, transform_indices = @transform_9, window_bounds = array<i64: 1, 128>}, {pipeline_mode = #tpu.pipeline_mode<synchronous>, transform_indices = @transform_10, window_bounds = array<i64: 128, 32>}, {pipeline_mode = #tpu.pipeline_mode<synchronous>, transform_indices = @transform_11, window_bounds = array<i64: 1, 32>}, {transform_indices = @transform_12, window_bounds = array<i64: 1, 5, 32>}]} {
    %c0 = arith.constant 0 : index
    %c0_0 = arith.constant 0 : index
    %c0_1 = arith.constant 0 : index
    %0 = vector.load %arg2[%c0, %c0_0, %c0_1] : memref<1x5x32xf32, #tpu.memory_space<vmem>>, vector<1x5x32xf32>
    %1 = vector.shape_cast %0 : vector<1x5x32xf32> to vector<5x32xf32>
    %c0_2 = arith.constant 0 : index
    %c0_3 = arith.constant 0 : index
    %c0_4 = arith.constant 0 : index
    %c0_5 = arith.constant 0 : index
    %2 = vector.load %arg3[%c0_2, %c0_3, %c0_4, %c0_5] : memref<1x1x5x32xbf16, #tpu.memory_space<vmem>>, vector<1x1x5x32xbf16>
    %3 = vector.shape_cast %2 : vector<1x1x5x32xbf16> to vector<5x32xbf16>
    %c0_6 = arith.constant 0 : index
    %c0_7 = arith.constant 0 : index
    %c0_8 = arith.constant 0 : index
    %c0_9 = arith.constant 0 : index
    %4 = vector.load %arg4[%c0_6, %c0_7, %c0_8, %c0_9] : memref<1x1x5x32xbf16, #tpu.memory_space<vmem>>, vector<1x1x5x32xbf16>
    %5 = vector.shape_cast %4 : vector<1x1x5x32xbf16> to vector<5x32xbf16>
    %c0_10 = arith.constant 0 : index
    %c0_11 = arith.constant 0 : index
    %c0_12 = arith.constant 0 : index
    %c0_13 = arith.constant 0 : index
    %6 = vector.load %arg5[%c0_10, %c0_11, %c0_12, %c0_13] : memref<1x1x5x32xbf16, #tpu.memory_space<vmem>>, vector<1x1x5x32xbf16>
    %7 = vector.shape_cast %6 : vector<1x1x5x32xbf16> to vector<5x32xbf16>
    %8 = vector.extract_strided_slice %3 {offsets = [0, 0], sizes = [5, 8], strides = [1, 1]} : vector<5x32xbf16> to vector<5x8xbf16>
    %9 = vector.extract_strided_slice %5 {offsets = [0, 0], sizes = [5, 8], strides = [1, 1]} : vector<5x32xbf16> to vector<5x8xbf16>
    %10 = vector.extract_strided_slice %7 {offsets = [0, 0], sizes = [5, 8], strides = [1, 1]} : vector<5x32xbf16> to vector<5x8xbf16>
    %cst = arith.constant dense<0.000000e+00> : vector<5x5xf32>
    %11 = tpu.matmul %8, %9, %cst {dimension_numbers = #tpu.dot_dimension_numbers<[1], [1], [0], [0], [0, 0, 1, 0], [], []>} : vector<5x8xbf16>, vector<5x8xbf16>, vector<5x5xf32> -> vector<5x5xf32>
    %cst_14 = arith.constant 0.353553385 : f32
    %12 = vector.broadcast %cst_14 : f32 to vector<5x5xf32>
    %13 = arith.mulf %11, %12 : vector<5x5xf32>
    %cst_15 = arith.constant dense<0xFF800000> : vector<5xf32>
    %14 = vector.multi_reduction <maximumf>, %13, %cst_15 [1] : vector<5x5xf32> to vector<5xf32>
    %15 = vector.shape_cast %14 : vector<5xf32> to vector<5x1xf32>
    %16 = vector.broadcast %15 : vector<5x1xf32> to vector<5x5xf32>
    %17 = arith.subf %13, %16 : vector<5x5xf32>
    %18 = math.exp %17 : vector<5x5xf32>
    %cst_16 = arith.constant dense<0.000000e+00> : vector<5xf32>
    %19 = vector.multi_reduction <add>, %18, %cst_16 [1] : vector<5x5xf32> to vector<5xf32>
    %20 = vector.shape_cast %19 : vector<5xf32> to vector<5x1xf32>
    %21 = tpu.reciprocal %20 {approx = true} : vector<5x1xf32> -> vector<5x1xf32>
    %22 = vector.broadcast %21 : vector<5x1xf32> to vector<5x5xf32>
    %23 = arith.mulf %18, %22 : vector<5x5xf32>
    %24 = arith.truncf %23 : vector<5x5xf32> to vector<5x5xbf16>
    %cst_17 = arith.constant dense<0.000000e+00> : vector<5x8xf32>
    %25 = tpu.matmul %24, %10, %cst_17 {dimension_numbers = #tpu.dot_dimension_numbers<[1], [0], [0], [1], [0, 0, 1, 1], [], []>} : vector<5x5xbf16>, vector<5x8xbf16>, vector<5x8xf32> -> vector<5x8xf32>
    %26 = arith.truncf %25 : vector<5x8xf32> to vector<5x8xbf16>
    %c0_18 = arith.constant 0 : index
    %c0_19 = arith.constant 0 : index
    %27 = vector.load %arg15[%c0_18, %c0_19] : memref<5x32xbf16, #tpu.memory_space<vmem>>, vector<5x8xbf16>
    tpu.vector_store %arg15[%c0_18, %c0_19], %26 {strides = array<i32>} : memref<5x32xbf16, #tpu.memory_space<vmem>>, vector<5x8xbf16>,
    %28 = vector.extract_strided_slice %3 {offsets = [0, 8], sizes = [5, 8], strides = [1, 1]} : vector<5x32xbf16> to vector<5x8xbf16>
    %29 = vector.extract_strided_slice %5 {offsets = [0, 8], sizes = [5, 8], strides = [1, 1]} : vector<5x32xbf16> to vector<5x8xbf16>
    %30 = vector.extract_strided_slice %7 {offsets = [0, 8], sizes = [5, 8], strides = [1, 1]} : vector<5x32xbf16> to vector<5x8xbf16>
    %cst_20 = arith.constant dense<0.000000e+00> : vector<5x5xf32>
    %31 = tpu.matmul %28, %29, %cst_20 {dimension_numbers = #tpu.dot_dimension_numbers<[1], [1], [0], [0], [0, 0, 1, 0], [], []>} : vector<5x8xbf16>, vector<5x8xbf16>, vector<5x5xf32> -> vector<5x5xf32>
    %cst_21 = arith.constant 0.353553385 : f32
    %32 = vector.broadcast %cst_21 : f32 to vector<5x5xf32>
    %33 = arith.mulf %31, %32 : vector<5x5xf32>
    %cst_22 = arith.constant dense<0xFF800000> : vector<5xf32>
    %34 = vector.multi_reduction <maximumf>, %33, %cst_22 [1] : vector<5x5xf32> to vector<5xf32>
    %35 = vector.shape_cast %34 : vector<5xf32> to vector<5x1xf32>
    %36 = vector.broadcast %35 : vector<5x1xf32> to vector<5x5xf32>
    %37 = arith.subf %33, %36 : vector<5x5xf32>
    %38 = math.exp %37 : vector<5x5xf32>
    %cst_23 = arith.constant dense<0.000000e+00> : vector<5xf32>
    %39 = vector.multi_reduction <add>, %38, %cst_23 [1] : vector<5x5xf32> to vector<5xf32>
    %40 = vector.shape_cast %39 : vector<5xf32> to vector<5x1xf32>
    %41 = tpu.reciprocal %40 {approx = true} : vector<5x1xf32> -> vector<5x1xf32>
    %42 = vector.broadcast %41 : vector<5x1xf32> to vector<5x5xf32>
    %43 = arith.mulf %38, %42 : vector<5x5xf32>
    %44 = arith.truncf %43 : vector<5x5xf32> to vector<5x5xbf16>
    %cst_24 = arith.constant dense<0.000000e+00> : vector<5x8xf32>
    %45 = tpu.matmul %44, %30, %cst_24 {dimension_numbers = #tpu.dot_dimension_numbers<[1], [0], [0], [1], [0, 0, 1, 1], [], []>} : vector<5x5xbf16>, vector<5x8xbf16>, vector<5x8xf32> -> vector<5x8xf32>
    %46 = arith.truncf %45 : vector<5x8xf32> to vector<5x8xbf16>
    %c0_25 = arith.constant 0 : index
    %c8 = arith.constant 8 : index
    %47 = vector.load %arg15[%c0_25, %c8] : memref<5x32xbf16, #tpu.memory_space<vmem>>, vector<5x8xbf16>
    tpu.vector_store %arg15[%c0_25, %c8], %46 {strides = array<i32>} : memref<5x32xbf16, #tpu.memory_space<vmem>>, vector<5x8xbf16>,
    %48 = vector.extract_strided_slice %3 {offsets = [0, 16], sizes = [5, 8], strides = [1, 1]} : vector<5x32xbf16> to vector<5x8xbf16>
    %49 = vector.extract_strided_slice %5 {offsets = [0, 16], sizes = [5, 8], strides = [1, 1]} : vector<5x32xbf16> to vector<5x8xbf16>
    %50 = vector.extract_strided_slice %7 {offsets = [0, 16], sizes = [5, 8], strides = [1, 1]} : vector<5x32xbf16> to vector<5x8xbf16>
    %cst_26 = arith.constant dense<0.000000e+00> : vector<5x5xf32>
    %51 = tpu.matmul %48, %49, %cst_26 {dimension_numbers = #tpu.dot_dimension_numbers<[1], [1], [0], [0], [0, 0, 1, 0], [], []>} : vector<5x8xbf16>, vector<5x8xbf16>, vector<5x5xf32> -> vector<5x5xf32>
    %cst_27 = arith.constant 0.353553385 : f32
    %52 = vector.broadcast %cst_27 : f32 to vector<5x5xf32>
    %53 = arith.mulf %51, %52 : vector<5x5xf32>
    %cst_28 = arith.constant dense<0xFF800000> : vector<5xf32>
    %54 = vector.multi_reduction <maximumf>, %53, %cst_28 [1] : vector<5x5xf32> to vector<5xf32>
    %55 = vector.shape_cast %54 : vector<5xf32> to vector<5x1xf32>
    %56 = vector.broadcast %55 : vector<5x1xf32> to vector<5x5xf32>
    %57 = arith.subf %53, %56 : vector<5x5xf32>
    %58 = math.exp %57 : vector<5x5xf32>
    %cst_29 = arith.constant dense<0.000000e+00> : vector<5xf32>
    %59 = vector.multi_reduction <add>, %58, %cst_29 [1] : vector<5x5xf32> to vector<5xf32>
    %60 = vector.shape_cast %59 : vector<5xf32> to vector<5x1xf32>
    %61 = tpu.reciprocal %60 {approx = true} : vector<5x1xf32> -> vector<5x1xf32>
    %62 = vector.broadcast %61 : vector<5x1xf32> to vector<5x5xf32>
    %63 = arith.mulf %58, %62 : vector<5x5xf32>
    %64 = arith.truncf %63 : vector<5x5xf32> to vector<5x5xbf16>
    %cst_30 = arith.constant dense<0.000000e+00> : vector<5x8xf32>
    %65 = tpu.matmul %64, %50, %cst_30 {dimension_numbers = #tpu.dot_dimension_numbers<[1], [0], [0], [1], [0, 0, 1, 1], [], []>} : vector<5x5xbf16>, vector<5x8xbf16>, vector<5x8xf32> -> vector<5x8xf32>
    %66 = arith.truncf %65 : vector<5x8xf32> to vector<5x8xbf16>
    %c0_31 = arith.constant 0 : index
    %c16 = arith.constant 16 : index
    %67 = vector.load %arg15[%c0_31, %c16] : memref<5x32xbf16, #tpu.memory_space<vmem>>, vector<5x8xbf16>
    tpu.vector_store %arg15[%c0_31, %c16], %66 {strides = array<i32>} : memref<5x32xbf16, #tpu.memory_space<vmem>>, vector<5x8xbf16>,
    %68 = vector.extract_strided_slice %3 {offsets = [0, 24], sizes = [5, 8], strides = [1, 1]} : vector<5x32xbf16> to vector<5x8xbf16>
    %69 = vector.extract_strided_slice %5 {offsets = [0, 24], sizes = [5, 8], strides = [1, 1]} : vector<5x32xbf16> to vector<5x8xbf16>
    %70 = vector.extract_strided_slice %7 {offsets = [0, 24], sizes = [5, 8], strides = [1, 1]} : vector<5x32xbf16> to vector<5x8xbf16>
    %cst_32 = arith.constant dense<0.000000e+00> : vector<5x5xf32>
    %71 = tpu.matmul %68, %69, %cst_32 {dimension_numbers = #tpu.dot_dimension_numbers<[1], [1], [0], [0], [0, 0, 1, 0], [], []>} : vector<5x8xbf16>, vector<5x8xbf16>, vector<5x5xf32> -> vector<5x5xf32>
    %cst_33 = arith.constant 0.353553385 : f32
    %72 = vector.broadcast %cst_33 : f32 to vector<5x5xf32>
    %73 = arith.mulf %71, %72 : vector<5x5xf32>
    %cst_34 = arith.constant dense<0xFF800000> : vector<5xf32>
    %74 = vector.multi_reduction <maximumf>, %73, %cst_34 [1] : vector<5x5xf32> to vector<5xf32>
    %75 = vector.shape_cast %74 : vector<5xf32> to vector<5x1xf32>
    %76 = vector.broadcast %75 : vector<5x1xf32> to vector<5x5xf32>
    %77 = arith.subf %73, %76 : vector<5x5xf32>
    %78 = math.exp %77 : vector<5x5xf32>
    %cst_35 = arith.constant dense<0.000000e+00> : vector<5xf32>
    %79 = vector.multi_reduction <add>, %78, %cst_35 [1] : vector<5x5xf32> to vector<5xf32>
    %80 = vector.shape_cast %79 : vector<5xf32> to vector<5x1xf32>
    %81 = tpu.reciprocal %80 {approx = true} : vector<5x1xf32> -> vector<5x1xf32>
    %82 = vector.broadcast %81 : vector<5x1xf32> to vector<5x5xf32>
    %83 = arith.mulf %78, %82 : vector<5x5xf32>
    %84 = arith.truncf %83 : vector<5x5xf32> to vector<5x5xbf16>
    %cst_36 = arith.constant dense<0.000000e+00> : vector<5x8xf32>
    %85 = tpu.matmul %84, %70, %cst_36 {dimension_numbers = #tpu.dot_dimension_numbers<[1], [0], [0], [1], [0, 0, 1, 1], [], []>} : vector<5x5xbf16>, vector<5x8xbf16>, vector<5x8xf32> -> vector<5x8xf32>
    %86 = arith.truncf %85 : vector<5x8xf32> to vector<5x8xbf16>
    %c0_37 = arith.constant 0 : index
    %c24 = arith.constant 24 : index
    %87 = vector.load %arg15[%c0_37, %c24] : memref<5x32xbf16, #tpu.memory_space<vmem>>, vector<5x8xbf16>
    tpu.vector_store %arg15[%c0_37, %c24], %86 {strides = array<i32>} : memref<5x32xbf16, #tpu.memory_space<vmem>>, vector<5x8xbf16>,
    %c0_38 = arith.constant 0 : index
    %c0_39 = arith.constant 0 : index
    %88 = vector.load %arg15[%c0_38, %c0_39] : memref<5x32xbf16, #tpu.memory_space<vmem>>, vector<5x32xbf16>
    %c0_40 = arith.constant 0 : index
    %c0_41 = arith.constant 0 : index
    %89 = vector.load %arg6[%c0_40, %c0_41] : memref<32x32xbf16, #tpu.memory_space<vmem>>, vector<32x32xbf16>
    %cst_42 = arith.constant dense<0.000000e+00> : vector<5x32xf32>
    %90 = tpu.matmul %88, %89, %cst_42 {dimension_numbers = #tpu.dot_dimension_numbers<[1], [0], [0], [1], [0, 0, 1, 1], [], []>} : vector<5x32xbf16>, vector<32x32xbf16>, vector<5x32xf32> -> vector<5x32xf32>
    %c0_43 = arith.constant 0 : index
    %c0_44 = arith.constant 0 : index
    %91 = vector.load %arg7[%c0_43, %c0_44] : memref<1x32xf32, #tpu.memory_space<vmem>>, vector<1x32xf32>
    %92 = vector.broadcast %91 : vector<1x32xf32> to vector<5x32xf32>
    %93 = arith.addf %90, %92 : vector<5x32xf32>
    %94 = arith.addf %1, %93 : vector<5x32xf32>
    %c0_45 = arith.constant 0 : index
    %c0_46 = arith.constant 0 : index
    %95 = vector.load %arg8[%c0_45, %c0_46] : memref<1x32xf32, #tpu.memory_space<vmem>>, vector<1x32xf32>
    %c0_47 = arith.constant 0 : index
    %c0_48 = arith.constant 0 : index
    %96 = vector.load %arg9[%c0_47, %c0_48] : memref<1x32xf32, #tpu.memory_space<vmem>>, vector<1x32xf32>
    %cst_49 = arith.constant dense<0.000000e+00> : vector<5xf32>
    %97 = vector.multi_reduction <add>, %94, %cst_49 [1] : vector<5x32xf32> to vector<5xf32>
    %98 = vector.shape_cast %97 : vector<5xf32> to vector<5x1xf32>
    %cst_50 = arith.constant 3.200000e+01 : f32
    %99 = vector.broadcast %cst_50 : f32 to vector<5x1xf32>
    %100 = arith.divf %98, %99 : vector<5x1xf32>
    %101 = vector.broadcast %100 : vector<5x1xf32> to vector<5x32xf32>
    %102 = arith.subf %94, %101 : vector<5x32xf32>
    %103 = arith.mulf %102, %102 : vector<5x32xf32>
    %cst_51 = arith.constant dense<0.000000e+00> : vector<5xf32>
    %104 = vector.multi_reduction <add>, %103, %cst_51 [1] : vector<5x32xf32> to vector<5xf32>
    %105 = vector.shape_cast %104 : vector<5xf32> to vector<5x1xf32>
    %cst_52 = arith.constant 3.200000e+01 : f32
    %106 = vector.broadcast %cst_52 : f32 to vector<5x1xf32>
    %107 = arith.divf %105, %106 : vector<5x1xf32>
    %108 = vector.broadcast %100 : vector<5x1xf32> to vector<5x32xf32>
    %109 = arith.subf %94, %108 : vector<5x32xf32>
    %cst_53 = arith.constant 9.99999974E-6 : f32
    %110 = vector.broadcast %cst_53 : f32 to vector<5x1xf32>
    %111 = arith.addf %107, %110 : vector<5x1xf32>
    %112 = math.rsqrt %111 : vector<5x1xf32>
    %113 = vector.broadcast %112 : vector<5x1xf32> to vector<5x32xf32>
    %114 = arith.mulf %109, %113 : vector<5x32xf32>
    %115 = vector.broadcast %95 : vector<1x32xf32> to vector<5x32xf32>
    %116 = arith.mulf %114, %115 : vector<5x32xf32>
    %117 = vector.broadcast %96 : vector<1x32xf32> to vector<5x32xf32>
    %118 = arith.addf %116, %117 : vector<5x32xf32>
    %119 = arith.truncf %118 : vector<5x32xf32> to vector<5x32xbf16>
    %c0_54 = arith.constant 0 : index
    %c0_55 = arith.constant 0 : index
    %120 = vector.load %arg10[%c0_54, %c0_55] : memref<32x128xbf16, #tpu.memory_space<vmem>>, vector<32x128xbf16>
    %cst_56 = arith.constant dense<0.000000e+00> : vector<5x128xf32>
    %121 = tpu.matmul %119, %120, %cst_56 {dimension_numbers = #tpu.dot_dimension_numbers<[1], [0], [0], [1], [0, 0, 1, 1], [], []>} : vector<5x32xbf16>, vector<32x128xbf16>, vector<5x128xf32> -> vector<5x128xf32>
    %c0_57 = arith.constant 0 : index
    %c0_58 = arith.constant 0 : index
    %122 = vector.load %arg11[%c0_57, %c0_58] : memref<1x128xf32, #tpu.memory_space<vmem>>, vector<1x128xf32>
    %123 = vector.broadcast %122 : vector<1x128xf32> to vector<5x128xf32>
    %124 = arith.addf %121, %123 : vector<5x128xf32>
    %125 = arith.truncf %124 : vector<5x128xf32> to vector<5x128xbf16>
    %cst_59 = arith.constant 1.703130e+00 : bf16
    %126 = vector.broadcast %cst_59 : bf16 to vector<5x128xbf16>
    %127 = arith.mulf %125, %126 : vector<5x128xbf16>
    %128 = arith.negf %127 : vector<5x128xbf16>
    %129 = math.exp %128 : vector<5x128xbf16>
    %cst_60 = arith.constant 1.000000e+00 : bf16
    %130 = vector.broadcast %cst_60 : bf16 to vector<5x128xbf16>
    %131 = arith.addf %130, %129 : vector<5x128xbf16>
    %132 = arith.divf %130, %131 : vector<5x128xbf16>
    %133 = arith.mulf %125, %132 : vector<5x128xbf16>
    %c0_61 = arith.constant 0 : index
    %c0_62 = arith.constant 0 : index
    %134 = vector.load %arg12[%c0_61, %c0_62] : memref<128x32xbf16, #tpu.memory_space<vmem>>, vector<128x32xbf16>
    %cst_63 = arith.constant dense<0.000000e+00> : vector<5x32xf32>
    %135 = tpu.matmul %133, %134, %cst_63 {dimension_numbers = #tpu.dot_dimension_numbers<[1], [0], [0], [1], [0, 0, 1, 1], [], []>} : vector<5x128xbf16>, vector<128x32xbf16>, vector<5x32xf32> -> vector<5x32xf32>
    %136 = arith.addf %94, %135 : vector<5x32xf32>
    %c0_64 = arith.constant 0 : index
    %c0_65 = arith.constant 0 : index
    %137 = vector.load %arg13[%c0_64, %c0_65] : memref<1x32xf32, #tpu.memory_space<vmem>>, vector<1x32xf32>
    %138 = vector.broadcast %137 : vector<1x32xf32> to vector<5x32xf32>
    %139 = arith.addf %136, %138 : vector<5x32xf32>
    %c0_66 = arith.constant 0 : index
    %c0_67 = arith.constant 0 : index
    %c0_68 = arith.constant 0 : index
    %140 = vector.load %arg14[%c0_66, %c0_67, %c0_68] : memref<1x5x32xf32, #tpu.memory_space<vmem>>, vector<1x5x32xf32>
    %141 = vector.shape_cast %140 : vector<1x5x32xf32> to vector<5x32xf32>
    %142 = vector.shape_cast %139 : vector<5x32xf32> to vector<1x5x32xf32>
    tpu.vector_store %arg14[%c0_66, %c0_67, %c0_68], %142 {strides = array<i32>} : memref<1x5x32xf32, #tpu.memory_space<vmem>>, vector<1x5x32xf32>,
    return
  }
  func.func @transform_0(%arg0: i32, %arg1: i32) -> (i32, i32, i32) {
    %c0_i32 = arith.constant 0 : i32
    %c0_i32_0 = arith.constant 0 : i32
    return %arg0, %arg1, %c0_i32 : i32, i32, i32
  }
  func.func @transform_1(%arg0: i32, %arg1: i32) -> (i32, i32, i32, i32) {
    %c0_i32 = arith.constant 0 : i32
    %c0_i32_0 = arith.constant 0 : i32
    %c0_i32_1 = arith.constant 0 : i32
    return %arg0, %c0_i32, %arg1, %c0_i32_0 : i32, i32, i32, i32
  }
  func.func @transform_2(%arg0: i32, %arg1: i32) -> (i32, i32, i32, i32) {
    %c1_i32 = arith.constant 1 : i32
    %c0_i32 = arith.constant 0 : i32
    %c0_i32_0 = arith.constant 0 : i32
    %c0_i32_1 = arith.constant 0 : i32
    return %arg0, %c1_i32, %c0_i32, %c0_i32_0 : i32, i32, i32, i32
  }
  func.func @transform_3(%arg0: i32, %arg1: i32) -> (i32, i32, i32, i32) {
    %c2_i32 = arith.constant 2 : i32
    %c0_i32 = arith.constant 0 : i32
    %c0_i32_0 = arith.constant 0 : i32
    %c0_i32_1 = arith.constant 0 : i32
    return %arg0, %c2_i32, %c0_i32, %c0_i32_0 : i32, i32, i32, i32
  }
  func.func @transform_4(%arg0: i32, %arg1: i32) -> (i32, i32) {
    %c0_i32 = arith.constant 0 : i32
    %c0_i32_0 = arith.constant 0 : i32
    %c0_i32_1 = arith.constant 0 : i32
    return %c0_i32, %c0_i32_0 : i32, i32
  }
  func.func @transform_5(%arg0: i32, %arg1: i32) -> (i32, i32) {
    %c0_i32 = arith.constant 0 : i32
    %c0_i32_0 = arith.constant 0 : i32
    %c0_i32_1 = arith.constant 0 : i32
    return %c0_i32, %c0_i32_0 : i32, i32
  }
  func.func @transform_6(%arg0: i32, %arg1: i32) -> (i32, i32) {
    %c0_i32 = arith.constant 0 : i32
    %c0_i32_0 = arith.constant 0 : i32
    %c0_i32_1 = arith.constant 0 : i32
    return %c0_i32, %c0_i32_0 : i32, i32
  }
  func.func @transform_7(%arg0: i32, %arg1: i32) -> (i32, i32) {
    %c0_i32 = arith.constant 0 : i32
    %c0_i32_0 = arith.constant 0 : i32
    %c0_i32_1 = arith.constant 0 : i32
    return %c0_i32, %c0_i32_0 : i32, i32
  }
  func.func @transform_8(%arg0: i32, %arg1: i32) -> (i32, i32) {
    %c0_i32 = arith.constant 0 : i32
    %c0_i32_0 = arith.constant 0 : i32
    %c0_i32_1 = arith.constant 0 : i32
    return %c0_i32, %c0_i32_0 : i32, i32
  }
  func.func @transform_9(%arg0: i32, %arg1: i32) -> (i32, i32) {
    %c0_i32 = arith.constant 0 : i32
    %c0_i32_0 = arith.constant 0 : i32
    %c0_i32_1 = arith.constant 0 : i32
    return %c0_i32, %c0_i32_0 : i32, i32
  }
  func.func @transform_10(%arg0: i32, %arg1: i32) -> (i32, i32) {
    %c0_i32 = arith.constant 0 : i32
    %c0_i32_0 = arith.constant 0 : i32
    %c0_i32_1 = arith.constant 0 : i32
    return %c0_i32, %c0_i32_0 : i32, i32
  }
  func.func @transform_11(%arg0: i32, %arg1: i32) -> (i32, i32) {
    %c0_i32 = arith.constant 0 : i32
    %c0_i32_0 = arith.constant 0 : i32
    %c0_i32_1 = arith.constant 0 : i32
    return %c0_i32, %c0_i32_0 : i32, i32
  }
  func.func @transform_12(%arg0: i32, %arg1: i32) -> (i32, i32, i32) {
    %c0_i32 = arith.constant 0 : i32
    %c0_i32_0 = arith.constant 0 : i32
    return %arg0, %arg1, %c0_i32 : i32, i32, i32
  }
}

module attributes {stable_mosaic.version = 11 : i64} {
  func.func @qkv_kernel(%arg0: i32, %arg1: memref<1x5x32xf32, #tpu.memory_space<vmem>>, %arg2: memref<1x32xf32, #tpu.memory_space<vmem>>, %arg3: memref<1x32xf32, #tpu.memory_space<vmem>>, %arg4: memref<32x96xbf16, #tpu.memory_space<vmem>>, %arg5: memref<1x96xf32, #tpu.memory_space<vmem>>, %arg6: memref<1x3x5x32xbf16, #tpu.memory_space<vmem>>) attributes {dimension_semantics = [#tpu.dimension_semantics<parallel>], iteration_bounds = array<i64: 2>, scalar_prefetch = 0 : i64, scratch_operands = 0 : i64, tpu.core_type = #tpu.core_type<tc>, window_params = [{transform_indices = @transform_0, window_bounds = array<i64: 1, 5, 32>}, {pipeline_mode = #tpu.pipeline_mode<synchronous>, transform_indices = @transform_1, window_bounds = array<i64: 1, 32>}, {pipeline_mode = #tpu.pipeline_mode<synchronous>, transform_indices = @transform_2, window_bounds = array<i64: 1, 32>}, {pipeline_mode = #tpu.pipeline_mode<synchronous>, transform_indices = @transform_3, window_bounds = array<i64: 32, 96>}, {pipeline_mode = #tpu.pipeline_mode<synchronous>, transform_indices = @transform_4, window_bounds = array<i64: 1, 96>}, {transform_indices = @transform_5, window_bounds = array<i64: 1, 3, 5, 32>}]} {
    %c0 = arith.constant 0 : index
    %c0_0 = arith.constant 0 : index
    %c0_1 = arith.constant 0 : index
    %0 = vector.load %arg1[%c0, %c0_0, %c0_1] : memref<1x5x32xf32, #tpu.memory_space<vmem>>, vector<1x5x32xf32>
    %1 = vector.shape_cast %0 : vector<1x5x32xf32> to vector<5x32xf32>
    %c0_2 = arith.constant 0 : index
    %c0_3 = arith.constant 0 : index
    %2 = vector.load %arg2[%c0_2, %c0_3] : memref<1x32xf32, #tpu.memory_space<vmem>>, vector<1x32xf32>
    %c0_4 = arith.constant 0 : index
    %c0_5 = arith.constant 0 : index
    %3 = vector.load %arg3[%c0_4, %c0_5] : memref<1x32xf32, #tpu.memory_space<vmem>>, vector<1x32xf32>
    %cst = arith.constant dense<0.000000e+00> : vector<5xf32>
    %4 = vector.multi_reduction <add>, %1, %cst [1] : vector<5x32xf32> to vector<5xf32>
    %5 = vector.shape_cast %4 : vector<5xf32> to vector<5x1xf32>
    %cst_6 = arith.constant 3.200000e+01 : f32
    %6 = vector.broadcast %cst_6 : f32 to vector<5x1xf32>
    %7 = arith.divf %5, %6 : vector<5x1xf32>
    %8 = vector.broadcast %7 : vector<5x1xf32> to vector<5x32xf32>
    %9 = arith.subf %1, %8 : vector<5x32xf32>
    %10 = arith.mulf %9, %9 : vector<5x32xf32>
    %cst_7 = arith.constant dense<0.000000e+00> : vector<5xf32>
    %11 = vector.multi_reduction <add>, %10, %cst_7 [1] : vector<5x32xf32> to vector<5xf32>
    %12 = vector.shape_cast %11 : vector<5xf32> to vector<5x1xf32>
    %cst_8 = arith.constant 3.200000e+01 : f32
    %13 = vector.broadcast %cst_8 : f32 to vector<5x1xf32>
    %14 = arith.divf %12, %13 : vector<5x1xf32>
    %15 = vector.broadcast %7 : vector<5x1xf32> to vector<5x32xf32>
    %16 = arith.subf %1, %15 : vector<5x32xf32>
    %cst_9 = arith.constant 9.99999974E-6 : f32
    %17 = vector.broadcast %cst_9 : f32 to vector<5x1xf32>
    %18 = arith.addf %14, %17 : vector<5x1xf32>
    %19 = math.rsqrt %18 : vector<5x1xf32>
    %20 = vector.broadcast %19 : vector<5x1xf32> to vector<5x32xf32>
    %21 = arith.mulf %16, %20 : vector<5x32xf32>
    %22 = vector.broadcast %2 : vector<1x32xf32> to vector<5x32xf32>
    %23 = arith.mulf %21, %22 : vector<5x32xf32>
    %24 = vector.broadcast %3 : vector<1x32xf32> to vector<5x32xf32>
    %25 = arith.addf %23, %24 : vector<5x32xf32>
    %26 = arith.truncf %25 : vector<5x32xf32> to vector<5x32xbf16>
    %c0_10 = arith.constant 0 : index
    %c0_11 = arith.constant 0 : index
    %27 = vector.load %arg4[%c0_10, %c0_11] : memref<32x96xbf16, #tpu.memory_space<vmem>>, vector<32x96xbf16>
    %cst_12 = arith.constant dense<0.000000e+00> : vector<5x96xf32>
    %28 = tpu.matmul %26, %27, %cst_12 {dimension_numbers = #tpu.dot_dimension_numbers<[1], [0], [0], [1], [0, 0, 1, 1], [], []>} : vector<5x32xbf16>, vector<32x96xbf16>, vector<5x96xf32> -> vector<5x96xf32>
    %c0_13 = arith.constant 0 : index
    %c0_14 = arith.constant 0 : index
    %29 = vector.load %arg5[%c0_13, %c0_14] : memref<1x96xf32, #tpu.memory_space<vmem>>, vector<1x96xf32>
    %30 = vector.broadcast %29 : vector<1x96xf32> to vector<5x96xf32>
    %31 = arith.addf %28, %30 : vector<5x96xf32>
    %32 = vector.extract_strided_slice %31 {offsets = [0, 0], sizes = [5, 32], strides = [1, 1]} : vector<5x96xf32> to vector<5x32xf32>
    %33 = arith.truncf %32 : vector<5x32xf32> to vector<5x32xbf16>
    %c0_15 = arith.constant 0 : index
    %c0_16 = arith.constant 0 : index
    %c0_17 = arith.constant 0 : index
    %c0_18 = arith.constant 0 : index
    %34 = vector.load %arg6[%c0_15, %c0_16, %c0_17, %c0_18] : memref<1x3x5x32xbf16, #tpu.memory_space<vmem>>, vector<1x1x5x32xbf16>
    %35 = vector.shape_cast %34 : vector<1x1x5x32xbf16> to vector<5x32xbf16>
    %36 = vector.shape_cast %33 : vector<5x32xbf16> to vector<1x1x5x32xbf16>
    tpu.vector_store %arg6[%c0_15, %c0_16, %c0_17, %c0_18], %36 {strides = array<i32>} : memref<1x3x5x32xbf16, #tpu.memory_space<vmem>>, vector<1x1x5x32xbf16>,
    %37 = vector.extract_strided_slice %31 {offsets = [0, 32], sizes = [5, 32], strides = [1, 1]} : vector<5x96xf32> to vector<5x32xf32>
    %38 = arith.truncf %37 : vector<5x32xf32> to vector<5x32xbf16>
    %c0_19 = arith.constant 0 : index
    %c1 = arith.constant 1 : index
    %c0_20 = arith.constant 0 : index
    %c0_21 = arith.constant 0 : index
    %39 = vector.load %arg6[%c0_19, %c1, %c0_20, %c0_21] : memref<1x3x5x32xbf16, #tpu.memory_space<vmem>>, vector<1x1x5x32xbf16>
    %40 = vector.shape_cast %39 : vector<1x1x5x32xbf16> to vector<5x32xbf16>
    %41 = vector.shape_cast %38 : vector<5x32xbf16> to vector<1x1x5x32xbf16>
    tpu.vector_store %arg6[%c0_19, %c1, %c0_20, %c0_21], %41 {strides = array<i32>} : memref<1x3x5x32xbf16, #tpu.memory_space<vmem>>, vector<1x1x5x32xbf16>,
    %42 = vector.extract_strided_slice %31 {offsets = [0, 64], sizes = [5, 32], strides = [1, 1]} : vector<5x96xf32> to vector<5x32xf32>
    %43 = arith.truncf %42 : vector<5x32xf32> to vector<5x32xbf16>
    %c0_22 = arith.constant 0 : index
    %c2 = arith.constant 2 : index
    %c0_23 = arith.constant 0 : index
    %c0_24 = arith.constant 0 : index
    %44 = vector.load %arg6[%c0_22, %c2, %c0_23, %c0_24] : memref<1x3x5x32xbf16, #tpu.memory_space<vmem>>, vector<1x1x5x32xbf16>
    %45 = vector.shape_cast %44 : vector<1x1x5x32xbf16> to vector<5x32xbf16>
    %46 = vector.shape_cast %43 : vector<5x32xbf16> to vector<1x1x5x32xbf16>
    tpu.vector_store %arg6[%c0_22, %c2, %c0_23, %c0_24], %46 {strides = array<i32>} : memref<1x3x5x32xbf16, #tpu.memory_space<vmem>>, vector<1x1x5x32xbf16>,
    return
  }
  func.func @transform_0(%arg0: i32) -> (i32, i32, i32) {
    %c0_i32 = arith.constant 0 : i32
    %c0_i32_0 = arith.constant 0 : i32
    %c0_i32_1 = arith.constant 0 : i32
    return %arg0, %c0_i32, %c0_i32_0 : i32, i32, i32
  }
  func.func @transform_1(%arg0: i32) -> (i32, i32) {
    %c0_i32 = arith.constant 0 : i32
    %c0_i32_0 = arith.constant 0 : i32
    %c0_i32_1 = arith.constant 0 : i32
    return %c0_i32, %c0_i32_0 : i32, i32
  }
  func.func @transform_2(%arg0: i32) -> (i32, i32) {
    %c0_i32 = arith.constant 0 : i32
    %c0_i32_0 = arith.constant 0 : i32
    %c0_i32_1 = arith.constant 0 : i32
    return %c0_i32, %c0_i32_0 : i32, i32
  }
  func.func @transform_3(%arg0: i32) -> (i32, i32) {
    %c0_i32 = arith.constant 0 : i32
    %c0_i32_0 = arith.constant 0 : i32
    %c0_i32_1 = arith.constant 0 : i32
    return %c0_i32, %c0_i32_0 : i32, i32
  }
  func.func @transform_4(%arg0: i32) -> (i32, i32) {
    %c0_i32 = arith.constant 0 : i32
    %c0_i32_0 = arith.constant 0 : i32
    %c0_i32_1 = arith.constant 0 : i32
    return %c0_i32, %c0_i32_0 : i32, i32
  }
  func.func @transform_5(%arg0: i32) -> (i32, i32, i32, i32) {
    %c0_i32 = arith.constant 0 : i32
    %c0_i32_0 = arith.constant 0 : i32
    %c0_i32_1 = arith.constant 0 : i32
    %c0_i32_2 = arith.constant 0 : i32
    return %arg0, %c0_i32, %c0_i32_0, %c0_i32_1 : i32, i32, i32, i32
  }
}

</mosaic_0001>

<llo_original>
// kernel: tpu_custom_call.1
$region0: #{tpu_custom_call.1}
  #allocation0 [shape = 'u32[]', space=smem, size = 0x4, offset = 0x4, fixed_abs, tag = 'smem constant byte address 0x4 - core index']
  #allocation1 [shape = 'u32[144,128]{1,0:T(1,128)}', space=vmem, size = 0x12000, scoped, tag = 'internal scratch']
  %s0 = inlined_call_operand.hbm [shape: f32[8,128], index: 0, kind: input, shape index: {}]
  %s1 = inlined_call_operand.hbm [shape: f32[16,128], index: 1, kind: output, shape index: {}]
  %s2 = sld [smem:[#allocation0]]
  $region41: #{tpu_custom_call.1} parent=0
    _
  %s4 = ssub.s32 1, %s2
  %s5 = scalar_select 0, %s4, %s2
  $region1: #{tpu_custom_call.1} parent=0
    #allocation2 [shape = 'u8[4096]{0}', space=vmem, size = 0x1000, scoped, tag = 'input window, operand 0, single buffered']
    #allocation3 [shape = 's32[2]{0}', space=sflag, size = 0x8, scoped, tag = 'scoped memory for tpu_custom_call.1']
    #allocation4 [shape = 's32[2]{0}', space=sflag, size = 0x8, scoped, tag = 'scoped memory for tpu_custom_call.1']
    #allocation5 [shape = 'u8[8192]{0}', space=vmem, size = 0x2000, scoped, tag = 'output window, operand 0']
    %6 = vsyncpa [#allocation3], 0
    %7 = vsyncpa [#allocation4], 0
    %s8 = scalar_lea.sflag [#allocation4], 1
    %9 = vsyncpa %s8, 0
    loop: start=0, step=1, limit=4
    $region2: #{tpu_custom_call.1} parent=1 // loop_pre_header
      _
    $region3: #{tpu_custom_call.1} parent=1 // loop_header
      %s11 = sphi 0, %s15
      %p12 = scmp.ge.s32.totalorder %s11, 4
      %s19 = sphi 0, %s19
      %s21 = sphi 0, %s19
      %s22 = sphi 0, %s21
      %s36 = sphi 0, %s22
      %s42 = sphi 0, %s44
      %s45 = sphi 0, %s42
      %s46 = sphi 0, %s45
      %s62 = sphi 0, %s46
    $region4: #{tpu_custom_call.1} parent=1 // loop_header_branch
      %14 = sbr.rel (%p12) target = $region8
    $region5: #{tpu_custom_call.1} parent=1 // loop_body
      %s16 = ssub.s32 %s11, 1
      %s17 = ssub.s32 %s11, 2
      %s18 = sadd.s32 %s11, 1
      %s20 = sadd.s32 %s19, 1
      %p23 = scmp.eq.s32.totalorder %s11, 1
      %p24 = scmp.ne.s32.totalorder %s19, %s21
      %p25 = scmp.eq.s32.totalorder %s11, 0
      %p26 = por %p24, %p25
      %p27 = scmp.ne.s32.totalorder %s19, %s21
      %p28 = scmp.eq.s32.totalorder %s16, 1
      %p29 = por %p27, %p28
      %p30 = scmp.ne.s32.totalorder %s21, %s22
      %p31 = scmp.eq.s32.totalorder %s16, 0
      %p32 = por %p30, %p31
      %p33 = scmp.ne.s32.totalorder %s21, %s22
      %p34 = scmp.eq.s32.totalorder %s17, 1
      %p35 = por %p33, %p34
      %p37 = scmp.ne.s32.totalorder %s22, %s36
      %p38 = scmp.eq.s32.totalorder %s17, 0
      %p39 = por %p37, %p38
      %s40 = ssub.s32 %s11, %s18
      %p41 = scmp.eq.s32.totalorder %s40, 0
      %s43 = sadd.s32 %s42, 1
      %s44 = scalar_select %p41, %s42, %s43
      %p47 = pneg %p41
      %p48 = scmp.eq.s32.totalorder %s11, 1
      %p49 = por %p47, %p48
      %p50 = scmp.ne.s32.totalorder %s42, %s45
      %p51 = scmp.eq.s32.totalorder %s11, 0
      %p52 = por %p50, %p51
      %p53 = scmp.ne.s32.totalorder %s42, %s45
      %p54 = scmp.eq.s32.totalorder %s16, 1
      %p55 = por %p53, %p54
      %p56 = scmp.ne.s32.totalorder %s45, %s46
      %p57 = scmp.eq.s32.totalorder %s16, 0
      %p58 = por %p56, %p57
      %p59 = scmp.ne.s32.totalorder %s45, %s46
      %p60 = scmp.eq.s32.totalorder %s17, 1
      %p61 = por %p59, %p60
      %p63 = scmp.ne.s32.totalorder %s46, %s62
      %p64 = scmp.eq.s32.totalorder %s17, 0
      %p65 = por %p63, %p64
      %p66 = scmp.le.s32.totalorder 1, %s11
      %p67 = scmp.lt.s32.totalorder %s11, 3
      %p68 = pnand %p66, %p67
      %p69 = pneg %p68
      // Predicated region
      $region9: #{tpu_custom_call.1} parent=5 // pred_check
        _
      $region10: #{tpu_custom_call.1} parent=5 // pred_check_branch
        %71 = sbr.rel (%p68) target = $region12
      $region11: #{tpu_custom_call.1} parent=5 // pred_region
        %s72 = ssub.s32 %s11, 1
        // Predicated region
        $region13: #{tpu_custom_call.1} parent=11 // pred_check
          %p73 = pneg %p32
        $region14: #{tpu_custom_call.1} parent=11 // pred_check_branch
          %75 = sbr.rel (%p73) target = $region16
        $region15: #{tpu_custom_call.1} parent=11 // pred_region
          %s77 = ssub.s32 128, 128
          %78 = vsyncadd [#allocation3], %s77
          %s80 = sshll.u32 [#allocation2], 4
          %s81 = int_to_ptr.vmem [resolvable:$true] %s80
          %83 = dma.hbm_to_vmem [thread:$0]  %s0, 128, %s81, [#allocation3]
        $region16: #{tpu_custom_call.1} parent=11 // pred_fallthru
          _
      $region12: #{tpu_custom_call.1} parent=5 // pred_fallthru
        _
      %p84 = scmp.lt.s32.totalorder %s11, 2
      // Predicated region
      $region17: #{tpu_custom_call.1} parent=5 // pred_check
        %p85 = pneg %p84
      $region18: #{tpu_custom_call.1} parent=5 // pred_check_branch
        %87 = sbr.rel (%p85) target = $region20
      $region19: #{tpu_custom_call.1} parent=5 // pred_region
        _
      $region20: #{tpu_custom_call.1} parent=5 // pred_fallthru
        _
      %p88 = scmp.le.s32.totalorder 1, %s11
      %p89 = scmp.lt.s32.totalorder %s11, 3
      %p90 = pnand %p88, %p89
      %p91 = pneg %p90
      // Predicated region
      $region21: #{tpu_custom_call.1} parent=5 // pred_check
        _
      $region22: #{tpu_custom_call.1} parent=5 // pred_check_branch
        %93 = sbr.rel (%p90) target = $region24
      $region23: #{tpu_custom_call.1} parent=5 // pred_region
        %s94 = ssub.s32 %s11, 1
        // Predicated region
        $region25: #{tpu_custom_call.1} parent=23 // pred_check
          %p95 = pneg %p32
        $region26: #{tpu_custom_call.1} parent=23 // pred_check_branch
          %97 = sbr.rel (%p95) target = $region28
        $region27: #{tpu_custom_call.1} parent=23 // pred_region
          %98 = dma.done [#allocation3], 128
        $region28: #{tpu_custom_call.1} parent=23 // pred_fallthru
          _
        %p99 = pneg %p32
        %p100 = pneg %p29
        %p101 = pneg %p58
        %p102 = pneg %p55
        %s103 = sand.u32 %s45, 1
        %s104 = scalar_lea.sflag [#allocation4], %s103
        %s105 = sand.u32 %s45, 1
        %s106 = smul.addr %s105, 8
        %s107 = scalar_lea.vmem [#allocation5], %s106
        %v108 = vld [vmem:[#allocation2] sm:$0xff]
        %v109 = vadd.f32 %v108, 1.0
        %110 = vst [vmem:[%s107] sm:$0xff] %v109
        %s111 = sand.u32 %s45, 1
        %s112 = scalar_lea.sflag [#allocation4], %s111
        %s113 = sand.u32 %s45, 1
        %s114 = smul.addr %s113, 8
        %s115 = scalar_lea.vmem [#allocation5], %s114
        // Predicated region
        $region29: #{tpu_custom_call.1} parent=23 // pred_check
          %p116 = pneg %p55
        $region30: #{tpu_custom_call.1} parent=23 // pred_check_branch
          %118 = sbr.rel (%p116) target = $region32
        $region31: #{tpu_custom_call.1} parent=23 // pred_region
          %s120 = ssub.s32 128, 128
          %121 = vsyncadd %s112, %s120
          %s122 = smul.addr %s16, 128
          %s123 = scalar_lea.hbm %s1, %s122
          %s125 = sshll.u32 %s115, 4
          %s126 = int_to_ptr.vmem [resolvable:$true] %s125
          %128 = dma.vmem_to_hbm [thread:$0]  %s126, 128, %s123, %s112
        $region32: #{tpu_custom_call.1} parent=23 // pred_fallthru
          _
      $region24: #{tpu_custom_call.1} parent=5 // pred_fallthru
        _
      %p129 = scmp.le.s32.totalorder 2, %s11
      // Predicated region
      $region33: #{tpu_custom_call.1} parent=5 // pred_check
        %p130 = pneg %p129
      $region34: #{tpu_custom_call.1} parent=5 // pred_check_branch
        %132 = sbr.rel (%p130) target = $region36
      $region35: #{tpu_custom_call.1} parent=5 // pred_region
        %s133 = ssub.s32 %s11, 2
        // Predicated region
        $region37: #{tpu_custom_call.1} parent=35 // pred_check
          %p134 = pneg %p61
        $region38: #{tpu_custom_call.1} parent=35 // pred_check_branch
          %136 = sbr.rel (%p134) target = $region40
        $region39: #{tpu_custom_call.1} parent=35 // pred_region
          %s137 = sand.u32 %s46, 1
          %s138 = scalar_lea.sflag [#allocation4], %s137
          %s139 = sand.u32 %s46, 1
          %s140 = smul.addr %s139, 8
          %s141 = scalar_lea.vmem [#allocation5], %s140
          %142 = dma.done %s138, 128
        $region40: #{tpu_custom_call.1} parent=35 // pred_fallthru
          _
      $region36: #{tpu_custom_call.1} parent=5 // pred_fallthru
        _
    $region6: #{tpu_custom_call.1} parent=1 // loop_footer
      %s15 = sadd.s32 1, %s11
    $region7: #{tpu_custom_call.1} parent=1 // loop_footer_branch
      %10 = sbr.rel target = $region3
    $region8: #{tpu_custom_call.1} parent=1 // loop_exit
      _
    %143 = vsyncpa [#allocation3], 1
    %s144 = scalar_lea.sflag [#allocation3], 1
    %145 = vsyncpa %s144, 1
    %146 = vsyncpa [#allocation4], 1
    %s147 = scalar_lea.sflag [#allocation4], 1
    %148 = vsyncpa %s147, 1

// kernel: _lambda_.6
$region0: #{_lambda_.6}
  #allocation0 [shape = 'u32[]', space=smem, size = 0x4, offset = 0x4, fixed_abs, tag = 'smem constant byte address 0x4 - core index']
  #allocation1 [shape = 'u32[144,128]{1,0:T(1,128)}', space=vmem, size = 0x12000, scoped, tag = 'internal scratch']
  %s0 = inlined_call_operand.vmem [shape: f32[2,5,32], index: 0, kind: input, shape index: {}]
  %s1 = inlined_call_operand.vmem [shape: f32[1,32], index: 1, kind: input, shape index: {}]
  %s2 = inlined_call_operand.vmem [shape: f32[1,32], index: 2, kind: input, shape index: {}]
  %s3 = inlined_call_operand.vmem [shape: bf16[32,96], index: 3, kind: input, shape index: {}]
  %s4 = inlined_call_operand.vmem [shape: f32[1,96], index: 4, kind: input, shape index: {}]
  %s5 = inlined_call_operand.vmem [shape: bf16[2,3,5,32], index: 5, kind: output, shape index: {}]
  %s6 = sld [smem:[#allocation0]]
  $region53: #{_lambda_.6} parent=0
    _
  %s8 = ssub.s32 1, %s6
  %s9 = scalar_select 0, %s8, %s6
  loop: start=0, step=1, limit=4
  $region2: #{_lambda_.6} parent=0 // loop_pre_header
    _
  $region3: #{_lambda_.6} parent=0 // loop_header
    %s11 = sphi 0, %s15
    %p12 = scmp.ge.s32.totalorder %s11, 4
    %s21 = sphi 0, %s23
    %s24 = sphi 0, %s21
    %s25 = sphi 0, %s24
    %s41 = sphi 0, %s25
    %s45 = sphi 0, %s45
    %s47 = sphi 0, %s45
    %s48 = sphi 0, %s47
    %s62 = sphi 0, %s48
    %s66 = sphi 0, %s66
    %s68 = sphi 0, %s66
    %s69 = sphi 0, %s68
    %s83 = sphi 0, %s69
    %s87 = sphi 0, %s87
    %s89 = sphi 0, %s87
    %s90 = sphi 0, %s89
    %s104 = sphi 0, %s90
    %s108 = sphi 0, %s108
    %s110 = sphi 0, %s108
    %s111 = sphi 0, %s110
    %s125 = sphi 0, %s111
    %s131 = sphi 0, %s133
    %s134 = sphi 0, %s131
    %s135 = sphi 0, %s134
    %s151 = sphi 0, %s135
  $region4: #{_lambda_.6} parent=0 // loop_header_branch
    %14 = sbr.rel (%p12) target = $region8
  $region5: #{_lambda_.6} parent=0 // loop_body
    %s16 = ssub.s32 %s11, 1
    %s17 = ssub.s32 %s11, 2
    %s18 = sadd.s32 %s11, 1
    %s19 = ssub.s32 %s11, %s18
    %p20 = scmp.eq.s32.totalorder %s19, 0
    %s22 = sadd.s32 %s21, 1
    %s23 = scalar_select %p20, %s21, %s22
    %p26 = pneg %p20
    %p27 = scmp.eq.s32.totalorder %s11, 1
    %p28 = por %p26, %p27
    %p29 = scmp.ne.s32.totalorder %s21, %s24
    %p30 = scmp.eq.s32.totalorder %s11, 0
    %p31 = por %p29, %p30
    %p32 = scmp.ne.s32.totalorder %s21, %s24
    %p33 = scmp.eq.s32.totalorder %s16, 1
    %p34 = por %p32, %p33
    %p35 = scmp.ne.s32.totalorder %s24, %s25
    %p36 = scmp.eq.s32.totalorder %s16, 0
    %p37 = por %p35, %p36
    %p38 = scmp.ne.s32.totalorder %s24, %s25
    %p39 = scmp.eq.s32.totalorder %s17, 1
    %p40 = por %p38, %p39
    %p42 = scmp.ne.s32.totalorder %s25, %s41
    %p43 = scmp.eq.s32.totalorder %s17, 0
    %p44 = por %p42, %p43
    %s46 = sadd.s32 %s45, 1
    %p49 = scmp.eq.s32.totalorder %s11, 1
    %p50 = scmp.ne.s32.totalorder %s45, %s47
    %p51 = scmp.eq.s32.totalorder %s11, 0
    %p52 = por %p50, %p51
    %p53 = scmp.ne.s32.totalorder %s45, %s47
    %p54 = scmp.eq.s32.totalorder %s16, 1
    %p55 = por %p53, %p54
    %p56 = scmp.ne.s32.totalorder %s47, %s48
    %p57 = scmp.eq.s32.totalorder %s16, 0
    %p58 = por %p56, %p57
    %p59 = scmp.ne.s32.totalorder %s47, %s48
    %p60 = scmp.eq.s32.totalorder %s17, 1
    %p61 = por %p59, %p60
    %p63 = scmp.ne.s32.totalorder %s48, %s62
    %p64 = scmp.eq.s32.totalorder %s17, 0
    %p65 = por %p63, %p64
    %s67 = sadd.s32 %s66, 1
    %p70 = scmp.eq.s32.totalorder %s11, 1
    %p71 = scmp.ne.s32.totalorder %s66, %s68
    %p72 = scmp.eq.s32.totalorder %s11, 0
    %p73 = por %p71, %p72
    %p74 = scmp.ne.s32.totalorder %s66, %s68
    %p75 = scmp.eq.s32.totalorder %s16, 1
    %p76 = por %p74, %p75
    %p77 = scmp.ne.s32.totalorder %s68, %s69
    %p78 = scmp.eq.s32.totalorder %s16, 0
    %p79 = por %p77, %p78
    %p80 = scmp.ne.s32.totalorder %s68, %s69
    %p81 = scmp.eq.s32.totalorder %s17, 1
    %p82 = por %p80, %p81
    %p84 = scmp.ne.s32.totalorder %s69, %s83
    %p85 = scmp.eq.s32.totalorder %s17, 0
    %p86 = por %p84, %p85
    %s88 = sadd.s32 %s87, 1
    %p91 = scmp.eq.s32.totalorder %s11, 1
    %p92 = scmp.ne.s32.totalorder %s87, %s89
    %p93 = scmp.eq.s32.totalorder %s11, 0
    %p94 = por %p92, %p93
    %p95 = scmp.ne.s32.totalorder %s87, %s89
    %p96 = scmp.eq.s32.totalorder %s16, 1
    %p97 = por %p95, %p96
    %p98 = scmp.ne.s32.totalorder %s89, %s90
    %p99 = scmp.eq.s32.totalorder %s16, 0
    %p100 = por %p98, %p99
    %p101 = scmp.ne.s32.totalorder %s89, %s90
    %p102 = scmp.eq.s32.totalorder %s17, 1
    %p103 = por %p101, %p102
    %p105 = scmp.ne.s32.totalorder %s90, %s104
    %p106 = scmp.eq.s32.totalorder %s17, 0
    %p107 = por %p105, %p106
    %s109 = sadd.s32 %s108, 1
    %p112 = scmp.eq.s32.totalorder %s11, 1
    %p113 = scmp.ne.s32.totalorder %s108, %s110
    %p114 = scmp.eq.s32.totalorder %s11, 0
    %p115 = por %p113, %p114
    %p116 = scmp.ne.s32.totalorder %s108, %s110
    %p117 = scmp.eq.s32.totalorder %s16, 1
    %p118 = por %p116, %p117
    %p119 = scmp.ne.s32.totalorder %s110, %s111
    %p120 = scmp.eq.s32.totalorder %s16, 0
    %p121 = por %p119, %p120
    %p122 = scmp.ne.s32.totalorder %s110, %s111
    %p123 = scmp.eq.s32.totalorder %s17, 1
    %p124 = por %p122, %p123
    %p126 = scmp.ne.s32.totalorder %s111, %s125
    %p127 = scmp.eq.s32.totalorder %s17, 0
    %p128 = por %p126, %p127
    %s129 = ssub.s32 %s11, %s18
    %p130 = scmp.eq.s32.totalorder %s129, 0
    %s132 = sadd.s32 %s131, 1
    %s133 = scalar_select %p130, %s131, %s132
    %p136 = pneg %p130
    %p137 = scmp.eq.s32.totalorder %s11, 1
    %p138 = por %p136, %p137
    %p139 = scmp.ne.s32.totalorder %s131, %s134
    %p140 = scmp.eq.s32.totalorder %s11, 0
    %p141 = por %p139, %p140
    %p142 = scmp.ne.s32.totalorder %s131, %s134
    %p143 = scmp.eq.s32.totalorder %s16, 1
    %p144 = por %p142, %p143
    %p145 = scmp.ne.s32.totalorder %s134, %s135
    %p146 = scmp.eq.s32.totalorder %s16, 0
    %p147 = por %p145, %p146
    %p148 = scmp.ne.s32.totalorder %s134, %s135
    %p149 = scmp.eq.s32.totalorder %s17, 1
    %p150 = por %p148, %p149
    %p152 = scmp.ne.s32.totalorder %s135, %s151
    %p153 = scmp.eq.s32.totalorder %s17, 0
    %p154 = por %p152, %p153
    %p155 = scmp.le.s32.totalorder 1, %s11
    %p156 = scmp.lt.s32.totalorder %s11, 3
    %p157 = pnand %p155, %p156
    %p158 = pneg %p157
    // Predicated region
    $region9: #{_lambda_.6} parent=5 // pred_check
      _
    $region10: #{_lambda_.6} parent=5 // pred_check_branch
      %160 = sbr.rel (%p157) target = $region12
    $region11: #{_lambda_.6} parent=5 // pred_region
      %s161 = ssub.s32 %s11, 1
      // Predicated region
      $region13: #{_lambda_.6} parent=11 // pred_check
        %p162 = pneg %p58
      $region14: #{_lambda_.6} parent=11 // pred_check_branch
        %164 = sbr.rel (%p162) target = $region16
      $region15: #{_lambda_.6} parent=11 // pred_region
        _
      $region16: #{_lambda_.6} parent=11 // pred_fallthru
        _
      // Predicated region
      $region17: #{_lambda_.6} parent=11 // pred_check
        %p165 = pneg %p79
      $region18: #{_lambda_.6} parent=11 // pred_check_branch
        %167 = sbr.rel (%p165) target = $region20
      $region19: #{_lambda_.6} parent=11 // pred_region
        _
      $region20: #{_lambda_.6} parent=11 // pred_fallthru
        _
      // Predicated region
      $region21: #{_lambda_.6} parent=11 // pred_check
        %p168 = pneg %p100
      $region22: #{_lambda_.6} parent=11 // pred_check_branch
        %170 = sbr.rel (%p168) target = $region24
      $region23: #{_lambda_.6} parent=11 // pred_region
        _
      $region24: #{_lambda_.6} parent=11 // pred_fallthru
        _
      // Predicated region
      $region25: #{_lambda_.6} parent=11 // pred_check
        %p171 = pneg %p121
      $region26: #{_lambda_.6} parent=11 // pred_check_branch
        %173 = sbr.rel (%p171) target = $region28
      $region27: #{_lambda_.6} parent=11 // pred_region
        _
      $region28: #{_lambda_.6} parent=11 // pred_fallthru
        _
    $region12: #{_lambda_.6} parent=5 // pred_fallthru
      _
    %p174 = scmp.lt.s32.totalorder %s11, 2
    // Predicated region
    $region29: #{_lambda_.6} parent=5 // pred_check
      %p175 = pneg %p174
    $region30: #{_lambda_.6} parent=5 // pred_check_branch
      %177 = sbr.rel (%p175) target = $region32
    $region31: #{_lambda_.6} parent=5 // pred_region
      // Predicated region
      $region33: #{_lambda_.6} parent=31 // pred_check
        %p178 = pneg %p31
      $region34: #{_lambda_.6} parent=31 // pred_check_branch
        %180 = sbr.rel (%p178) target = $region36
      $region35: #{_lambda_.6} parent=31 // pred_region
        %p181 = scmp.lt.s32.totalorder %s11, 1
        %s182 = scalar_select %p181, %s11, 1
        %s183 = smul.addr %s182, 8
        %s184 = scalar_lea.vmem %s0, %s183
      $region36: #{_lambda_.6} parent=31 // pred_fallthru
        _
    $region32: #{_lambda_.6} parent=5 // pred_fallthru
      _
    %p185 = scmp.le.s32.totalorder 1, %s11
    %p186 = scmp.lt.s32.totalorder %s11, 3
    %p187 = pnand %p185, %p186
    %p188 = pneg %p187
    // Predicated region
    $region37: #{_lambda_.6} parent=5 // pred_check
      _
    $region38: #{_lambda_.6} parent=5 // pred_check_branch
      %190 = sbr.rel (%p187) target = $region40
    $region39: #{_lambda_.6} parent=5 // pred_region
      %s191 = ssub.s32 %s11, 1
      %p192 = scmp.lt.s32.totalorder %s16, 1
      %s193 = scalar_select %p192, %s16, 1
      %s194 = smul.addr %s193, 8
      %s195 = scalar_lea.vmem %s0, %s194
      %p196 = pneg %p37
      %p197 = pneg %p34
      %p198 = pneg %p58
      %p199 = pneg %p55
      %p200 = pneg %p79
      %p201 = pneg %p76
      %p202 = pneg %p100
      %p203 = pneg %p97
      %p204 = pneg %p121
      %p205 = pneg %p118
      %p206 = pneg %p147
      %p207 = pneg %p144
      %p208 = scmp.lt.s32.totalorder %s16, 1
      %s209 = scalar_select %p208, %s16, 1
      %s210 = smul.addr %s209, 3
      %s211 = smul.addr %s210, 4
      %s212 = scalar_lea.vmem %s5, %s211
      %p213 = scmp.lt.s32.totalorder %s16, 1
      %s214 = scalar_select %p213, %s16, 1
      %s215 = smul.addr %s214, 8
      %s216 = scalar_lea.vmem %s0, %s215
      %p217 = scmp.lt.s32.totalorder %s16, 1
      %s218 = scalar_select %p217, %s16, 1
      %s219 = smul.addr %s218, 3
      %s220 = smul.addr %s219, 4
      %s221 = scalar_lea.vmem %s5, %s220
      %v223 = vld [vmem:[%s216] sm:$0x1f]
      %v224 = vld [vmem:[%s1] sm:$0x1]
      %v225 = vld [vmem:[%s2] sm:$0x1]
      %vm226 = vcmask 258048
      %v227 = vsel %vm226, %v223, 0.0
      %228 = vadd.xlane.f32.xlu0 %v227
      %v229 = vpop.xlane.xlu0 %228
      %v230 = vrcp.pop 32.0
      %v231 = vmul.f32 %v229, %v230
      %v232 = vsub.f32 %v223, %v231
      %v233 = vmul.f32 %v232, %v232
      %v234 = vsel %vm226, %v233, 0.0
      %235 = vadd.xlane.f32.xlu0 %v234
      %v236 = vpop.xlane.xlu0 %235
      %v237 = vmul.f32 %v236, %v230
      %v238 = vadd.f32 %v237, 1e-05
      %v239 = vrsqrt.pop %v238
      %v240 = vmul.f32 %v232, %v239
      %v242 = vlaneseq
      %v243 = vshrl.u32 %v242, 7
      %v244 = vsub.s32 0, %v243
      %v245 = vrot.slane %v224, %v244
      %v247 = vmul.f32 %v240, %v245
      %v249 = vlaneseq
      %v250 = vshrl.u32 %v249, 7
      %v251 = vsub.s32 0, %v250
      %v252 = vrot.slane %v225, %v251
      %v254 = vadd.f32 %v247, %v252
      %v255 = vpack.c.bf16 %v254, %v254
      %v256 = vld [vmem:[%s3] sm:$0xf]
      %v257 = vld [vmem:[%s3 + $0x4] sm:$0xf]
      %v258 = vld [vmem:[%s3 + $0x8] sm:$0xf]
      %v259 = vld [vmem:[%s3 + $0xc] sm:$0xf]
      %v260 = vld [vmem:[%s4] sm:$0x1]
      %v262 = vlaneseq
      %v263 = vshrl.u32 %v262, 7
      %v264 = vsub.s32 0, %v263
      %v265 = vrot.slane %v260, %v264
      %v271 = vunpack.c.l.b16 %v256
      %v272 = vunpack.c.l.b16 %v257
      %v273 = vunpack.c.l.b16 %v258
      %v274 = vunpack.c.l.b16 %v259
      %v275 = vpack.c.b16 %v272, %v271
      %v276 = vpack.c.b16 %v274, %v273
      %vm279 = vcmask 261120
      %v281 = vsel %vm279, %v255, 0
      %283 = vmatprep.subr.bf16.mxu0 0
      %284 = vmatpush1.bf16.msra.mxu0 0
      %285 = vmatprep.subr.bf16.mxu0 0
      %286 = vmatpush1.bf16.msra.mxu0 0
      %287 = vmatprep.subr.bf16.mxu0 0
      %288 = vmatpush1.bf16.msra.mxu0 0
      %289 = vmatprep.subr.bf16.mxu0 0
      %290 = vmatpush1.bf16.msra.mxu0 0
      %291 = vmatprep.subr.bf16.mxu0 0
      %292 = vmatpush1.bf16.msra.mxu0 0
      %293 = vmatprep.subr.bf16.mxu0 0
      %294 = vmatpush1.bf16.msra.mxu0 0
      %295 = vmatprep.subr.bf16.mxu0 0
      %296 = vmatpush1.bf16.msra.mxu0 %v276
      %297 = vmatprep.subr.bf16.mxu0 0
      %298 = vmatpush1.bf16.msra.mxu0 %v275
      %299 = vmatprep.subr.bf16.mxu0 0
      %300 = vmatpush2.bf16.msra.mxu0 0
      %301 = vmatprep.subr.bf16.mxu0 0
      %302 = vmatpush2.bf16.msra.mxu0 0
      %303 = vmatprep.subr.bf16.mxu0 0
      %304 = vmatpush2.bf16.msra.mxu0 0
      %305 = vmatprep.subr.bf16.mxu0 0
      %306 = vmatpush2.bf16.msra.mxu0 0
      %307 = vmatprep.subr.bf16.mxu0 0
      %308 = vmatpush2.bf16.msra.mxu0 0
      %309 = vmatprep.subr.bf16.mxu0 0
      %310 = vmatpush2.bf16.msra.mxu0 0
      %311 = vmatprep.subr.bf16.mxu0 0
      %312 = vmatpush2.bf16.msra.mxu0 0
      %313 = vmatprep.subr.bf16.mxu0 0
      %314 = vmatpush2.bf16.msra.mxu0 0
      %315 = vmatprep.mubr.bf16.mxu0 0
      %316 = vmatmul.mubr.bf16.gmra.mxu0 %v281
      %v317 = vpop.f32.mrf.mxu0
      %v318 = vadd.f32 %v265, %v317
      %v319 = vpop.f32.mrf.mxu0
      %v320 = vpop.f32.mrf.mxu0
      %v321 = vpop.f32.mrf.mxu0
      %322 = vdwg.mxu0
      %v323 = vpack.c.bf16 %v318, %v318
      %vm324 = vcmask 256000
      %vm325 = vsmask.f32 2304
      %vm326 = vmand %vm324, %vm325
      %v327 = vld [vmem:[%s221] sm:$0x7]
      %v328 = vsel %vm326, %v323, %v327
      %329 = vst [vmem:[%s221] sm:$0x7] %v328
      %v331 = vunpack.c.l.b16 %v323
      %v332 = vpack.c.b16 %v331, %v331
      %333 = vrot.lane.b32.xlu0 %v332, 96
      %v334 = vpop.permute.xlu0 %333
      %s336 = scalar_lea.vmem %s221, 4
      %v337 = vld [vmem:[%s336] sm:$0x7]
      %v338 = vsel %vm326, %v334, %v337
      %339 = vst [vmem:[%s336] sm:$0x7] %v338
      %340 = vrot.lane.b32.xlu0 %v332, 64
      %v341 = vpop.permute.xlu0 %340
      %s343 = scalar_lea.vmem %s221, 8
      %v344 = vld [vmem:[%s343] sm:$0x7]
      %v345 = vsel %vm326, %v341, %v344
      %346 = vst [vmem:[%s343] sm:$0x7] %v345
      %p347 = scmp.lt.s32.totalorder %s16, 1
      %s348 = scalar_select %p347, %s16, 1
      %s349 = smul.addr %s348, 3
      %s350 = smul.addr %s349, 4
      %s351 = scalar_lea.vmem %s5, %s350
      // Predicated region
      $region41: #{_lambda_.6} parent=39 // pred_check
        %p352 = pneg %p144
      $region42: #{_lambda_.6} parent=39 // pred_check_branch
        %354 = sbr.rel (%p352) target = $region44
      $region43: #{_lambda_.6} parent=39 // pred_region
        _
      $region44: #{_lambda_.6} parent=39 // pred_fallthru
        _
    $region40: #{_lambda_.6} parent=5 // pred_fallthru
      _
    %p355 = scmp.le.s32.totalorder 2, %s11
    // Predicated region
    $region45: #{_lambda_.6} parent=5 // pred_check
      %p356 = pneg %p355
    $region46: #{_lambda_.6} parent=5 // pred_check_branch
      %358 = sbr.rel (%p356) target = $region48
    $region47: #{_lambda_.6} parent=5 // pred_region
      %s359 = ssub.s32 %s11, 2
      // Predicated region
      $region49: #{_lambda_.6} parent=47 // pred_check
        %p360 = pneg %p150
      $region50: #{_lambda_.6} parent=47 // pred_check_branch
        %362 = sbr.rel (%p360) target = $region52
      $region51: #{_lambda_.6} parent=47 // pred_region
        %p363 = scmp.lt.s32.totalorder %s17, 1
        %s364 = scalar_select %p363, %s17, 1
        %s365 = smul.addr %s364, 3
        %s366 = smul.addr %s365, 4
        %s367 = scalar_lea.vmem %s5, %s366
      $region52: #{_lambda_.6} parent=47 // pred_fallthru
        _
    $region48: #{_lambda_.6} parent=5 // pred_fallthru
      _
  $region6: #{_lambda_.6} parent=0 // loop_footer
    %s15 = sadd.s32 1, %s11
  $region7: #{_lambda_.6} parent=0 // loop_footer_branch
    %10 = sbr.rel target = $region3
  $region8: #{_lambda_.6} parent=0 // loop_exit
    _

// kernel: _lambda_.5
$region0: #{_lambda_.5}
  #allocation0 [shape = 'u32[]', space=smem, size = 0x4, offset = 0x4, fixed_abs, tag = 'smem constant byte address 0x4 - core index']
  #allocation1 [shape = 'u32[144,128]{1,0:T(1,128)}', space=vmem, size = 0x12000, scoped, tag = 'internal scratch']
  %s0 = inlined_call_operand.vmem [shape: bf16[2,4,192], index: 0, kind: input, shape index: {}]
  %s1 = inlined_call_operand.vmem [shape: bf16[192,32], index: 1, kind: input, shape index: {}]
  %s2 = inlined_call_operand.vmem [shape: f32[1,32], index: 2, kind: input, shape index: {}]
  %s3 = inlined_call_operand.vmem [shape: f32[5,32], index: 3, kind: input, shape index: {}]
  %s4 = inlined_call_operand.vmem [shape: f32[1,32], index: 4, kind: input, shape index: {}]
  %s5 = inlined_call_operand.vmem [shape: f32[1,32], index: 5, kind: input, shape index: {}]
  %s6 = inlined_call_operand.vmem [shape: f32[2,5,32], index: 6, kind: output, shape index: {}]
  %s7 = sld [smem:[#allocation0]]
  $region57: #{_lambda_.5} parent=0
    _
  %s9 = ssub.s32 1, %s7
  %s10 = scalar_select 0, %s9, %s7
  loop: start=0, step=1, limit=4
  $region2: #{_lambda_.5} parent=0 // loop_pre_header
    _
  $region3: #{_lambda_.5} parent=0 // loop_header
    %s12 = sphi 0, %s16
    %p13 = scmp.ge.s32.totalorder %s12, 4
    %s22 = sphi 0, %s24
    %s25 = sphi 0, %s22
    %s26 = sphi 0, %s25
    %s42 = sphi 0, %s26
    %s46 = sphi 0, %s46
    %s48 = sphi 0, %s46
    %s49 = sphi 0, %s48
    %s63 = sphi 0, %s49
    %s67 = sphi 0, %s67
    %s69 = sphi 0, %s67
    %s70 = sphi 0, %s69
    %s84 = sphi 0, %s70
    %s88 = sphi 0, %s88
    %s90 = sphi 0, %s88
    %s91 = sphi 0, %s90
    %s105 = sphi 0, %s91
    %s109 = sphi 0, %s109
    %s111 = sphi 0, %s109
    %s112 = sphi 0, %s111
    %s126 = sphi 0, %s112
    %s130 = sphi 0, %s130
    %s132 = sphi 0, %s130
    %s133 = sphi 0, %s132
    %s147 = sphi 0, %s133
    %s153 = sphi 0, %s155
    %s156 = sphi 0, %s153
    %s157 = sphi 0, %s156
    %s173 = sphi 0, %s157
  $region4: #{_lambda_.5} parent=0 // loop_header_branch
    %15 = sbr.rel (%p13) target = $region8
  $region5: #{_lambda_.5} parent=0 // loop_body
    %s17 = ssub.s32 %s12, 1
    %s18 = ssub.s32 %s12, 2
    %s19 = sadd.s32 %s12, 1
    %s20 = ssub.s32 %s12, %s19
    %p21 = scmp.eq.s32.totalorder %s20, 0
    %s23 = sadd.s32 %s22, 1
    %s24 = scalar_select %p21, %s22, %s23
    %p27 = pneg %p21
    %p28 = scmp.eq.s32.totalorder %s12, 1
    %p29 = por %p27, %p28
    %p30 = scmp.ne.s32.totalorder %s22, %s25
    %p31 = scmp.eq.s32.totalorder %s12, 0
    %p32 = por %p30, %p31
    %p33 = scmp.ne.s32.totalorder %s22, %s25
    %p34 = scmp.eq.s32.totalorder %s17, 1
    %p35 = por %p33, %p34
    %p36 = scmp.ne.s32.totalorder %s25, %s26
    %p37 = scmp.eq.s32.totalorder %s17, 0
    %p38 = por %p36, %p37
    %p39 = scmp.ne.s32.totalorder %s25, %s26
    %p40 = scmp.eq.s32.totalorder %s18, 1
    %p41 = por %p39, %p40
    %p43 = scmp.ne.s32.totalorder %s26, %s42
    %p44 = scmp.eq.s32.totalorder %s18, 0
    %p45 = por %p43, %p44
    %s47 = sadd.s32 %s46, 1
    %p50 = scmp.eq.s32.totalorder %s12, 1
    %p51 = scmp.ne.s32.totalorder %s46, %s48
    %p52 = scmp.eq.s32.totalorder %s12, 0
    %p53 = por %p51, %p52
    %p54 = scmp.ne.s32.totalorder %s46, %s48
    %p55 = scmp.eq.s32.totalorder %s17, 1
    %p56 = por %p54, %p55
    %p57 = scmp.ne.s32.totalorder %s48, %s49
    %p58 = scmp.eq.s32.totalorder %s17, 0
    %p59 = por %p57, %p58
    %p60 = scmp.ne.s32.totalorder %s48, %s49
    %p61 = scmp.eq.s32.totalorder %s18, 1
    %p62 = por %p60, %p61
    %p64 = scmp.ne.s32.totalorder %s49, %s63
    %p65 = scmp.eq.s32.totalorder %s18, 0
    %p66 = por %p64, %p65
    %s68 = sadd.s32 %s67, 1
    %p71 = scmp.eq.s32.totalorder %s12, 1
    %p72 = scmp.ne.s32.totalorder %s67, %s69
    %p73 = scmp.eq.s32.totalorder %s12, 0
    %p74 = por %p72, %p73
    %p75 = scmp.ne.s32.totalorder %s67, %s69
    %p76 = scmp.eq.s32.totalorder %s17, 1
    %p77 = por %p75, %p76
    %p78 = scmp.ne.s32.totalorder %s69, %s70
    %p79 = scmp.eq.s32.totalorder %s17, 0
    %p80 = por %p78, %p79
    %p81 = scmp.ne.s32.totalorder %s69, %s70
    %p82 = scmp.eq.s32.totalorder %s18, 1
    %p83 = por %p81, %p82
    %p85 = scmp.ne.s32.totalorder %s70, %s84
    %p86 = scmp.eq.s32.totalorder %s18, 0
    %p87 = por %p85, %p86
    %s89 = sadd.s32 %s88, 1
    %p92 = scmp.eq.s32.totalorder %s12, 1
    %p93 = scmp.ne.s32.totalorder %s88, %s90
    %p94 = scmp.eq.s32.totalorder %s12, 0
    %p95 = por %p93, %p94
    %p96 = scmp.ne.s32.totalorder %s88, %s90
    %p97 = scmp.eq.s32.totalorder %s17, 1
    %p98 = por %p96, %p97
    %p99 = scmp.ne.s32.totalorder %s90, %s91
    %p100 = scmp.eq.s32.totalorder %s17, 0
    %p101 = por %p99, %p100
    %p102 = scmp.ne.s32.totalorder %s90, %s91
    %p103 = scmp.eq.s32.totalorder %s18, 1
    %p104 = por %p102, %p103
    %p106 = scmp.ne.s32.totalorder %s91, %s105
    %p107 = scmp.eq.s32.totalorder %s18, 0
    %p108 = por %p106, %p107
    %s110 = sadd.s32 %s109, 1
    %p113 = scmp.eq.s32.totalorder %s12, 1
    %p114 = scmp.ne.s32.totalorder %s109, %s111
    %p115 = scmp.eq.s32.totalorder %s12, 0
    %p116 = por %p114, %p115
    %p117 = scmp.ne.s32.totalorder %s109, %s111
    %p118 = scmp.eq.s32.totalorder %s17, 1
    %p119 = por %p117, %p118
    %p120 = scmp.ne.s32.totalorder %s111, %s112
    %p121 = scmp.eq.s32.totalorder %s17, 0
    %p122 = por %p120, %p121
    %p123 = scmp.ne.s32.totalorder %s111, %s112
    %p124 = scmp.eq.s32.totalorder %s18, 1
    %p125 = por %p123, %p124
    %p127 = scmp.ne.s32.totalorder %s112, %s126
    %p128 = scmp.eq.s32.totalorder %s18, 0
    %p129 = por %p127, %p128
    %s131 = sadd.s32 %s130, 1
    %p134 = scmp.eq.s32.totalorder %s12, 1
    %p135 = scmp.ne.s32.totalorder %s130, %s132
    %p136 = scmp.eq.s32.totalorder %s12, 0
    %p137 = por %p135, %p136
    %p138 = scmp.ne.s32.totalorder %s130, %s132
    %p139 = scmp.eq.s32.totalorder %s17, 1
    %p140 = por %p138, %p139
    %p141 = scmp.ne.s32.totalorder %s132, %s133
    %p142 = scmp.eq.s32.totalorder %s17, 0
    %p143 = por %p141, %p142
    %p144 = scmp.ne.s32.totalorder %s132, %s133
    %p145 = scmp.eq.s32.totalorder %s18, 1
    %p146 = por %p144, %p145
    %p148 = scmp.ne.s32.totalorder %s133, %s147
    %p149 = scmp.eq.s32.totalorder %s18, 0
    %p150 = por %p148, %p149
    %s151 = ssub.s32 %s12, %s19
    %p152 = scmp.eq.s32.totalorder %s151, 0
    %s154 = sadd.s32 %s153, 1
    %s155 = scalar_select %p152, %s153, %s154
    %p158 = pneg %p152
    %p159 = scmp.eq.s32.totalorder %s12, 1
    %p160 = por %p158, %p159
    %p161 = scmp.ne.s32.totalorder %s153, %s156
    %p162 = scmp.eq.s32.totalorder %s12, 0
    %p163 = por %p161, %p162
    %p164 = scmp.ne.s32.totalorder %s153, %s156
    %p165 = scmp.eq.s32.totalorder %s17, 1
    %p166 = por %p164, %p165
    %p167 = scmp.ne.s32.totalorder %s156, %s157
    %p168 = scmp.eq.s32.totalorder %s17, 0
    %p169 = por %p167, %p168
    %p170 = scmp.ne.s32.totalorder %s156, %s157
    %p171 = scmp.eq.s32.totalorder %s18, 1
    %p172 = por %p170, %p171
    %p174 = scmp.ne.s32.totalorder %s157, %s173
    %p175 = scmp.eq.s32.totalorder %s18, 0
    %p176 = por %p174, %p175
    %p177 = scmp.le.s32.totalorder 1, %s12
    %p178 = scmp.lt.s32.totalorder %s12, 3
    %p179 = pnand %p177, %p178
    %p180 = pneg %p179
    // Predicated region
    $region9: #{_lambda_.5} parent=5 // pred_check
      _
    $region10: #{_lambda_.5} parent=5 // pred_check_branch
      %182 = sbr.rel (%p179) target = $region12
    $region11: #{_lambda_.5} parent=5 // pred_region
      %s183 = ssub.s32 %s12, 1
      // Predicated region
      $region13: #{_lambda_.5} parent=11 // pred_check
        %p184 = pneg %p59
      $region14: #{_lambda_.5} parent=11 // pred_check_branch
        %186 = sbr.rel (%p184) target = $region16
      $region15: #{_lambda_.5} parent=11 // pred_region
        _
      $region16: #{_lambda_.5} parent=11 // pred_fallthru
        _
      // Predicated region
      $region17: #{_lambda_.5} parent=11 // pred_check
        %p187 = pneg %p80
      $region18: #{_lambda_.5} parent=11 // pred_check_branch
        %189 = sbr.rel (%p187) target = $region20
      $region19: #{_lambda_.5} parent=11 // pred_region
        _
      $region20: #{_lambda_.5} parent=11 // pred_fallthru
        _
      // Predicated region
      $region21: #{_lambda_.5} parent=11 // pred_check
        %p190 = pneg %p101
      $region22: #{_lambda_.5} parent=11 // pred_check_branch
        %192 = sbr.rel (%p190) target = $region24
      $region23: #{_lambda_.5} parent=11 // pred_region
        _
      $region24: #{_lambda_.5} parent=11 // pred_fallthru
        _
      // Predicated region
      $region25: #{_lambda_.5} parent=11 // pred_check
        %p193 = pneg %p122
      $region26: #{_lambda_.5} parent=11 // pred_check_branch
        %195 = sbr.rel (%p193) target = $region28
      $region27: #{_lambda_.5} parent=11 // pred_region
        _
      $region28: #{_lambda_.5} parent=11 // pred_fallthru
        _
      // Predicated region
      $region29: #{_lambda_.5} parent=11 // pred_check
        %p196 = pneg %p143
      $region30: #{_lambda_.5} parent=11 // pred_check_branch
        %198 = sbr.rel (%p196) target = $region32
      $region31: #{_lambda_.5} parent=11 // pred_region
        _
      $region32: #{_lambda_.5} parent=11 // pred_fallthru
        _
    $region12: #{_lambda_.5} parent=5 // pred_fallthru
      _
    %p199 = scmp.lt.s32.totalorder %s12, 2
    // Predicated region
    $region33: #{_lambda_.5} parent=5 // pred_check
      %p200 = pneg %p199
    $region34: #{_lambda_.5} parent=5 // pred_check_branch
      %202 = sbr.rel (%p200) target = $region36
    $region35: #{_lambda_.5} parent=5 // pred_region
      // Predicated region
      $region37: #{_lambda_.5} parent=35 // pred_check
        %p203 = pneg %p32
      $region38: #{_lambda_.5} parent=35 // pred_check_branch
        %205 = sbr.rel (%p203) target = $region40
      $region39: #{_lambda_.5} parent=35 // pred_region
        %p206 = scmp.lt.s32.totalorder %s12, 1
        %s207 = scalar_select %p206, %s12, 1
        %s208 = smul.addr %s207, 2
        %s209 = smul.addr %s208, 2
        %s210 = scalar_lea.vmem %s0, %s209
      $region40: #{_lambda_.5} parent=35 // pred_fallthru
        _
    $region36: #{_lambda_.5} parent=5 // pred_fallthru
      _
    %p211 = scmp.le.s32.totalorder 1, %s12
    %p212 = scmp.lt.s32.totalorder %s12, 3
    %p213 = pnand %p211, %p212
    %p214 = pneg %p213
    // Predicated region
    $region41: #{_lambda_.5} parent=5 // pred_check
      _
    $region42: #{_lambda_.5} parent=5 // pred_check_branch
      %216 = sbr.rel (%p213) target = $region44
    $region43: #{_lambda_.5} parent=5 // pred_region
      %s217 = ssub.s32 %s12, 1
      %p218 = scmp.lt.s32.totalorder %s17, 1
      %s219 = scalar_select %p218, %s17, 1
      %s220 = smul.addr %s219, 2
      %s221 = smul.addr %s220, 2
      %s222 = scalar_lea.vmem %s0, %s221
      %p223 = pneg %p38
      %p224 = pneg %p35
      %p225 = pneg %p59
      %p226 = pneg %p56
      %p227 = pneg %p80
      %p228 = pneg %p77
      %p229 = pneg %p101
      %p230 = pneg %p98
      %p231 = pneg %p122
      %p232 = pneg %p119
      %p233 = pneg %p143
      %p234 = pneg %p140
      %p235 = pneg %p169
      %p236 = pneg %p166
      %p237 = scmp.lt.s32.totalorder %s17, 1
      %s238 = scalar_select %p237, %s17, 1
      %s239 = smul.addr %s238, 8
      %s240 = scalar_lea.vmem %s6, %s239
      %p241 = scmp.lt.s32.totalorder %s17, 1
      %s242 = scalar_select %p241, %s17, 1
      %s243 = smul.addr %s242, 2
      %s244 = smul.addr %s243, 2
      %s245 = scalar_lea.vmem %s0, %s244
      %p246 = scmp.lt.s32.totalorder %s17, 1
      %s247 = scalar_select %p246, %s17, 1
      %s248 = smul.addr %s247, 8
      %s249 = scalar_lea.vmem %s6, %s248
      %v251 = vld [vmem:[%s245] sm:$0xf]
      %v252 = vld [vmem:[%s1] sm:$0xf]
      %v253 = vld [vmem:[%s1 + $0x4] sm:$0xf]
      %v254 = vld [vmem:[%s1 + $0x8] sm:$0xf]
      %v255 = vld [vmem:[%s1 + $0xc] sm:$0xf]
      %v256 = vld [vmem:[%s1 + $0x10] sm:$0xf]
      %v257 = vld [vmem:[%s1 + $0x14] sm:$0xf]
      %v258 = vld [vmem:[%s1 + $0x18] sm:$0xf]
      %v259 = vld [vmem:[%s1 + $0x1c] sm:$0xf]
      %v260 = vld [vmem:[%s1 + $0x20] sm:$0xf]
      %v261 = vld [vmem:[%s1 + $0x24] sm:$0xf]
      %v262 = vld [vmem:[%s1 + $0x28] sm:$0xf]
      %v263 = vld [vmem:[%s1 + $0x2c] sm:$0xf]
      %v264 = vld [vmem:[%s1 + $0x30] sm:$0xf]
      %v265 = vld [vmem:[%s1 + $0x34] sm:$0xf]
      %v266 = vld [vmem:[%s1 + $0x38] sm:$0xf]
      %v267 = vld [vmem:[%s1 + $0x3c] sm:$0xf]
      %v268 = vld [vmem:[%s1 + $0x40] sm:$0xf]
      %v269 = vld [vmem:[%s1 + $0x44] sm:$0xf]
      %v270 = vld [vmem:[%s1 + $0x48] sm:$0xf]
      %v271 = vld [vmem:[%s1 + $0x4c] sm:$0xf]
      %v272 = vld [vmem:[%s1 + $0x50] sm:$0xf]
      %v273 = vld [vmem:[%s1 + $0x54] sm:$0xf]
      %v274 = vld [vmem:[%s1 + $0x58] sm:$0xf]
      %v275 = vld [vmem:[%s1 + $0x5c] sm:$0xf]
      %v278 = vunpack.c.l.s4 1983009808
      %v279 = vunpack.c.0.s8 %v278
      %v280 = vlaneseq
      %v281 = vshrl.u32 %v280, 7
      %v282 = vsub.s32 %v279, %v281
      %v283 = vrot.slane %v251, %v282
      %v284 = vcombine.high %v283, %v283
      %v310 = vunpack.c.l.b16 %v252
      %v311 = vunpack.c.l.b16 %v253
      %v312 = vunpack.c.l.b16 %v254
      %v313 = vunpack.c.l.b16 %v255
      %v314 = vunpack.c.l.b16 %v256
      %v315 = vunpack.c.l.b16 %v257
      %v316 = vunpack.c.l.b16 %v258
      %v317 = vunpack.c.l.b16 %v259
      %v318 = vunpack.c.l.b16 %v260
      %v319 = vunpack.c.l.b16 %v261
      %v320 = vunpack.c.l.b16 %v262
      %v321 = vunpack.c.l.b16 %v263
      %v322 = vunpack.c.l.b16 %v264
      %v323 = vunpack.c.l.b16 %v265
      %v324 = vunpack.c.l.b16 %v266
      %v325 = vunpack.c.l.b16 %v267
      %v326 = vunpack.c.l.b16 %v268
      %v327 = vunpack.c.l.b16 %v269
      %v328 = vunpack.c.l.b16 %v270
      %v329 = vunpack.c.l.b16 %v271
      %v330 = vunpack.c.l.b16 %v272
      %v331 = vunpack.c.l.b16 %v273
      %v332 = vunpack.c.l.b16 %v274
      %v333 = vunpack.c.l.b16 %v275
      %v334 = vpack.c.b16 %v311, %v310
      %v335 = vpack.c.b16 %v313, %v312
      %v336 = vpack.c.b16 %v315, %v314
      %v337 = vpack.c.b16 %v317, %v316
      %v338 = vpack.c.b16 %v319, %v318
      %v339 = vpack.c.b16 %v321, %v320
      %v340 = vpack.c.b16 %v323, %v322
      %v341 = vpack.c.b16 %v325, %v324
      %v342 = vpack.c.b16 %v327, %v326
      %v343 = vpack.c.b16 %v329, %v328
      %v344 = vpack.c.b16 %v331, %v330
      %v345 = vpack.c.b16 %v333, %v332
      %vm358 = vcmask 523264
      %v360 = vsel %vm358, %v284, 0
      %362 = vmatprep.subr.bf16.mxu0 0
      %363 = vmatpush1.bf16.msra.mxu0 %v341
      %364 = vmatprep.subr.bf16.mxu0 0
      %365 = vmatpush1.bf16.msra.mxu0 %v340
      %366 = vmatprep.subr.bf16.mxu0 0
      %367 = vmatpush1.bf16.msra.mxu0 %v339
      %368 = vmatprep.subr.bf16.mxu0 0
      %369 = vmatpush1.bf16.msra.mxu0 %v338
      %370 = vmatprep.subr.bf16.mxu0 0
      %371 = vmatpush1.bf16.msra.mxu0 %v337
      %372 = vmatprep.subr.bf16.mxu0 0
      %373 = vmatpush1.bf16.msra.mxu0 %v336
      %374 = vmatprep.subr.bf16.mxu0 0
      %375 = vmatpush1.bf16.msra.mxu0 %v335
      %376 = vmatprep.subr.bf16.mxu0 0
      %377 = vmatpush1.bf16.msra.mxu0 %v334
      %378 = vmatprep.subr.bf16.mxu0 0
      %379 = vmatpush2.bf16.msra.mxu0 0
      %380 = vmatprep.subr.bf16.mxu0 0
      %381 = vmatpush2.bf16.msra.mxu0 0
      %382 = vmatprep.subr.bf16.mxu0 0
      %383 = vmatpush2.bf16.msra.mxu0 0
      %384 = vmatprep.subr.bf16.mxu0 0
      %385 = vmatpush2.bf16.msra.mxu0 0
      %386 = vmatprep.subr.bf16.mxu0 0
      %387 = vmatpush2.bf16.msra.mxu0 %v345
      %388 = vmatprep.subr.bf16.mxu0 0
      %389 = vmatpush2.bf16.msra.mxu0 %v344
      %390 = vmatprep.subr.bf16.mxu0 0
      %391 = vmatpush2.bf16.msra.mxu0 %v343
      %392 = vmatprep.subr.bf16.mxu0 0
      %393 = vmatpush2.bf16.msra.mxu0 %v342
      %394 = vmatprep.mubr.bf16.mxu0 %v360
      %395 = vmatmul.mubr.bf16.gmra.mxu0 %v283
      %v396 = vpop.f32.mrf.mxu0
      %v397 = vadd.f32 0.0, %v396
      %v398 = vpop.f32.mrf.mxu0
      %v399 = vpop.f32.mrf.mxu0
      %v400 = vpop.f32.mrf.mxu0
      %401 = vdwg.mxu0
      %v402 = vld [vmem:[%s2] sm:$0x1]
      %v404 = vrot.slane %v397, 7
      %vm406 = vcmask 1040384
      %v407 = vsel %vm406, %v402, %v404
      %v408 = vld [vmem:[%s3] sm:$0x1f]
      %v409 = vadd.f32 %v407, %v408
      %v410 = vld [vmem:[%s4] sm:$0x1]
      %v411 = vld [vmem:[%s5] sm:$0x1]
      %vm412 = vcmask 258048
      %v413 = vsel %vm412, %v409, 0.0
      %414 = vadd.xlane.f32.xlu0 %v413
      %v415 = vpop.xlane.xlu0 %414
      %v416 = vrcp.pop 32.0
      %v417 = vmul.f32 %v415, %v416
      %v418 = vsub.f32 %v409, %v417
      %v419 = vmul.f32 %v418, %v418
      %v420 = vsel %vm412, %v419, 0.0
      %421 = vadd.xlane.f32.xlu0 %v420
      %v422 = vpop.xlane.xlu0 %421
      %v423 = vmul.f32 %v422, %v416
      %v424 = vadd.f32 %v423, 1e-05
      %v425 = vrsqrt.pop %v424
      %v426 = vmul.f32 %v418, %v425
      %v428 = vlaneseq
      %v429 = vshrl.u32 %v428, 7
      %v430 = vsub.s32 0, %v429
      %v431 = vrot.slane %v410, %v430
      %v433 = vmul.f32 %v426, %v431
      %v435 = vlaneseq
      %v436 = vshrl.u32 %v435, 7
      %v437 = vsub.s32 0, %v436
      %v438 = vrot.slane %v411, %v437
      %v440 = vadd.f32 %v433, %v438
      %441 = vst.msk [vmem:[%s249] sm:$0x1f] %vm412, %v440
      %p442 = scmp.lt.s32.totalorder %s17, 1
      %s443 = scalar_select %p442, %s17, 1
      %s444 = smul.addr %s443, 8
      %s445 = scalar_lea.vmem %s6, %s444
      // Predicated region
      $region45: #{_lambda_.5} parent=43 // pred_check
        %p446 = pneg %p166
      $region46: #{_lambda_.5} parent=43 // pred_check_branch
        %448 = sbr.rel (%p446) target = $region48
      $region47: #{_lambda_.5} parent=43 // pred_region
        _
      $region48: #{_lambda_.5} parent=43 // pred_fallthru
        _
    $region44: #{_lambda_.5} parent=5 // pred_fallthru
      _
    %p449 = scmp.le.s32.totalorder 2, %s12
    // Predicated region
    $region49: #{_lambda_.5} parent=5 // pred_check
      %p450 = pneg %p449
    $region50: #{_lambda_.5} parent=5 // pred_check_branch
      %452 = sbr.rel (%p450) target = $region52
    $region51: #{_lambda_.5} parent=5 // pred_region
      %s453 = ssub.s32 %s12, 2
      // Predicated region
      $region53: #{_lambda_.5} parent=51 // pred_check
        %p454 = pneg %p172
      $region54: #{_lambda_.5} parent=51 // pred_check_branch
        %456 = sbr.rel (%p454) target = $region56
      $region55: #{_lambda_.5} parent=51 // pred_region
        %p457 = scmp.lt.s32.totalorder %s18, 1
        %s458 = scalar_select %p457, %s18, 1
        %s459 = smul.addr %s458, 8
        %s460 = scalar_lea.vmem %s6, %s459
      $region56: #{_lambda_.5} parent=51 // pred_fallthru
        _
    $region52: #{_lambda_.5} parent=5 // pred_fallthru
      _
  $region6: #{_lambda_.5} parent=0 // loop_footer
    %s16 = sadd.s32 1, %s12
  $region7: #{_lambda_.5} parent=0 // loop_footer_branch
    %11 = sbr.rel target = $region3
  $region8: #{_lambda_.5} parent=0 // loop_exit
    _

// kernel: _lambda_.7
$region0: #{_lambda_.7}
  #allocation0 [shape = 'u32[]', space=smem, size = 0x4, offset = 0x4, fixed_abs, tag = 'smem constant byte address 0x4 - core index']
  #allocation1 [shape = 'u32[144,128]{1,0:T(1,128)}', space=vmem, size = 0x12000, scoped, tag = 'internal scratch']
  #allocation2 [shape = 'bf16[5,32]{1,0:T(8,128)(2,1)}', space=vmem, size = 0x800, scoped, tag = 'scratch operand']
  %s0 = inlined_call_operand.vmem [shape: f32[2,5,32], index: 0, kind: input, shape index: {}, may-alias: {0,12}]
  %s1 = inlined_call_operand.vmem [shape: bf16[2,3,5,32], index: 1, kind: input, shape index: {}, may-alias: {1,2,3}]
  %s2 = inlined_call_operand.vmem [shape: bf16[2,3,5,32], index: 2, kind: input, shape index: {}, may-alias: {1,2,3}]
  %s3 = inlined_call_operand.vmem [shape: bf16[2,3,5,32], index: 3, kind: input, shape index: {}, may-alias: {1,2,3}]
  %s4 = inlined_call_operand.vmem [shape: bf16[32,32], index: 4, kind: input, shape index: {}]
  %s5 = inlined_call_operand.vmem [shape: f32[1,32], index: 5, kind: input, shape index: {}]
  %s6 = inlined_call_operand.vmem [shape: f32[1,32], index: 6, kind: input, shape index: {}]
  %s7 = inlined_call_operand.vmem [shape: f32[1,32], index: 7, kind: input, shape index: {}]
  %s8 = inlined_call_operand.vmem [shape: bf16[32,128], index: 8, kind: input, shape index: {}]
  %s9 = inlined_call_operand.vmem [shape: f32[1,128], index: 9, kind: input, shape index: {}]
  %s10 = inlined_call_operand.vmem [shape: bf16[128,32], index: 10, kind: input, shape index: {}]
  %s11 = inlined_call_operand.vmem [shape: f32[1,32], index: 11, kind: input, shape index: {}]
  %s12 = inlined_call_operand.vmem [shape: f32[2,5,32], index: 12, kind: output, shape index: {}, may-alias: {0,12}]
  %s13 = sld [smem:[#allocation0]]
  $region81: #{_lambda_.7} parent=0
    _
  %s15 = ssub.s32 1, %s13
  %s16 = scalar_select 0, %s15, %s13
  loop: start=0, step=1, limit=4
  $region2: #{_lambda_.7} parent=0 // loop_pre_header
    _
  $region3: #{_lambda_.7} parent=0 // loop_header
    %s18 = sphi 0, %s22
    %p19 = scmp.ge.s32.totalorder %s18, 4
    %s25 = sphi 0, %s37
    %s26 = sphi 0, %s33
    %s27 = sphi 0, %s25
    %s28 = sphi 0, %s26
    %s29 = sphi 0, %s27
    %s30 = sphi 0, %s28
    %s42 = sphi 0, %s44
    %s45 = sphi 0, %s42
    %s46 = sphi 0, %s45
    %s62 = sphi 0, %s46
    %s70 = sphi 0, %s72
    %s73 = sphi 0, %s70
    %s74 = sphi 0, %s73
    %s90 = sphi 0, %s74
    %s96 = sphi 0, %s98
    %s99 = sphi 0, %s96
    %s100 = sphi 0, %s99
    %s116 = sphi 0, %s100
    %s122 = sphi 0, %s124
    %s125 = sphi 0, %s122
    %s126 = sphi 0, %s125
    %s142 = sphi 0, %s126
    %s146 = sphi 0, %s146
    %s148 = sphi 0, %s146
    %s149 = sphi 0, %s148
    %s163 = sphi 0, %s149
    %s167 = sphi 0, %s167
    %s169 = sphi 0, %s167
    %s170 = sphi 0, %s169
    %s184 = sphi 0, %s170
    %s188 = sphi 0, %s188
    %s190 = sphi 0, %s188
    %s191 = sphi 0, %s190
    %s205 = sphi 0, %s191
    %s209 = sphi 0, %s209
    %s211 = sphi 0, %s209
    %s212 = sphi 0, %s211
    %s226 = sphi 0, %s212
    %s230 = sphi 0, %s230
    %s232 = sphi 0, %s230
    %s233 = sphi 0, %s232
    %s247 = sphi 0, %s233
    %s251 = sphi 0, %s251
    %s253 = sphi 0, %s251
    %s254 = sphi 0, %s253
    %s268 = sphi 0, %s254
    %s272 = sphi 0, %s272
    %s274 = sphi 0, %s272
    %s275 = sphi 0, %s274
    %s289 = sphi 0, %s275
    %s293 = sphi 0, %s293
    %s295 = sphi 0, %s293
    %s296 = sphi 0, %s295
    %s310 = sphi 0, %s296
    %s318 = sphi 0, %s320
    %s321 = sphi 0, %s318
    %s322 = sphi 0, %s321
    %s338 = sphi 0, %s322
  $region4: #{_lambda_.7} parent=0 // loop_header_branch
    %21 = sbr.rel (%p19) target = $region8
  $region5: #{_lambda_.7} parent=0 // loop_body
    %s23 = ssub.s32 %s18, 1
    %s24 = ssub.s32 %s18, 2
    %s31 = sadd.s32 1, %s26
    %p32 = scmp.ge.s32.totalorder %s31, 1
    %s33 = scalar_select %p32, 0, %s31
    %s34 = sadd.s32 1, %s25
    %s35 = scalar_select %p32, %s34, %s25
    %p36 = scmp.ge.s32.totalorder %s35, 2
    %s37 = scalar_select %p36, 0, %s35
    %s38 = ssub.s32 %s25, %s37
    %s39 = ssub.s32 %s26, %s33
    %s40 = sor.u32 %s38, %s39
    %p41 = scmp.eq.s32.totalorder %s40, 0
    %s43 = sadd.s32 %s42, 1
    %s44 = scalar_select %p41, %s42, %s43
    %p47 = pneg %p41
    %p48 = scmp.eq.s32.totalorder %s18, 1
    %p49 = por %p47, %p48
    %p50 = scmp.ne.s32.totalorder %s42, %s45
    %p51 = scmp.eq.s32.totalorder %s18, 0
    %p52 = por %p50, %p51
    %p53 = scmp.ne.s32.totalorder %s42, %s45
    %p54 = scmp.eq.s32.totalorder %s23, 1
    %p55 = por %p53, %p54
    %p56 = scmp.ne.s32.totalorder %s45, %s46
    %p57 = scmp.eq.s32.totalorder %s23, 0
    %p58 = por %p56, %p57
    %p59 = scmp.ne.s32.totalorder %s45, %s46
    %p60 = scmp.eq.s32.totalorder %s24, 1
    %p61 = por %p59, %p60
    %p63 = scmp.ne.s32.totalorder %s46, %s62
    %p64 = scmp.eq.s32.totalorder %s24, 0
    %p65 = por %p63, %p64
    %s66 = ssub.s32 %s25, %s37
    %s67 = ssub.s32 %s26, %s33
    %s68 = sor.u32 %s66, %s67
    %p69 = scmp.eq.s32.totalorder %s68, 0
    %s71 = sadd.s32 %s70, 1
    %s72 = scalar_select %p69, %s70, %s71
    %p75 = pneg %p69
    %p76 = scmp.eq.s32.totalorder %s18, 1
    %p77 = por %p75, %p76
    %p78 = scmp.ne.s32.totalorder %s70, %s73
    %p79 = scmp.eq.s32.totalorder %s18, 0
    %p80 = por %p78, %p79
    %p81 = scmp.ne.s32.totalorder %s70, %s73
    %p82 = scmp.eq.s32.totalorder %s23, 1
    %p83 = por %p81, %p82
    %p84 = scmp.ne.s32.totalorder %s73, %s74
    %p85 = scmp.eq.s32.totalorder %s23, 0
    %p86 = por %p84, %p85
    %p87 = scmp.ne.s32.totalorder %s73, %s74
    %p88 = scmp.eq.s32.totalorder %s24, 1
    %p89 = por %p87, %p88
    %p91 = scmp.ne.s32.totalorder %s74, %s90
    %p92 = scmp.eq.s32.totalorder %s24, 0
    %p93 = por %p91, %p92
    %s94 = ssub.s32 %s25, %s37
    %p95 = scmp.eq.s32.totalorder %s94, 0
    %s97 = sadd.s32 %s96, 1
    %s98 = scalar_select %p95, %s96, %s97
    %p101 = pneg %p95
    %p102 = scmp.eq.s32.totalorder %s18, 1
    %p103 = por %p101, %p102
    %p104 = scmp.ne.s32.totalorder %s96, %s99
    %p105 = scmp.eq.s32.totalorder %s18, 0
    %p106 = por %p104, %p105
    %p107 = scmp.ne.s32.totalorder %s96, %s99
    %p108 = scmp.eq.s32.totalorder %s23, 1
    %p109 = por %p107, %p108
    %p110 = scmp.ne.s32.totalorder %s99, %s100
    %p111 = scmp.eq.s32.totalorder %s23, 0
    %p112 = por %p110, %p111
    %p113 = scmp.ne.s32.totalorder %s99, %s100
    %p114 = scmp.eq.s32.totalorder %s24, 1
    %p115 = por %p113, %p114
    %p117 = scmp.ne.s32.totalorder %s100, %s116
    %p118 = scmp.eq.s32.totalorder %s24, 0
    %p119 = por %p117, %p118
    %s120 = ssub.s32 %s25, %s37
    %p121 = scmp.eq.s32.totalorder %s120, 0
    %s123 = sadd.s32 %s122, 1
    %s124 = scalar_select %p121, %s122, %s123
    %p127 = pneg %p121
    %p128 = scmp.eq.s32.totalorder %s18, 1
    %p129 = por %p127, %p128
    %p130 = scmp.ne.s32.totalorder %s122, %s125
    %p131 = scmp.eq.s32.totalorder %s18, 0
    %p132 = por %p130, %p131
    %p133 = scmp.ne.s32.totalorder %s122, %s125
    %p134 = scmp.eq.s32.totalorder %s23, 1
    %p135 = por %p133, %p134
    %p136 = scmp.ne.s32.totalorder %s125, %s126
    %p137 = scmp.eq.s32.totalorder %s23, 0
    %p138 = por %p136, %p137
    %p139 = scmp.ne.s32.totalorder %s125, %s126
    %p140 = scmp.eq.s32.totalorder %s24, 1
    %p141 = por %p139, %p140
    %p143 = scmp.ne.s32.totalorder %s126, %s142
    %p144 = scmp.eq.s32.totalorder %s24, 0
    %p145 = por %p143, %p144
    %s147 = sadd.s32 %s146, 1
    %p150 = scmp.eq.s32.totalorder %s18, 1
    %p151 = scmp.ne.s32.totalorder %s146, %s148
    %p152 = scmp.eq.s32.totalorder %s18, 0
    %p153 = por %p151, %p152
    %p154 = scmp.ne.s32.totalorder %s146, %s148
    %p155 = scmp.eq.s32.totalorder %s23, 1
    %p156 = por %p154, %p155
    %p157 = scmp.ne.s32.totalorder %s148, %s149
    %p158 = scmp.eq.s32.totalorder %s23, 0
    %p159 = por %p157, %p158
    %p160 = scmp.ne.s32.totalorder %s148, %s149
    %p161 = scmp.eq.s32.totalorder %s24, 1
    %p162 = por %p160, %p161
    %p164 = scmp.ne.s32.totalorder %s149, %s163
    %p165 = scmp.eq.s32.totalorder %s24, 0
    %p166 = por %p164, %p165
    %s168 = sadd.s32 %s167, 1
    %p171 = scmp.eq.s32.totalorder %s18, 1
    %p172 = scmp.ne.s32.totalorder %s167, %s169
    %p173 = scmp.eq.s32.totalorder %s18, 0
    %p174 = por %p172, %p173
    %p175 = scmp.ne.s32.totalorder %s167, %s169
    %p176 = scmp.eq.s32.totalorder %s23, 1
    %p177 = por %p175, %p176
    %p178 = scmp.ne.s32.totalorder %s169, %s170
    %p179 = scmp.eq.s32.totalorder %s23, 0
    %p180 = por %p178, %p179
    %p181 = scmp.ne.s32.totalorder %s169, %s170
    %p182 = scmp.eq.s32.totalorder %s24, 1
    %p183 = por %p181, %p182
    %p185 = scmp.ne.s32.totalorder %s170, %s184
    %p186 = scmp.eq.s32.totalorder %s24, 0
    %p187 = por %p185, %p186
    %s189 = sadd.s32 %s188, 1
    %p192 = scmp.eq.s32.totalorder %s18, 1
    %p193 = scmp.ne.s32.totalorder %s188, %s190
    %p194 = scmp.eq.s32.totalorder %s18, 0
    %p195 = por %p193, %p194
    %p196 = scmp.ne.s32.totalorder %s188, %s190
    %p197 = scmp.eq.s32.totalorder %s23, 1
    %p198 = por %p196, %p197
    %p199 = scmp.ne.s32.totalorder %s190, %s191
    %p200 = scmp.eq.s32.totalorder %s23, 0
    %p201 = por %p199, %p200
    %p202 = scmp.ne.s32.totalorder %s190, %s191
    %p203 = scmp.eq.s32.totalorder %s24, 1
    %p204 = por %p202, %p203
    %p206 = scmp.ne.s32.totalorder %s191, %s205
    %p207 = scmp.eq.s32.totalorder %s24, 0
    %p208 = por %p206, %p207
    %s210 = sadd.s32 %s209, 1
    %p213 = scmp.eq.s32.totalorder %s18, 1
    %p214 = scmp.ne.s32.totalorder %s209, %s211
    %p215 = scmp.eq.s32.totalorder %s18, 0
    %p216 = por %p214, %p215
    %p217 = scmp.ne.s32.totalorder %s209, %s211
    %p218 = scmp.eq.s32.totalorder %s23, 1
    %p219 = por %p217, %p218
    %p220 = scmp.ne.s32.totalorder %s211, %s212
    %p221 = scmp.eq.s32.totalorder %s23, 0
    %p222 = por %p220, %p221
    %p223 = scmp.ne.s32.totalorder %s211, %s212
    %p224 = scmp.eq.s32.totalorder %s24, 1
    %p225 = por %p223, %p224
    %p227 = scmp.ne.s32.totalorder %s212, %s226
    %p228 = scmp.eq.s32.totalorder %s24, 0
    %p229 = por %p227, %p228
    %s231 = sadd.s32 %s230, 1
    %p234 = scmp.eq.s32.totalorder %s18, 1
    %p235 = scmp.ne.s32.totalorder %s230, %s232
    %p236 = scmp.eq.s32.totalorder %s18, 0
    %p237 = por %p235, %p236
    %p238 = scmp.ne.s32.totalorder %s230, %s232
    %p239 = scmp.eq.s32.totalorder %s23, 1
    %p240 = por %p238, %p239
    %p241 = scmp.ne.s32.totalorder %s232, %s233
    %p242 = scmp.eq.s32.totalorder %s23, 0
    %p243 = por %p241, %p242
    %p244 = scmp.ne.s32.totalorder %s232, %s233
    %p245 = scmp.eq.s32.totalorder %s24, 1
    %p246 = por %p244, %p245
    %p248 = scmp.ne.s32.totalorder %s233, %s247
    %p249 = scmp.eq.s32.totalorder %s24, 0
    %p250 = por %p248, %p249
    %s252 = sadd.s32 %s251, 1
    %p255 = scmp.eq.s32.totalorder %s18, 1
    %p256 = scmp.ne.s32.totalorder %s251, %s253
    %p257 = scmp.eq.s32.totalorder %s18, 0
    %p258 = por %p256, %p257
    %p259 = scmp.ne.s32.totalorder %s251, %s253
    %p260 = scmp.eq.s32.totalorder %s23, 1
    %p261 = por %p259, %p260
    %p262 = scmp.ne.s32.totalorder %s253, %s254
    %p263 = scmp.eq.s32.totalorder %s23, 0
    %p264 = por %p262, %p263
    %p265 = scmp.ne.s32.totalorder %s253, %s254
    %p266 = scmp.eq.s32.totalorder %s24, 1
    %p267 = por %p265, %p266
    %p269 = scmp.ne.s32.totalorder %s254, %s268
    %p270 = scmp.eq.s32.totalorder %s24, 0
    %p271 = por %p269, %p270
    %s273 = sadd.s32 %s272, 1
    %p276 = scmp.eq.s32.totalorder %s18, 1
    %p277 = scmp.ne.s32.totalorder %s272, %s274
    %p278 = scmp.eq.s32.totalorder %s18, 0
    %p279 = por %p277, %p278
    %p280 = scmp.ne.s32.totalorder %s272, %s274
    %p281 = scmp.eq.s32.totalorder %s23, 1
    %p282 = por %p280, %p281
    %p283 = scmp.ne.s32.totalorder %s274, %s275
    %p284 = scmp.eq.s32.totalorder %s23, 0
    %p285 = por %p283, %p284
    %p286 = scmp.ne.s32.totalorder %s274, %s275
    %p287 = scmp.eq.s32.totalorder %s24, 1
    %p288 = por %p286, %p287
    %p290 = scmp.ne.s32.totalorder %s275, %s289
    %p291 = scmp.eq.s32.totalorder %s24, 0
    %p292 = por %p290, %p291
    %s294 = sadd.s32 %s293, 1
    %p297 = scmp.eq.s32.totalorder %s18, 1
    %p298 = scmp.ne.s32.totalorder %s293, %s295
    %p299 = scmp.eq.s32.totalorder %s18, 0
    %p300 = por %p298, %p299
    %p301 = scmp.ne.s32.totalorder %s293, %s295
    %p302 = scmp.eq.s32.totalorder %s23, 1
    %p303 = por %p301, %p302
    %p304 = scmp.ne.s32.totalorder %s295, %s296
    %p305 = scmp.eq.s32.totalorder %s23, 0
    %p306 = por %p304, %p305
    %p307 = scmp.ne.s32.totalorder %s295, %s296
    %p308 = scmp.eq.s32.totalorder %s24, 1
    %p309 = por %p307, %p308
    %p311 = scmp.ne.s32.totalorder %s296, %s310
    %p312 = scmp.eq.s32.totalorder %s24, 0
    %p313 = por %p311, %p312
    %s314 = ssub.s32 %s25, %s37
    %s315 = ssub.s32 %s26, %s33
    %s316 = sor.u32 %s314, %s315
    %p317 = scmp.eq.s32.totalorder %s316, 0
    %s319 = sadd.s32 %s318, 1
    %s320 = scalar_select %p317, %s318, %s319
    %p323 = pneg %p317
    %p324 = scmp.eq.s32.totalorder %s18, 1
    %p325 = por %p323, %p324
    %p326 = scmp.ne.s32.totalorder %s318, %s321
    %p327 = scmp.eq.s32.totalorder %s18, 0
    %p328 = por %p326, %p327
    %p329 = scmp.ne.s32.totalorder %s318, %s321
    %p330 = scmp.eq.s32.totalorder %s23, 1
    %p331 = por %p329, %p330
    %p332 = scmp.ne.s32.totalorder %s321, %s322
    %p333 = scmp.eq.s32.totalorder %s23, 0
    %p334 = por %p332, %p333
    %p335 = scmp.ne.s32.totalorder %s321, %s322
    %p336 = scmp.eq.s32.totalorder %s24, 1
    %p337 = por %p335, %p336
    %p339 = scmp.ne.s32.totalorder %s322, %s338
    %p340 = scmp.eq.s32.totalorder %s24, 0
    %p341 = por %p339, %p340
    %p342 = scmp.le.s32.totalorder 1, %s18
    %p343 = scmp.lt.s32.totalorder %s18, 3
    %p344 = pnand %p342, %p343
    %p345 = pneg %p344
    // Predicated region
    $region9: #{_lambda_.7} parent=5 // pred_check
      _
    $region10: #{_lambda_.7} parent=5 // pred_check_branch
      %347 = sbr.rel (%p344) target = $region12
    $region11: #{_lambda_.7} parent=5 // pred_region
      %s348 = ssub.s32 %s18, 1
      // Predicated region
      $region13: #{_lambda_.7} parent=11 // pred_check
        %p349 = pneg %p159
      $region14: #{_lambda_.7} parent=11 // pred_check_branch
        %351 = sbr.rel (%p349) target = $region16
      $region15: #{_lambda_.7} parent=11 // pred_region
        _
      $region16: #{_lambda_.7} parent=11 // pred_fallthru
        _
      // Predicated region
      $region17: #{_lambda_.7} parent=11 // pred_check
        %p352 = pneg %p180
      $region18: #{_lambda_.7} parent=11 // pred_check_branch
        %354 = sbr.rel (%p352) target = $region20
      $region19: #{_lambda_.7} parent=11 // pred_region
        _
      $region20: #{_lambda_.7} parent=11 // pred_fallthru
        _
      // Predicated region
      $region21: #{_lambda_.7} parent=11 // pred_check
        %p355 = pneg %p201
      $region22: #{_lambda_.7} parent=11 // pred_check_branch
        %357 = sbr.rel (%p355) target = $region24
      $region23: #{_lambda_.7} parent=11 // pred_region
        _
      $region24: #{_lambda_.7} parent=11 // pred_fallthru
        _
      // Predicated region
      $region25: #{_lambda_.7} parent=11 // pred_check
        %p358 = pneg %p222
      $region26: #{_lambda_.7} parent=11 // pred_check_branch
        %360 = sbr.rel (%p358) target = $region28
      $region27: #{_lambda_.7} parent=11 // pred_region
        _
      $region28: #{_lambda_.7} parent=11 // pred_fallthru
        _
      // Predicated region
      $region29: #{_lambda_.7} parent=11 // pred_check
        %p361 = pneg %p243
      $region30: #{_lambda_.7} parent=11 // pred_check_branch
        %363 = sbr.rel (%p361) target = $region32
      $region31: #{_lambda_.7} parent=11 // pred_region
        _
      $region32: #{_lambda_.7} parent=11 // pred_fallthru
        _
      // Predicated region
      $region33: #{_lambda_.7} parent=11 // pred_check
        %p364 = pneg %p264
      $region34: #{_lambda_.7} parent=11 // pred_check_branch
        %366 = sbr.rel (%p364) target = $region36
      $region35: #{_lambda_.7} parent=11 // pred_region
        _
      $region36: #{_lambda_.7} parent=11 // pred_fallthru
        _
      // Predicated region
      $region37: #{_lambda_.7} parent=11 // pred_check
        %p367 = pneg %p285
      $region38: #{_lambda_.7} parent=11 // pred_check_branch
        %369 = sbr.rel (%p367) target = $region40
      $region39: #{_lambda_.7} parent=11 // pred_region
        _
      $region40: #{_lambda_.7} parent=11 // pred_fallthru
        _
      // Predicated region
      $region41: #{_lambda_.7} parent=11 // pred_check
        %p370 = pneg %p306
      $region42: #{_lambda_.7} parent=11 // pred_check_branch
        %372 = sbr.rel (%p370) target = $region44
      $region43: #{_lambda_.7} parent=11 // pred_region
        _
      $region44: #{_lambda_.7} parent=11 // pred_fallthru
        _
    $region12: #{_lambda_.7} parent=5 // pred_fallthru
      _
    %p373 = scmp.lt.s32.totalorder %s18, 2
    // Predicated region
    $region45: #{_lambda_.7} parent=5 // pred_check
      %p374 = pneg %p373
    $region46: #{_lambda_.7} parent=5 // pred_check_branch
      %376 = sbr.rel (%p374) target = $region48
    $region47: #{_lambda_.7} parent=5 // pred_region
      // Predicated region
      $region49: #{_lambda_.7} parent=47 // pred_check
        %p377 = pneg %p52
      $region50: #{_lambda_.7} parent=47 // pred_check_branch
        %379 = sbr.rel (%p377) target = $region52
      $region51: #{_lambda_.7} parent=47 // pred_region
        %p380 = scmp.lt.s32.totalorder %s25, 1
        %s381 = scalar_select %p380, %s25, 1
        %p382 = scmp.lt.s32.totalorder %s26, 0
        %s383 = scalar_select %p382, %s26, 0
        %s384 = sadd.s32 %s383, %s381
        %s385 = smul.addr %s384, 8
        %s386 = scalar_lea.vmem %s0, %s385
      $region52: #{_lambda_.7} parent=47 // pred_fallthru
        _
      // Predicated region
      $region53: #{_lambda_.7} parent=47 // pred_check
        %p387 = pneg %p80
      $region54: #{_lambda_.7} parent=47 // pred_check_branch
        %389 = sbr.rel (%p387) target = $region56
      $region55: #{_lambda_.7} parent=47 // pred_region
        %p390 = scmp.lt.s32.totalorder %s25, 1
        %s391 = scalar_select %p390, %s25, 1
        %p392 = scmp.lt.s32.totalorder %s26, 0
        %s393 = scalar_select %p392, %s26, 0
        %s394 = smul.addr %s391, 3
        %s395 = sadd.s32 %s393, %s394
        %s396 = smul.addr %s395, 4
        %s397 = scalar_lea.vmem %s1, %s396
      $region56: #{_lambda_.7} parent=47 // pred_fallthru
        _
      // Predicated region
      $region57: #{_lambda_.7} parent=47 // pred_check
        %p398 = pneg %p106
      $region58: #{_lambda_.7} parent=47 // pred_check_branch
        %400 = sbr.rel (%p398) target = $region60
      $region59: #{_lambda_.7} parent=47 // pred_region
        %p401 = scmp.lt.s32.totalorder %s25, 1
        %s402 = scalar_select %p401, %s25, 1
        %s403 = smul.addr %s402, 3
        %s404 = sadd.s32 1, %s403
        %s405 = smul.addr %s404, 4
        %s406 = scalar_lea.vmem %s2, %s405
      $region60: #{_lambda_.7} parent=47 // pred_fallthru
        _
      // Predicated region
      $region61: #{_lambda_.7} parent=47 // pred_check
        %p407 = pneg %p132
      $region62: #{_lambda_.7} parent=47 // pred_check_branch
        %409 = sbr.rel (%p407) target = $region64
      $region63: #{_lambda_.7} parent=47 // pred_region
        %p410 = scmp.lt.s32.totalorder %s25, 1
        %s411 = scalar_select %p410, %s25, 1
        %s412 = smul.addr %s411, 3
        %s413 = sadd.s32 2, %s412
        %s414 = smul.addr %s413, 4
        %s415 = scalar_lea.vmem %s3, %s414
      $region64: #{_lambda_.7} parent=47 // pred_fallthru
        _
    $region48: #{_lambda_.7} parent=5 // pred_fallthru
      _
    %p416 = scmp.le.s32.totalorder 1, %s18
    %p417 = scmp.lt.s32.totalorder %s18, 3
    %p418 = pnand %p416, %p417
    %p419 = pneg %p418
    // Predicated region
    $region65: #{_lambda_.7} parent=5 // pred_check
      _
    $region66: #{_lambda_.7} parent=5 // pred_check_branch
      %421 = sbr.rel (%p418) target = $region68
    $region67: #{_lambda_.7} parent=5 // pred_region
      %s422 = ssub.s32 %s18, 1
      %p423 = scmp.lt.s32.totalorder %s27, 1
      %s424 = scalar_select %p423, %s27, 1
      %p425 = scmp.lt.s32.totalorder %s28, 0
      %s426 = scalar_select %p425, %s28, 0
      %s427 = sadd.s32 %s426, %s424
      %s428 = smul.addr %s427, 8
      %s429 = scalar_lea.vmem %s0, %s428
      %p430 = pneg %p58
      %p431 = pneg %p55
      %p432 = scmp.lt.s32.totalorder %s27, 1
      %s433 = scalar_select %p432, %s27, 1
      %p434 = scmp.lt.s32.totalorder %s28, 0
      %s435 = scalar_select %p434, %s28, 0
      %s436 = smul.addr %s433, 3
      %s437 = sadd.s32 %s435, %s436
      %s438 = smul.addr %s437, 4
      %s439 = scalar_lea.vmem %s1, %s438
      %p440 = pneg %p86
      %p441 = pneg %p83
      %p442 = scmp.lt.s32.totalorder %s27, 1
      %s443 = scalar_select %p442, %s27, 1
      %s444 = smul.addr %s443, 3
      %s445 = sadd.s32 1, %s444
      %s446 = smul.addr %s445, 4
      %s447 = scalar_lea.vmem %s2, %s446
      %p448 = pneg %p112
      %p449 = pneg %p109
      %p450 = scmp.lt.s32.totalorder %s27, 1
      %s451 = scalar_select %p450, %s27, 1
      %s452 = smul.addr %s451, 3
      %s453 = sadd.s32 2, %s452
      %s454 = smul.addr %s453, 4
      %s455 = scalar_lea.vmem %s3, %s454
      %p456 = pneg %p138
      %p457 = pneg %p135
      %p458 = pneg %p159
      %p459 = pneg %p156
      %p460 = pneg %p180
      %p461 = pneg %p177
      %p462 = pneg %p201
      %p463 = pneg %p198
      %p464 = pneg %p222
      %p465 = pneg %p219
      %p466 = pneg %p243
      %p467 = pneg %p240
      %p468 = pneg %p264
      %p469 = pneg %p261
      %p470 = pneg %p285
      %p471 = pneg %p282
      %p472 = pneg %p306
      %p473 = pneg %p303
      %p474 = pneg %p334
      %p475 = pneg %p331
      %p476 = scmp.lt.s32.totalorder %s27, 1
      %s477 = scalar_select %p476, %s27, 1
      %p478 = scmp.lt.s32.totalorder %s28, 0
      %s479 = scalar_select %p478, %s28, 0
      %s480 = sadd.s32 %s479, %s477
      %s481 = smul.addr %s480, 8
      %s482 = scalar_lea.vmem %s12, %s481
      %p483 = scmp.lt.s32.totalorder %s27, 1
      %s484 = scalar_select %p483, %s27, 1
      %p485 = scmp.lt.s32.totalorder %s28, 0
      %s486 = scalar_select %p485, %s28, 0
      %s487 = sadd.s32 %s486, %s484
      %s488 = smul.addr %s487, 8
      %s489 = scalar_lea.vmem %s0, %s488
      %p490 = scmp.lt.s32.totalorder %s27, 1
      %s491 = scalar_select %p490, %s27, 1
      %p492 = scmp.lt.s32.totalorder %s28, 0
      %s493 = scalar_select %p492, %s28, 0
      %s494 = smul.addr %s491, 3
      %s495 = sadd.s32 %s493, %s494
      %s496 = smul.addr %s495, 4
      %s497 = scalar_lea.vmem %s1, %s496
      %p498 = scmp.lt.s32.totalorder %s27, 1
      %s499 = scalar_select %p498, %s27, 1
      %s500 = smul.addr %s499, 3
      %s501 = sadd.s32 1, %s500
      %s502 = smul.addr %s501, 4
      %s503 = scalar_lea.vmem %s2, %s502
      %p504 = scmp.lt.s32.totalorder %s27, 1
      %s505 = scalar_select %p504, %s27, 1
      %s506 = smul.addr %s505, 3
      %s507 = sadd.s32 2, %s506
      %s508 = smul.addr %s507, 4
      %s509 = scalar_lea.vmem %s3, %s508
      %p510 = scmp.lt.s32.totalorder %s27, 1
      %s511 = scalar_select %p510, %s27, 1
      %p512 = scmp.lt.s32.totalorder %s28, 0
      %s513 = scalar_select %p512, %s28, 0
      %s514 = sadd.s32 %s513, %s511
      %s515 = smul.addr %s514, 8
      %s516 = scalar_lea.vmem %s12, %s515
      %v520 = vld [vmem:[%s489] sm:$0x1f]
      %v521 = vld [vmem:[%s497] sm:$0x7]
      %v522 = vld [vmem:[%s503] sm:$0x7]
      %v523 = vld [vmem:[%s509] sm:$0x7]
      %vm524 = vcmask 64512
      %v526 = vsel %vm524, %v521, 0
      %v529 = vsel %vm524, %v522, 0
      %531 = vmatprep.subr.bf16.mxu0 0
      %532 = vmatpush1.bf16.xpose.msra.mxu0 0
      %533 = vmatprep.subr.bf16.mxu0 0
      %534 = vmatpush1.bf16.xpose.msra.mxu0 0
      %535 = vmatprep.subr.bf16.mxu0 0
      %536 = vmatpush1.bf16.xpose.msra.mxu0 0
      %537 = vmatprep.subr.bf16.mxu0 0
      %538 = vmatpush1.bf16.xpose.msra.mxu0 0
      %539 = vmatprep.subr.bf16.mxu0 0
      %540 = vmatpush1.bf16.xpose.msra.mxu0 0
      %541 = vmatprep.subr.bf16.mxu0 0
      %542 = vmatpush1.bf16.xpose.msra.mxu0 0
      %543 = vmatprep.subr.bf16.mxu0 0
      %544 = vmatpush1.bf16.xpose.msra.mxu0 0
      %545 = vmatprep.subr.bf16.mxu0 0
      %546 = vmatpush1.bf16.xpose.msra.mxu0 %v529
      %547 = vmatprep.subr.bf16.mxu0 0
      %548 = vmatpush2.bf16.xpose.msra.mxu0 0
      %549 = vmatprep.subr.bf16.mxu0 0
      %550 = vmatpush2.bf16.xpose.msra.mxu0 0
      %551 = vmatprep.subr.bf16.mxu0 0
      %552 = vmatpush2.bf16.xpose.msra.mxu0 0
      %553 = vmatprep.subr.bf16.mxu0 0
      %554 = vmatpush2.bf16.xpose.msra.mxu0 0
      %555 = vmatprep.subr.bf16.mxu0 0
      %556 = vmatpush2.bf16.xpose.msra.mxu0 0
      %557 = vmatprep.subr.bf16.mxu0 0
      %558 = vmatpush2.bf16.xpose.msra.mxu0 0
      %559 = vmatprep.subr.bf16.mxu0 0
      %560 = vmatpush2.bf16.xpose.msra.mxu0 0
      %561 = vmatprep.subr.bf16.mxu0 0
      %562 = vmatpush2.bf16.xpose.msra.mxu0 0
      %563 = vmatprep.mubr.bf16.mxu0 0
      %564 = vmatmul.mubr.bf16.gmra.mxu0 %v526
      %v565 = vpop.f32.mrf.mxu0
      %v566 = vadd.f32 0.0, %v565
      %v567 = vpop.f32.mrf.mxu0
      %v568 = vpop.f32.mrf.mxu0
      %v569 = vpop.f32.mrf.mxu0
      %570 = vdwg.mxu0
      %v571 = vmul.f32 %v566, 0.35355338
      %vm572 = vcmask 36864
      %v573 = vsel %vm572, %v571, -inf
      %574 = vmax.xlane.f32.xlu0 %v573
      %v575 = vpop.xlane.xlu0 %574
      %v576 = vsub.f32 %v571, %v575
      %v577 = vmul.f32 %v576, 1.442695
      %v578 = vpow.pop %v577
      %v579 = vsel %vm572, %v578, 0.0
      %580 = vadd.xlane.f32.xlu0 %v579
      %v581 = vpop.xlane.xlu0 %580
      %v582 = vrcp.pop %v581
      %v583 = vmul.f32 %v578, %v582
      %v584 = vpack.c.bf16 %v583, %v583
      %vm585 = vcmask 39936
      %v587 = vsel %vm585, %v584, 0
      %vm589 = vcmask 1041408
      %vm590 = vcmask 1042432
      %v591 = vsel %vm589, 4294967295, 65535
      %v592 = vsel %vm590, %v591, 0
      %v594 = vand.u32 %v523, %v592
      %596 = vmatprep.subr.bf16.mxu0 0
      %597 = vmatpush1.bf16.msra.mxu0 0
      %598 = vmatprep.subr.bf16.mxu0 0
      %599 = vmatpush1.bf16.msra.mxu0 0
      %600 = vmatprep.subr.bf16.mxu0 0
      %601 = vmatpush1.bf16.msra.mxu0 0
      %602 = vmatprep.subr.bf16.mxu0 0
      %603 = vmatpush1.bf16.msra.mxu0 0
      %604 = vmatprep.subr.bf16.mxu0 0
      %605 = vmatpush1.bf16.msra.mxu0 0
      %606 = vmatprep.subr.bf16.mxu0 0
      %607 = vmatpush1.bf16.msra.mxu0 0
      %608 = vmatprep.subr.bf16.mxu0 0
      %609 = vmatpush1.bf16.msra.mxu0 0
      %610 = vmatprep.subr.bf16.mxu0 0
      %611 = vmatpush1.bf16.msra.mxu0 %v594
      %612 = vmatprep.subr.bf16.mxu0 0
      %613 = vmatpush2.bf16.msra.mxu0 0
      %614 = vmatprep.subr.bf16.mxu0 0
      %615 = vmatpush2.bf16.msra.mxu0 0
      %616 = vmatprep.subr.bf16.mxu0 0
      %617 = vmatpush2.bf16.msra.mxu0 0
      %618 = vmatprep.subr.bf16.mxu0 0
      %619 = vmatpush2.bf16.msra.mxu0 0
      %620 = vmatprep.subr.bf16.mxu0 0
      %621 = vmatpush2.bf16.msra.mxu0 0
      %622 = vmatprep.subr.bf16.mxu0 0
      %623 = vmatpush2.bf16.msra.mxu0 0
      %624 = vmatprep.subr.bf16.mxu0 0
      %625 = vmatpush2.bf16.msra.mxu0 0
      %626 = vmatprep.subr.bf16.mxu0 0
      %627 = vmatpush2.bf16.msra.mxu0 0
      %628 = vmatprep.mubr.bf16.mxu0 0
      %629 = vmatmul.mubr.bf16.gmra.mxu0 %v587
      %v630 = vpop.f32.mrf.mxu0
      %v631 = vadd.f32 0.0, %v630
      %v632 = vpop.f32.mrf.mxu0
      %v633 = vpop.f32.mrf.mxu0
      %v634 = vpop.f32.mrf.mxu0
      %635 = vdwg.mxu0
      %v636 = vpack.c.bf16 %v631, %v631
      %vm637 = vcmask 59392
      %vm638 = vsmask.f32 2304
      %vm639 = vmand %vm637, %vm638
      %v640 = vld [vmem:[#allocation2] sm:$0x7]
      %v641 = vsel %vm639, %v636, %v640
      %642 = vst [vmem:[#allocation2] sm:$0x7] %v641
      %v644 = vunpack.c.l.b16 %v521
      %v645 = vpack.c.b16 %v644, %v644
      %646 = vrot.lane.b32.xlu0 %v645, 120
      %v647 = vpop.permute.xlu0 %646
      %v649 = vunpack.c.l.b16 %v522
      %v650 = vpack.c.b16 %v649, %v649
      %651 = vrot.lane.b32.xlu0 %v650, 120
      %v652 = vpop.permute.xlu0 %651
      %v654 = vsel %vm524, %v647, 0
      %v657 = vsel %vm524, %v652, 0
      %659 = vmatprep.subr.bf16.mxu0 0
      %660 = vmatpush1.bf16.xpose.msra.mxu0 0
      %661 = vmatprep.subr.bf16.mxu0 0
      %662 = vmatpush1.bf16.xpose.msra.mxu0 0
      %663 = vmatprep.subr.bf16.mxu0 0
      %664 = vmatpush1.bf16.xpose.msra.mxu0 0
      %665 = vmatprep.subr.bf16.mxu0 0
      %666 = vmatpush1.bf16.xpose.msra.mxu0 0
      %667 = vmatprep.subr.bf16.mxu0 0
      %668 = vmatpush1.bf16.xpose.msra.mxu0 0
      %669 = vmatprep.subr.bf16.mxu0 0
      %670 = vmatpush1.bf16.xpose.msra.mxu0 0
      %671 = vmatprep.subr.bf16.mxu0 0
      %672 = vmatpush1.bf16.xpose.msra.mxu0 0
      %673 = vmatprep.subr.bf16.mxu0 0
      %674 = vmatpush1.bf16.xpose.msra.mxu0 %v657
      %675 = vmatprep.subr.bf16.mxu0 0
      %676 = vmatpush2.bf16.xpose.msra.mxu0 0
      %677 = vmatprep.subr.bf16.mxu0 0
      %678 = vmatpush2.bf16.xpose.msra.mxu0 0
      %679 = vmatprep.subr.bf16.mxu0 0
      %680 = vmatpush2.bf16.xpose.msra.mxu0 0
      %681 = vmatprep.subr.bf16.mxu0 0
      %682 = vmatpush2.bf16.xpose.msra.mxu0 0
      %683 = vmatprep.subr.bf16.mxu0 0
      %684 = vmatpush2.bf16.xpose.msra.mxu0 0
      %685 = vmatprep.subr.bf16.mxu0 0
      %686 = vmatpush2.bf16.xpose.msra.mxu0 0
      %687 = vmatprep.subr.bf16.mxu0 0
      %688 = vmatpush2.bf16.xpose.msra.mxu0 0
      %689 = vmatprep.subr.bf16.mxu0 0
      %690 = vmatpush2.bf16.xpose.msra.mxu0 0
      %691 = vmatprep.mubr.bf16.mxu0 0
      %692 = vmatmul.mubr.bf16.gmra.mxu0 %v654
      %v693 = vpop.f32.mrf.mxu0
      %v694 = vadd.f32 0.0, %v693
      %v695 = vpop.f32.mrf.mxu0
      %v696 = vpop.f32.mrf.mxu0
      %v697 = vpop.f32.mrf.mxu0
      %698 = vdwg.mxu0
      %v699 = vmul.f32 %v694, 0.35355338
      %v700 = vsel %vm572, %v699, -inf
      %701 = vmax.xlane.f32.xlu0 %v700
      %v702 = vpop.xlane.xlu0 %701
      %v703 = vsub.f32 %v699, %v702
      %v704 = vmul.f32 %v703, 1.442695
      %v705 = vpow.pop %v704
      %v706 = vsel %vm572, %v705, 0.0
      %707 = vadd.xlane.f32.xlu0 %v706
      %v708 = vpop.xlane.xlu0 %707
      %v709 = vrcp.pop %v708
      %v710 = vmul.f32 %v705, %v709
      %v711 = vpack.c.bf16 %v710, %v710
      %v713 = vunpack.c.l.b16 %v523
      %v714 = vpack.c.b16 %v713, %v713
      %715 = vrot.lane.b32.xlu0 %v714, 120
      %v716 = vpop.permute.xlu0 %715
      %v718 = vsel %vm585, %v711, 0
      %v721 = vand.u32 %v716, %v592
      %723 = vmatprep.subr.bf16.mxu0 0
      %724 = vmatpush1.bf16.msra.mxu0 0
      %725 = vmatprep.subr.bf16.mxu0 0
      %726 = vmatpush1.bf16.msra.mxu0 0
      %727 = vmatprep.subr.bf16.mxu0 0
      %728 = vmatpush1.bf16.msra.mxu0 0
      %729 = vmatprep.subr.bf16.mxu0 0
      %730 = vmatpush1.bf16.msra.mxu0 0
      %731 = vmatprep.subr.bf16.mxu0 0
      %732 = vmatpush1.bf16.msra.mxu0 0
      %733 = vmatprep.subr.bf16.mxu0 0
      %734 = vmatpush1.bf16.msra.mxu0 0
      %735 = vmatprep.subr.bf16.mxu0 0
      %736 = vmatpush1.bf16.msra.mxu0 0
      %737 = vmatprep.subr.bf16.mxu0 0
      %738 = vmatpush1.bf16.msra.mxu0 %v721
      %739 = vmatprep.subr.bf16.mxu0 0
      %740 = vmatpush2.bf16.msra.mxu0 0
      %741 = vmatprep.subr.bf16.mxu0 0
      %742 = vmatpush2.bf16.msra.mxu0 0
      %743 = vmatprep.subr.bf16.mxu0 0
      %744 = vmatpush2.bf16.msra.mxu0 0
      %745 = vmatprep.subr.bf16.mxu0 0
      %746 = vmatpush2.bf16.msra.mxu0 0
      %747 = vmatprep.subr.bf16.mxu0 0
      %748 = vmatpush2.bf16.msra.mxu0 0
      %749 = vmatprep.subr.bf16.mxu0 0
      %750 = vmatpush2.bf16.msra.mxu0 0
      %751 = vmatprep.subr.bf16.mxu0 0
      %752 = vmatpush2.bf16.msra.mxu0 0
      %753 = vmatprep.subr.bf16.mxu0 0
      %754 = vmatpush2.bf16.msra.mxu0 0
      %755 = vmatprep.mubr.bf16.mxu0 0
      %756 = vmatmul.mubr.bf16.gmra.mxu0 %v718
      %v757 = vpop.f32.mrf.mxu0
      %v758 = vadd.f32 0.0, %v757
      %v759 = vpop.f32.mrf.mxu0
      %v760 = vpop.f32.mrf.mxu0
      %v761 = vpop.f32.mrf.mxu0
      %762 = vdwg.mxu0
      %v763 = vpack.c.bf16 %v758, %v758
      %v765 = vunpack.c.l.b16 %v763
      %v766 = vpack.c.b16 %v765, %v765
      %767 = vrot.lane.b32.xlu0 %v766, 8
      %v768 = vpop.permute.xlu0 %767
      %vm770 = vcmask 124992
      %vm771 = vmand %vm770, %vm638
      %v772 = vld [vmem:[#allocation2] sm:$0x7]
      %v773 = vsel %vm771, %v768, %v772
      %774 = vst [vmem:[#allocation2] sm:$0x7] %v773
      %775 = vrot.lane.b32.xlu0 %v645, 112
      %v776 = vpop.permute.xlu0 %775
      %777 = vrot.lane.b32.xlu0 %v650, 112
      %v778 = vpop.permute.xlu0 %777
      %v780 = vsel %vm524, %v776, 0
      %v783 = vsel %vm524, %v778, 0
      %785 = vmatprep.subr.bf16.mxu0 0
      %786 = vmatpush1.bf16.xpose.msra.mxu0 0
      %787 = vmatprep.subr.bf16.mxu0 0
      %788 = vmatpush1.bf16.xpose.msra.mxu0 0
      %789 = vmatprep.subr.bf16.mxu0 0
      %790 = vmatpush1.bf16.xpose.msra.mxu0 0
      %791 = vmatprep.subr.bf16.mxu0 0
      %792 = vmatpush1.bf16.xpose.msra.mxu0 0
      %793 = vmatprep.subr.bf16.mxu0 0
      %794 = vmatpush1.bf16.xpose.msra.mxu0 0
      %795 = vmatprep.subr.bf16.mxu0 0
      %796 = vmatpush1.bf16.xpose.msra.mxu0 0
      %797 = vmatprep.subr.bf16.mxu0 0
      %798 = vmatpush1.bf16.xpose.msra.mxu0 0
      %799 = vmatprep.subr.bf16.mxu0 0
      %800 = vmatpush1.bf16.xpose.msra.mxu0 %v783
      %801 = vmatprep.subr.bf16.mxu0 0
      %802 = vmatpush2.bf16.xpose.msra.mxu0 0
      %803 = vmatprep.subr.bf16.mxu0 0
      %804 = vmatpush2.bf16.xpose.msra.mxu0 0
      %805 = vmatprep.subr.bf16.mxu0 0
      %806 = vmatpush2.bf16.xpose.msra.mxu0 0
      %807 = vmatprep.subr.bf16.mxu0 0
      %808 = vmatpush2.bf16.xpose.msra.mxu0 0
      %809 = vmatprep.subr.bf16.mxu0 0
      %810 = vmatpush2.bf16.xpose.msra.mxu0 0
      %811 = vmatprep.subr.bf16.mxu0 0
      %812 = vmatpush2.bf16.xpose.msra.mxu0 0
      %813 = vmatprep.subr.bf16.mxu0 0
      %814 = vmatpush2.bf16.xpose.msra.mxu0 0
      %815 = vmatprep.subr.bf16.mxu0 0
      %816 = vmatpush2.bf16.xpose.msra.mxu0 0
      %817 = vmatprep.mubr.bf16.mxu0 0
      %818 = vmatmul.mubr.bf16.gmra.mxu0 %v780
      %v819 = vpop.f32.mrf.mxu0
      %v820 = vadd.f32 0.0, %v819
      %v821 = vpop.f32.mrf.mxu0
      %v822 = vpop.f32.mrf.mxu0
      %v823 = vpop.f32.mrf.mxu0
      %824 = vdwg.mxu0
      %v825 = vmul.f32 %v820, 0.35355338
      %v826 = vsel %vm572, %v825, -inf
      %827 = vmax.xlane.f32.xlu0 %v826
      %v828 = vpop.xlane.xlu0 %827
      %v829 = vsub.f32 %v825, %v828
      %v830 = vmul.f32 %v829, 1.442695
      %v831 = vpow.pop %v830
      %v832 = vsel %vm572, %v831, 0.0
      %833 = vadd.xlane.f32.xlu0 %v832
      %v834 = vpop.xlane.xlu0 %833
      %v835 = vrcp.pop %v834
      %v836 = vmul.f32 %v831, %v835
      %v837 = vpack.c.bf16 %v836, %v836
      %838 = vrot.lane.b32.xlu0 %v714, 112
      %v839 = vpop.permute.xlu0 %838
      %v841 = vsel %vm585, %v837, 0
      %v844 = vand.u32 %v839, %v592
      %846 = vmatprep.subr.bf16.mxu0 0
      %847 = vmatpush1.bf16.msra.mxu0 0
      %848 = vmatprep.subr.bf16.mxu0 0
      %849 = vmatpush1.bf16.msra.mxu0 0
      %850 = vmatprep.subr.bf16.mxu0 0
      %851 = vmatpush1.bf16.msra.mxu0 0
      %852 = vmatprep.subr.bf16.mxu0 0
      %853 = vmatpush1.bf16.msra.mxu0 0
      %854 = vmatprep.subr.bf16.mxu0 0
      %855 = vmatpush1.bf16.msra.mxu0 0
      %856 = vmatprep.subr.bf16.mxu0 0
      %857 = vmatpush1.bf16.msra.mxu0 0
      %858 = vmatprep.subr.bf16.mxu0 0
      %859 = vmatpush1.bf16.msra.mxu0 0
      %860 = vmatprep.subr.bf16.mxu0 0
      %861 = vmatpush1.bf16.msra.mxu0 %v844
      %862 = vmatprep.subr.bf16.mxu0 0
      %863 = vmatpush2.bf16.msra.mxu0 0
      %864 = vmatprep.subr.bf16.mxu0 0
      %865 = vmatpush2.bf16.msra.mxu0 0
      %866 = vmatprep.subr.bf16.mxu0 0
      %867 = vmatpush2.bf16.msra.mxu0 0
      %868 = vmatprep.subr.bf16.mxu0 0
      %869 = vmatpush2.bf16.msra.mxu0 0
      %870 = vmatprep.subr.bf16.mxu0 0
      %871 = vmatpush2.bf16.msra.mxu0 0
      %872 = vmatprep.subr.bf16.mxu0 0
      %873 = vmatpush2.bf16.msra.mxu0 0
      %874 = vmatprep.subr.bf16.mxu0 0
      %875 = vmatpush2.bf16.msra.mxu0 0
      %876 = vmatprep.subr.bf16.mxu0 0
      %877 = vmatpush2.bf16.msra.mxu0 0
      %878 = vmatprep.mubr.bf16.mxu0 0
      %879 = vmatmul.mubr.bf16.gmra.mxu0 %v841
      %v880 = vpop.f32.mrf.mxu0
      %v881 = vadd.f32 0.0, %v880
      %v882 = vpop.f32.mrf.mxu0
      %v883 = vpop.f32.mrf.mxu0
      %v884 = vpop.f32.mrf.mxu0
      %885 = vdwg.mxu0
      %v886 = vpack.c.bf16 %v881, %v881
      %v888 = vunpack.c.l.b16 %v886
      %v889 = vpack.c.b16 %v888, %v888
      %890 = vrot.lane.b32.xlu0 %v889, 16
      %v891 = vpop.permute.xlu0 %890
      %vm893 = vcmask 190592
      %vm894 = vmand %vm893, %vm638
      %v895 = vld [vmem:[#allocation2] sm:$0x7]
      %v896 = vsel %vm894, %v891, %v895
      %897 = vst [vmem:[#allocation2] sm:$0x7] %v896
      %898 = vrot.lane.b32.xlu0 %v645, 104
      %v899 = vpop.permute.xlu0 %898
      %900 = vrot.lane.b32.xlu0 %v650, 104
      %v901 = vpop.permute.xlu0 %900
      %v903 = vsel %vm524, %v899, 0
      %v906 = vsel %vm524, %v901, 0
      %908 = vmatprep.subr.bf16.mxu0 0
      %909 = vmatpush1.bf16.xpose.msra.mxu0 0
      %910 = vmatprep.subr.bf16.mxu0 0
      %911 = vmatpush1.bf16.xpose.msra.mxu0 0
      %912 = vmatprep.subr.bf16.mxu0 0
      %913 = vmatpush1.bf16.xpose.msra.mxu0 0
      %914 = vmatprep.subr.bf16.mxu0 0
      %915 = vmatpush1.bf16.xpose.msra.mxu0 0
      %916 = vmatprep.subr.bf16.mxu0 0
      %917 = vmatpush1.bf16.xpose.msra.mxu0 0
      %918 = vmatprep.subr.bf16.mxu0 0
      %919 = vmatpush1.bf16.xpose.msra.mxu0 0
      %920 = vmatprep.subr.bf16.mxu0 0
      %921 = vmatpush1.bf16.xpose.msra.mxu0 0
      %922 = vmatprep.subr.bf16.mxu0 0
      %923 = vmatpush1.bf16.xpose.msra.mxu0 %v906
      %924 = vmatprep.subr.bf16.mxu0 0
      %925 = vmatpush2.bf16.xpose.msra.mxu0 0
      %926 = vmatprep.subr.bf16.mxu0 0
      %927 = vmatpush2.bf16.xpose.msra.mxu0 0
      %928 = vmatprep.subr.bf16.mxu0 0
      %929 = vmatpush2.bf16.xpose.msra.mxu0 0
      %930 = vmatprep.subr.bf16.mxu0 0
      %931 = vmatpush2.bf16.xpose.msra.mxu0 0
      %932 = vmatprep.subr.bf16.mxu0 0
      %933 = vmatpush2.bf16.xpose.msra.mxu0 0
      %934 = vmatprep.subr.bf16.mxu0 0
      %935 = vmatpush2.bf16.xpose.msra.mxu0 0
      %936 = vmatprep.subr.bf16.mxu0 0
      %937 = vmatpush2.bf16.xpose.msra.mxu0 0
      %938 = vmatprep.subr.bf16.mxu0 0
      %939 = vmatpush2.bf16.xpose.msra.mxu0 0
      %940 = vmatprep.mubr.bf16.mxu0 0
      %941 = vmatmul.mubr.bf16.gmra.mxu0 %v903
      %v942 = vpop.f32.mrf.mxu0
      %v943 = vadd.f32 0.0, %v942
      %v944 = vpop.f32.mrf.mxu0
      %v945 = vpop.f32.mrf.mxu0
      %v946 = vpop.f32.mrf.mxu0
      %947 = vdwg.mxu0
      %v948 = vmul.f32 %v943, 0.35355338
      %v949 = vsel %vm572, %v948, -inf
      %950 = vmax.xlane.f32.xlu0 %v949
      %v951 = vpop.xlane.xlu0 %950
      %v952 = vsub.f32 %v948, %v951
      %v953 = vmul.f32 %v952, 1.442695
      %v954 = vpow.pop %v953
      %v955 = vsel %vm572, %v954, 0.0
      %956 = vadd.xlane.f32.xlu0 %v955
      %v957 = vpop.xlane.xlu0 %956
      %v958 = vrcp.pop %v957
      %v959 = vmul.f32 %v954, %v958
      %v960 = vpack.c.bf16 %v959, %v959
      %961 = vrot.lane.b32.xlu0 %v714, 104
      %v962 = vpop.permute.xlu0 %961
      %v964 = vsel %vm585, %v960, 0
      %v967 = vand.u32 %v962, %v592
      %969 = vmatprep.subr.bf16.mxu0 0
      %970 = vmatpush1.bf16.msra.mxu0 0
      %971 = vmatprep.subr.bf16.mxu0 0
      %972 = vmatpush1.bf16.msra.mxu0 0
      %973 = vmatprep.subr.bf16.mxu0 0
      %974 = vmatpush1.bf16.msra.mxu0 0
      %975 = vmatprep.subr.bf16.mxu0 0
      %976 = vmatpush1.bf16.msra.mxu0 0
      %977 = vmatprep.subr.bf16.mxu0 0
      %978 = vmatpush1.bf16.msra.mxu0 0
      %979 = vmatprep.subr.bf16.mxu0 0
      %980 = vmatpush1.bf16.msra.mxu0 0
      %981 = vmatprep.subr.bf16.mxu0 0
      %982 = vmatpush1.bf16.msra.mxu0 0
      %983 = vmatprep.subr.bf16.mxu0 0
      %984 = vmatpush1.bf16.msra.mxu0 %v967
      %985 = vmatprep.subr.bf16.mxu0 0
      %986 = vmatpush2.bf16.msra.mxu0 0
      %987 = vmatprep.subr.bf16.mxu0 0
      %988 = vmatpush2.bf16.msra.mxu0 0
      %989 = vmatprep.subr.bf16.mxu0 0
      %990 = vmatpush2.bf16.msra.mxu0 0
      %991 = vmatprep.subr.bf16.mxu0 0
      %992 = vmatpush2.bf16.msra.mxu0 0
      %993 = vmatprep.subr.bf16.mxu0 0
      %994 = vmatpush2.bf16.msra.mxu0 0
      %995 = vmatprep.subr.bf16.mxu0 0
      %996 = vmatpush2.bf16.msra.mxu0 0
      %997 = vmatprep.subr.bf16.mxu0 0
      %998 = vmatpush2.bf16.msra.mxu0 0
      %999 = vmatprep.subr.bf16.mxu0 0
      %1000 = vmatpush2.bf16.msra.mxu0 0
      %1001 = vmatprep.mubr.bf16.mxu0 0
      %1002 = vmatmul.mubr.bf16.gmra.mxu0 %v964
      %v1003 = vpop.f32.mrf.mxu0
      %v1004 = vadd.f32 0.0, %v1003
      %v1005 = vpop.f32.mrf.mxu0
      %v1006 = vpop.f32.mrf.mxu0
      %v1007 = vpop.f32.mrf.mxu0
      %1008 = vdwg.mxu0
      %v1009 = vpack.c.bf16 %v1004, %v1004
      %v1011 = vunpack.c.l.b16 %v1009
      %v1012 = vpack.c.b16 %v1011, %v1011
      %1013 = vrot.lane.b32.xlu0 %v1012, 24
      %v1014 = vpop.permute.xlu0 %1013
      %vm1016 = vcmask 256192
      %vm1017 = vmand %vm1016, %vm638
      %v1018 = vld [vmem:[#allocation2] sm:$0x7]
      %v1019 = vsel %vm1017, %v1014, %v1018
      %1020 = vst [vmem:[#allocation2] sm:$0x7] %v1019
      %v1021 = vld [vmem:[#allocation2] sm:$0x7]
      %v1022 = vld [vmem:[%s4] sm:$0xf]
      %v1023 = vld [vmem:[%s4 + $0x4] sm:$0xf]
      %v1024 = vld [vmem:[%s4 + $0x8] sm:$0xf]
      %v1025 = vld [vmem:[%s4 + $0xc] sm:$0xf]
      %v1026 = vld [vmem:[%s5] sm:$0x1]
      %v1028 = vlaneseq
      %v1029 = vshrl.u32 %v1028, 7
      %v1030 = vsub.s32 0, %v1029
      %v1031 = vrot.slane %v1026, %v1030
      %v1037 = vunpack.c.l.b16 %v1022
      %v1038 = vunpack.c.l.b16 %v1023
      %v1039 = vunpack.c.l.b16 %v1024
      %v1040 = vunpack.c.l.b16 %v1025
      %v1041 = vpack.c.b16 %v1038, %v1037
      %v1042 = vpack.c.b16 %v1040, %v1039
      %vm1045 = vcmask 261120
      %v1047 = vsel %vm1045, %v1021, 0
      %1049 = vmatprep.subr.bf16.mxu0 0
      %1050 = vmatpush1.bf16.msra.mxu0 0
      %1051 = vmatprep.subr.bf16.mxu0 0
      %1052 = vmatpush1.bf16.msra.mxu0 0
      %1053 = vmatprep.subr.bf16.mxu0 0
      %1054 = vmatpush1.bf16.msra.mxu0 0
      %1055 = vmatprep.subr.bf16.mxu0 0
      %1056 = vmatpush1.bf16.msra.mxu0 0
      %1057 = vmatprep.subr.bf16.mxu0 0
      %1058 = vmatpush1.bf16.msra.mxu0 0
      %1059 = vmatprep.subr.bf16.mxu0 0
      %1060 = vmatpush1.bf16.msra.mxu0 0
      %1061 = vmatprep.subr.bf16.mxu0 0
      %1062 = vmatpush1.bf16.msra.mxu0 %v1042
      %1063 = vmatprep.subr.bf16.mxu0 0
      %1064 = vmatpush1.bf16.msra.mxu0 %v1041
      %1065 = vmatprep.subr.bf16.mxu0 0
      %1066 = vmatpush2.bf16.msra.mxu0 0
      %1067 = vmatprep.subr.bf16.mxu0 0
      %1068 = vmatpush2.bf16.msra.mxu0 0
      %1069 = vmatprep.subr.bf16.mxu0 0
      %1070 = vmatpush2.bf16.msra.mxu0 0
      %1071 = vmatprep.subr.bf16.mxu0 0
      %1072 = vmatpush2.bf16.msra.mxu0 0
      %1073 = vmatprep.subr.bf16.mxu0 0
      %1074 = vmatpush2.bf16.msra.mxu0 0
      %1075 = vmatprep.subr.bf16.mxu0 0
      %1076 = vmatpush2.bf16.msra.mxu0 0
      %1077 = vmatprep.subr.bf16.mxu0 0
      %1078 = vmatpush2.bf16.msra.mxu0 0
      %1079 = vmatprep.subr.bf16.mxu0 0
      %1080 = vmatpush2.bf16.msra.mxu0 0
      %1081 = vmatprep.mubr.bf16.mxu0 0
      %1082 = vmatmul.mubr.bf16.gmra.mxu0 %v1047
      %v1083 = vpop.f32.mrf.mxu0
      %v1084 = vadd.f32 %v1031, %v1083
      %v1085 = vpop.f32.mrf.mxu0
      %v1086 = vpop.f32.mrf.mxu0
      %v1087 = vpop.f32.mrf.mxu0
      %1088 = vdwg.mxu0
      %v1089 = vadd.f32 %v520, %v1084
      %v1090 = vld [vmem:[%s6] sm:$0x1]
      %v1091 = vld [vmem:[%s7] sm:$0x1]
      %vm1092 = vcmask 258048
      %v1093 = vsel %vm1092, %v1089, 0.0
      %1094 = vadd.xlane.f32.xlu0 %v1093
      %v1095 = vpop.xlane.xlu0 %1094
      %v1096 = vrcp.pop 32.0
      %v1097 = vmul.f32 %v1095, %v1096
      %v1098 = vsub.f32 %v1089, %v1097
      %v1099 = vmul.f32 %v1098, %v1098
      %v1100 = vsel %vm1092, %v1099, 0.0
      %1101 = vadd.xlane.f32.xlu0 %v1100
      %v1102 = vpop.xlane.xlu0 %1101
      %v1103 = vmul.f32 %v1102, %v1096
      %v1104 = vadd.f32 %v1103, 1e-05
      %v1105 = vrsqrt.pop %v1104
      %v1106 = vmul.f32 %v1098, %v1105
      %v1108 = vlaneseq
      %v1109 = vshrl.u32 %v1108, 7
      %v1110 = vsub.s32 0, %v1109
      %v1111 = vrot.slane %v1090, %v1110
      %v1113 = vmul.f32 %v1106, %v1111
      %v1115 = vlaneseq
      %v1116 = vshrl.u32 %v1115, 7
      %v1117 = vsub.s32 0, %v1116
      %v1118 = vrot.slane %v1091, %v1117
      %v1120 = vadd.f32 %v1113, %v1118
      %v1121 = vpack.c.bf16 %v1120, %v1120
      %v1122 = vld [vmem:[%s8] sm:$0xf]
      %v1123 = vld [vmem:[%s8 + $0x4] sm:$0xf]
      %v1124 = vld [vmem:[%s8 + $0x8] sm:$0xf]
      %v1125 = vld [vmem:[%s8 + $0xc] sm:$0xf]
      %v1126 = vld [vmem:[%s9] sm:$0x1]
      %v1128 = vlaneseq
      %v1129 = vshrl.u32 %v1128, 7
      %v1130 = vsub.s32 0, %v1129
      %v1131 = vrot.slane %v1126, %v1130
      %v1137 = vunpack.c.l.b16 %v1122
      %v1138 = vunpack.c.l.b16 %v1123
      %v1139 = vunpack.c.l.b16 %v1124
      %v1140 = vunpack.c.l.b16 %v1125
      %v1141 = vpack.c.b16 %v1138, %v1137
      %v1142 = vpack.c.b16 %v1140, %v1139
      %v1146 = vsel %vm1045, %v1121, 0
      %1148 = vmatprep.subr.bf16.mxu0 0
      %1149 = vmatpush1.bf16.msra.mxu0 0
      %1150 = vmatprep.subr.bf16.mxu0 0
      %1151 = vmatpush1.bf16.msra.mxu0 0
      %1152 = vmatprep.subr.bf16.mxu0 0
      %1153 = vmatpush1.bf16.msra.mxu0 0
      %1154 = vmatprep.subr.bf16.mxu0 0
      %1155 = vmatpush1.bf16.msra.mxu0 0
      %1156 = vmatprep.subr.bf16.mxu0 0
      %1157 = vmatpush1.bf16.msra.mxu0 0
      %1158 = vmatprep.subr.bf16.mxu0 0
      %1159 = vmatpush1.bf16.msra.mxu0 0
      %1160 = vmatprep.subr.bf16.mxu0 0
      %1161 = vmatpush1.bf16.msra.mxu0 %v1142
      %1162 = vmatprep.subr.bf16.mxu0 0
      %1163 = vmatpush1.bf16.msra.mxu0 %v1141
      %1164 = vmatprep.subr.bf16.mxu0 0
      %1165 = vmatpush2.bf16.msra.mxu0 0
      %1166 = vmatprep.subr.bf16.mxu0 0
      %1167 = vmatpush2.bf16.msra.mxu0 0
      %1168 = vmatprep.subr.bf16.mxu0 0
      %1169 = vmatpush2.bf16.msra.mxu0 0
      %1170 = vmatprep.subr.bf16.mxu0 0
      %1171 = vmatpush2.bf16.msra.mxu0 0
      %1172 = vmatprep.subr.bf16.mxu0 0
      %1173 = vmatpush2.bf16.msra.mxu0 0
      %1174 = vmatprep.subr.bf16.mxu0 0
      %1175 = vmatpush2.bf16.msra.mxu0 0
      %1176 = vmatprep.subr.bf16.mxu0 0
      %1177 = vmatpush2.bf16.msra.mxu0 0
      %1178 = vmatprep.subr.bf16.mxu0 0
      %1179 = vmatpush2.bf16.msra.mxu0 0
      %1180 = vmatprep.mubr.bf16.mxu0 0
      %1181 = vmatmul.mubr.bf16.gmra.mxu0 %v1146
      %v1182 = vpop.f32.mrf.mxu0
      %v1183 = vadd.f32 %v1131, %v1182
      %v1184 = vpop.f32.mrf.mxu0
      %v1185 = vpop.f32.mrf.mxu0
      %v1186 = vpop.f32.mrf.mxu0
      %1187 = vdwg.mxu0
      %v1188 = vpack.c.bf16 %v1183, %v1183
      %v1189 = vmul.bf16 %v1188, 1071267802
      %v1190 = vxor.u32 %v1189, 2147516416
      %v1192 = vmul.bf16 %v1190, 1069105081
      %v1193 = vpow.bf16.pop %v1192
      %v1194 = vadd.bf16 %v1193, 1065369472
      %v1195 = vrcp.bf16.pop %v1194
      %v1196 = vmul.bf16 1065369472, %v1195
      %v1197 = vmul.bf16 %v1188, %v1196
      %v1198 = vld [vmem:[%s10] sm:$0xf]
      %v1199 = vld [vmem:[%s10 + $0x4] sm:$0xf]
      %v1200 = vld [vmem:[%s10 + $0x8] sm:$0xf]
      %v1201 = vld [vmem:[%s10 + $0xc] sm:$0xf]
      %v1202 = vld [vmem:[%s10 + $0x10] sm:$0xf]
      %v1203 = vld [vmem:[%s10 + $0x14] sm:$0xf]
      %v1204 = vld [vmem:[%s10 + $0x18] sm:$0xf]
      %v1205 = vld [vmem:[%s10 + $0x1c] sm:$0xf]
      %v1206 = vld [vmem:[%s10 + $0x20] sm:$0xf]
      %v1207 = vld [vmem:[%s10 + $0x24] sm:$0xf]
      %v1208 = vld [vmem:[%s10 + $0x28] sm:$0xf]
      %v1209 = vld [vmem:[%s10 + $0x2c] sm:$0xf]
      %v1210 = vld [vmem:[%s10 + $0x30] sm:$0xf]
      %v1211 = vld [vmem:[%s10 + $0x34] sm:$0xf]
      %v1212 = vld [vmem:[%s10 + $0x38] sm:$0xf]
      %v1213 = vld [vmem:[%s10 + $0x3c] sm:$0xf]
      %v1230 = vunpack.c.l.b16 %v1198
      %v1231 = vunpack.c.l.b16 %v1199
      %v1232 = vunpack.c.l.b16 %v1200
      %v1233 = vunpack.c.l.b16 %v1201
      %v1234 = vunpack.c.l.b16 %v1202
      %v1235 = vunpack.c.l.b16 %v1203
      %v1236 = vunpack.c.l.b16 %v1204
      %v1237 = vunpack.c.l.b16 %v1205
      %v1238 = vunpack.c.l.b16 %v1206
      %v1239 = vunpack.c.l.b16 %v1207
      %v1240 = vunpack.c.l.b16 %v1208
      %v1241 = vunpack.c.l.b16 %v1209
      %v1242 = vunpack.c.l.b16 %v1210
      %v1243 = vunpack.c.l.b16 %v1211
      %v1244 = vunpack.c.l.b16 %v1212
      %v1245 = vunpack.c.l.b16 %v1213
      %v1246 = vpack.c.b16 %v1231, %v1230
      %v1247 = vpack.c.b16 %v1233, %v1232
      %v1248 = vpack.c.b16 %v1235, %v1234
      %v1249 = vpack.c.b16 %v1237, %v1236
      %v1250 = vpack.c.b16 %v1239, %v1238
      %v1251 = vpack.c.b16 %v1241, %v1240
      %v1252 = vpack.c.b16 %v1243, %v1242
      %v1253 = vpack.c.b16 %v1245, %v1244
      %1262 = vmatprep.subr.bf16.mxu0 0
      %1263 = vmatpush1.bf16.msra.mxu0 %v1253
      %1264 = vmatprep.subr.bf16.mxu0 0
      %1265 = vmatpush1.bf16.msra.mxu0 %v1252
      %1266 = vmatprep.subr.bf16.mxu0 0
      %1267 = vmatpush1.bf16.msra.mxu0 %v1251
      %1268 = vmatprep.subr.bf16.mxu0 0
      %1269 = vmatpush1.bf16.msra.mxu0 %v1250
      %1270 = vmatprep.subr.bf16.mxu0 0
      %1271 = vmatpush1.bf16.msra.mxu0 %v1249
      %1272 = vmatprep.subr.bf16.mxu0 0
      %1273 = vmatpush1.bf16.msra.mxu0 %v1248
      %1274 = vmatprep.subr.bf16.mxu0 0
      %1275 = vmatpush1.bf16.msra.mxu0 %v1247
      %1276 = vmatprep.subr.bf16.mxu0 0
      %1277 = vmatpush1.bf16.msra.mxu0 %v1246
      %1278 = vmatprep.subr.bf16.mxu0 0
      %1279 = vmatpush2.bf16.msra.mxu0 0
      %1280 = vmatprep.subr.bf16.mxu0 0
      %1281 = vmatpush2.bf16.msra.mxu0 0
      %1282 = vmatprep.subr.bf16.mxu0 0
      %1283 = vmatpush2.bf16.msra.mxu0 0
      %1284 = vmatprep.subr.bf16.mxu0 0
      %1285 = vmatpush2.bf16.msra.mxu0 0
      %1286 = vmatprep.subr.bf16.mxu0 0
      %1287 = vmatpush2.bf16.msra.mxu0 0
      %1288 = vmatprep.subr.bf16.mxu0 0
      %1289 = vmatpush2.bf16.msra.mxu0 0
      %1290 = vmatprep.subr.bf16.mxu0 0
      %1291 = vmatpush2.bf16.msra.mxu0 0
      %1292 = vmatprep.subr.bf16.mxu0 0
      %1293 = vmatpush2.bf16.msra.mxu0 0
      %1294 = vmatprep.mubr.bf16.mxu0 0
      %1295 = vmatmul.mubr.bf16.gmra.mxu0 %v1197
      %v1296 = vpop.f32.mrf.mxu0
      %v1297 = vadd.f32 0.0, %v1296
      %v1298 = vpop.f32.mrf.mxu0
      %v1299 = vpop.f32.mrf.mxu0
      %v1300 = vpop.f32.mrf.mxu0
      %1301 = vdwg.mxu0
      %v1302 = vadd.f32 %v1089, %v1297
      %v1303 = vld [vmem:[%s11] sm:$0x1]
      %v1305 = vlaneseq
      %v1306 = vshrl.u32 %v1305, 7
      %v1307 = vsub.s32 0, %v1306
      %v1308 = vrot.slane %v1303, %v1307
      %v1310 = vadd.f32 %v1302, %v1308
      %1311 = vst.msk [vmem:[%s516] sm:$0x1f] %vm1092, %v1310
      %p1312 = scmp.lt.s32.totalorder %s27, 1
      %s1313 = scalar_select %p1312, %s27, 1
      %p1314 = scmp.lt.s32.totalorder %s28, 0
      %s1315 = scalar_select %p1314, %s28, 0
      %s1316 = sadd.s32 %s1315, %s1313
      %s1317 = smul.addr %s1316, 8
      %s1318 = scalar_lea.vmem %s12, %s1317
      // Predicated region
      $region69: #{_lambda_.7} parent=67 // pred_check
        %p1319 = pneg %p331
      $region70: #{_lambda_.7} parent=67 // pred_check_branch
        %1321 = sbr.rel (%p1319) target = $region72
      $region71: #{_lambda_.7} parent=67 // pred_region
        _
      $region72: #{_lambda_.7} parent=67 // pred_fallthru
        _
    $region68: #{_lambda_.7} parent=5 // pred_fallthru
      _
    %p1322 = scmp.le.s32.totalorder 2, %s18
    // Predicated region
    $region73: #{_lambda_.7} parent=5 // pred_check
      %p1323 = pneg %p1322
    $region74: #{_lambda_.7} parent=5 // pred_check_branch
      %1325 = sbr.rel (%p1323) target = $region76
    $region75: #{_lambda_.7} parent=5 // pred_region
      %s1326 = ssub.s32 %s18, 2
      // Predicated region
      $region77: #{_lambda_.7} parent=75 // pred_check
        %p1327 = pneg %p337
      $region78: #{_lambda_.7} parent=75 // pred_check_branch
        %1329 = sbr.rel (%p1327) target = $region80
      $region79: #{_lambda_.7} parent=75 // pred_region
        %p1330 = scmp.lt.s32.totalorder %s29, 1
        %s1331 = scalar_select %p1330, %s29, 1
        %p1332 = scmp.lt.s32.totalorder %s30, 0
        %s1333 = scalar_select %p1332, %s30, 0
        %s1334 = sadd.s32 %s1333, %s1331
        %s1335 = smul.addr %s1334, 8
        %s1336 = scalar_lea.vmem %s12, %s1335
      $region80: #{_lambda_.7} parent=75 // pred_fallthru
        _
    $region76: #{_lambda_.7} parent=5 // pred_fallthru
      _
  $region6: #{_lambda_.7} parent=0 // loop_footer
    %s22 = sadd.s32 1, %s18
  $region7: #{_lambda_.7} parent=0 // loop_footer_branch
    %17 = sbr.rel target = $region3
  $region8: #{_lambda_.7} parent=0 // loop_exit
    _

</llo_original>
